<compile_context>
chip_gen: v7x
topology: tpu7x:2x2x1
jax: 0.10.0
libtpu: 0.0.40
codegen_flags: <defaults>
</compile_context>

<pallas_src>
import functools

import jax
import jax.numpy as jnp
from jax.experimental import pallas as pl
from jax.experimental.pallas import tpu as pltpu

SELU_ALPHA = 1.6732632423543772
SELU_SCALE = 1.0507009873554805


def _selu(x):
    # scale * (x if x > 0 else alpha * (exp(x) - 1))
    neg_in = jnp.minimum(x, 0.0)          # avoid exp overflow on positive side
    neg = SELU_ALPHA * (jnp.exp(neg_in) - 1.0)
    return SELU_SCALE * jnp.where(x > 0, x, neg)


def _encoder_kernel(x_ref,
                    w1_ref, b1_ref, w2_ref, b2_ref,
                    w3_ref, b3_ref, w4_ref, b4_ref,
                    o1_ref, o2_ref, o3_ref, o4_ref,
                    *, vpu_first_layer):
    x = x_ref[0]                           # (Cin, ts), lanes = spatial
    cin, ts = x.shape
    c1 = w1_ref.shape[0]

    if vpu_first_layer:
        # Tiny contraction (K = Cin, e.g. 4): VPU broadcast-FMA instead of an
        # MXU push that would use only 4 of 256 contraction lanes.  (<1% of
        # total FLOPs — kept simple on purpose.)
        w1 = w1_ref[...]                   # (c1, Cin) fp32
        acc = jnp.broadcast_to(b1_ref[...], (c1, ts))
        for ci in range(cin):              # static unroll, Cin is tiny
            acc = acc + w1[:, ci:ci + 1] * x[ci:ci + 1, :]
        h1 = _selu(acc)
    else:
        h1 = _selu(jnp.dot(w1_ref[...], x.astype(w1_ref.dtype),
                           preferred_element_type=jnp.float32) + b1_ref[...])
    o1_ref[0] = h1.astype(o1_ref.dtype)

    # Layers 2-4: MXU matmuls.  Weights arrive pre-cast (bf16 by default);
    # activations are cast to the weight dtype, accumulation stays fp32.
    h2 = _selu(jnp.dot(w2_ref[...], h1.astype(w2_ref.dtype),
                       preferred_element_type=jnp.float32) + b2_ref[...])
    o2_ref[0] = h2.astype(o2_ref.dtype)

    h3 = _selu(jnp.dot(w3_ref[...], h2.astype(w3_ref.dtype),
                       preferred_element_type=jnp.float32) + b3_ref[...])
    o3_ref[0] = h3.astype(o3_ref.dtype)

    h4 = _selu(jnp.dot(w4_ref[...], h3.astype(w4_ref.dtype),
                       preferred_element_type=jnp.float32) + b4_ref[...])
    o4_ref[0] = h4.astype(o4_ref.dtype)


def _round_up(x, m):
    return ((x + m - 1) // m) * m


def _pick_vmem_limit_bytes():
    """~75% of physical VMEM: 48 MiB on v7x (64 MiB/TC), 96 MiB on v5e/v6e."""
    vmem_cap = 64 * 1024 * 1024            # assume most restrictive gen (v7x)
    try:
        info = pltpu.get_tpu_info()
        queried = int(getattr(info, "vmem_capacity_bytes", 0))
        if queried >= 32 * 1024 * 1024:
            vmem_cap = queried
    except Exception:
        pass
    return int(min(vmem_cap * 3 // 4, 96 * 1024 * 1024))


def _tile_cap_from_vmem(vmem_limit, cin, couts, out_itemsize, mm_itemsize,
                        out_buffers):
    """Largest spatial tile (multiple of 128) whose VMEM footprint fits."""
    c1, c2, c3, c4 = couts
    # Bytes of VMEM needed per spatial column at tile size t:
    #   outputs: out_buffers-deep buffered, in out_dtype
    #   input:   double-buffered fp32
    #   h1..h3:  fp32 activations + matmul-dtype copies fed to the MXU
    per_col = (out_buffers * (c1 + c2 + c3 + c4) * out_itemsize
               + 2 * cin * 4
               + (c1 + c2 + c3) * (4 + mm_itemsize))
    usable = max(vmem_limit - 4 * 1024 * 1024,   # weights/biases + slack
                 8 * 1024 * 1024)
    return max(128, (usable // per_col) // 128 * 128)


def _choose_tile_s(s_pad, n, cap):
    """Largest 128-multiple divisor of s_pad that is <= cap, while making the
    (N, S) grid expose >= 2 steps whenever possible (v7x megacore)."""
    blocks = s_pad // 128
    divisor_tiles = sorted(
        {128 * d for d in range(1, blocks + 1) if blocks % d == 0}, reverse=True)
    fitting = [t for t in divisor_tiles if t <= cap]
    tile = fitting[0] if fitting else 128
    if n * (s_pad // tile) < 2:            # grid would be a single step
        proper = [t for t in divisor_tiles if t < s_pad]
        if proper:
            tile = min(tile, proper[0])    # largest proper divisor (<= cap)
    return tile


def cnn_encoder_layers(x_nchw, params, *, max_tile_s=2048, use_bf16_matmul=True,
                       out_dtype=jnp.float32, out_buffers=2):
    """x_nchw: (N, x_dim, H, W) float32. params: w1..w4 (Cout,Cin), b1..b4 (Cout,1).

    Returns (cnn1, cnn2, cnn3, cnn4) in NCHW, matching the PyTorch module.
    """
    N, Cin, H, W = x_nchw.shape
    S = H * W
    S_pad = _round_up(S, 128)

    w1, b1 = params["w1"], params["b1"]
    w2, b2 = params["w2"], params["b2"]
    w3, b3 = params["w3"], params["b3"]
    w4, b4 = params["w4"], params["b4"]
    couts = (w1.shape[0], w2.shape[0], w3.shape[0], w4.shape[0])

    mm_dtype = jnp.bfloat16 if use_bf16_matmul else jnp.float32
    vpu_first_layer = Cin <= 8
    # Layer-1 VPU path wants fp32 operands; MXU layers take (pre-cast) weights.
    w1_k = w1 if vpu_first_layer else w1.astype(mm_dtype)
    w2_k, w3_k, w4_k = (w.astype(mm_dtype) for w in (w2, w3, w4))

    vmem_limit = _pick_vmem_limit_bytes()
    tile_cap = _tile_cap_from_vmem(
        vmem_limit, Cin, couts,
        out_itemsize=jnp.dtype(out_dtype).itemsize,
        mm_itemsize=jnp.dtype(mm_dtype).itemsize,
        out_buffers=max(2, out_buffers))
    tile_s = _choose_tile_s(S_pad, N, min(max_tile_s, tile_cap))

    # NCHW -> (N, Cin, S_pad): pure reshape (+ zero pad of the spatial tail).
    x3d = x_nchw.astype(jnp.float32).reshape(N, Cin, S)
    if S_pad != S:
        x3d = jnp.pad(x3d, ((0, 0), (0, 0), (0, S_pad - S)))

    grid = (N, S_pad // tile_s)

    out_kwargs = {"pipeline_mode": pl.Buffered(out_buffers)} if out_buffers > 2 else {}

    def act_in_spec(c):
        return pl.BlockSpec((1, c, tile_s), lambda n, s: (n, 0, s))

    def act_out_spec(c):
        return pl.BlockSpec((1, c, tile_s), lambda n, s: (n, 0, s), **out_kwargs)

    def resident_spec(shape):
        # Constant block index -> stays resident in VMEM across grid steps.
        return pl.BlockSpec(shape, lambda n, s: (0,) * len(shape))

    out_shapes = tuple(
        jax.ShapeDtypeStruct((N, c, S_pad), out_dtype) for c in couts)

    kernel = functools.partial(_encoder_kernel, vpu_first_layer=vpu_first_layer)

    o1, o2, o3, o4 = pl.pallas_call(
        kernel,
        out_shape=out_shapes,
        grid=grid,
        in_specs=[
            act_in_spec(Cin),
            resident_spec(w1.shape), resident_spec(b1.shape),
            resident_spec(w2.shape), resident_spec(b2.shape),
            resident_spec(w3.shape), resident_spec(b3.shape),
            resident_spec(w4.shape), resident_spec(b4.shape),
        ],
        out_specs=tuple(act_out_spec(c) for c in couts),
        compiler_params=pltpu.CompilerParams(
            dimension_semantics=("parallel", "parallel"),
            vmem_limit_bytes=vmem_limit),
    )(x3d, w1_k, b1, w2_k, b2, w3_k, b3, w4_k, b4)

    outs = (o1, o2, o3, o4)
    if S_pad != S:
        outs = tuple(o[:, :, :S] for o in outs)
    return tuple(o.reshape(N, c, H, W) for o, c in zip(outs, couts))


def init_params(x_dim, h_dim, key):
    """Deterministic synthetic weights with Conv2d(kernel_size=1)-like shapes.

    PyTorch conv weight (Cout, Cin, 1, 1) is stored as (Cout, Cin) and bias as
    (Cout, 1), so the kernel's per-batch matmul is w @ x + b with spatial on
    the lane axis.
    """
    dims = [(x_dim, h_dim), (h_dim, 2 * h_dim),
            (2 * h_dim, 4 * h_dim), (4 * h_dim, 8 * h_dim)]
    params = {}
    for idx, (cin, cout) in enumerate(dims, start=1):
        key, kw, kb = jax.random.split(key, 3)
        bound = 1.0 / jnp.sqrt(jnp.float32(cin))
        params[f"w{idx}"] = jax.random.uniform(
            kw, (cout, cin), jnp.float32, -bound, bound)
        params[f"b{idx}"] = jax.random.uniform(
            kb, (cout, 1), jnp.float32, -bound, bound)
    return params


def _reference(x_nchw, params):
    """Plain-JAX fp32 reference of the PyTorch forward (correctness check)."""
    N, Cin, H, W = x_nchw.shape
    x = x_nchw.reshape(N, Cin, H * W)
    outs = []
    for i in range(1, 5):
        w, b = params[f"w{i}"], params[f"b{i}"]
        x = _selu(jnp.einsum("oc,ncs->nos", w, x) + b[None, :, :])
        outs.append(x.reshape(N, x.shape[1], H, W))
    return tuple(outs)


if __name__ == "__main__":
    key = jax.random.PRNGKey(0)
    k_x, k_p, k_x2 = jax.random.split(key, 3)

    N, x_dim, H, W = 2, 4, 16, 16
    h_dim = 32

    x = jax.random.normal(k_x, (N, x_dim, H, W), jnp.float32)
    params = init_params(x_dim, h_dim, k_p)

    # Exact fp32 path (matches the module's fp32 numerics).
    outs_f32 = jax.block_until_ready(
        cnn_encoder_layers(x, params, use_bf16_matmul=False))
    # Default fast path: bf16 MXU operands, fp32 accumulation, fp32 outputs.
    outs = jax.block_until_ready(cnn_encoder_layers(x, params))

    refs = _reference(x, params)
    for o32, o, r in zip(outs_f32, outs, refs):
        assert o32.shape == r.shape and o32.dtype == r.dtype
        assert o.shape == r.shape and o.dtype == r.dtype
        assert jnp.max(jnp.abs(o32 - r)) < 1e-4, "fp32 kernel mismatch vs reference"
        assert jnp.max(jnp.abs(o - r)) < 5e-2, "bf16-matmul kernel outside tolerance"

    # Non-128-aligned spatial size exercises the padding path (S=100 -> 128).
    x_odd = jax.random.normal(k_x2, (1, x_dim, 10, 10), jnp.float32)
    outs_odd = jax.block_until_ready(
        cnn_encoder_layers(x_odd, params, use_bf16_matmul=False))
    refs_odd = _reference(x_odd, params)
    for o, r in zip(outs_odd, refs_odd):
        assert o.shape == r.shape
        assert jnp.max(jnp.abs(o - r)) < 1e-4, "padded-path mismatch vs reference"

    print("KERNEL_OK")
</pallas_src>

<mosaic_0001>
module attributes {stable_mosaic.version = 11 : i64} {
  func.func @_encoder_kernel(%arg0: i32, %arg1: i32, %arg2: memref<1x4x256xf32, #tpu.memory_space<vmem>>, %arg3: memref<32x4xf32, #tpu.memory_space<vmem>>, %arg4: memref<32x1xf32, #tpu.memory_space<vmem>>, %arg5: memref<64x32xf32, #tpu.memory_space<vmem>>, %arg6: memref<64x1xf32, #tpu.memory_space<vmem>>, %arg7: memref<128x64xf32, #tpu.memory_space<vmem>>, %arg8: memref<128x1xf32, #tpu.memory_space<vmem>>, %arg9: memref<256x128xf32, #tpu.memory_space<vmem>>, %arg10: memref<256x1xf32, #tpu.memory_space<vmem>>, %arg11: memref<1x32x256xf32, #tpu.memory_space<vmem>>, %arg12: memref<1x64x256xf32, #tpu.memory_space<vmem>>, %arg13: memref<1x128x256xf32, #tpu.memory_space<vmem>>, %arg14: memref<1x256x256xf32, #tpu.memory_space<vmem>>) attributes {dimension_semantics = [#tpu.dimension_semantics<parallel>, #tpu.dimension_semantics<parallel>], iteration_bounds = array<i64: 2, 1>, scalar_prefetch = 0 : i64, scratch_operands = 0 : i64, tpu.core_type = #tpu.core_type<tc>, window_params = [{transform_indices = @transform_0, window_bounds = array<i64: 1, 4, 256>}, {pipeline_mode = #tpu.pipeline_mode<synchronous>, transform_indices = @transform_1, window_bounds = array<i64: 32, 4>}, {pipeline_mode = #tpu.pipeline_mode<synchronous>, transform_indices = @transform_2, window_bounds = array<i64: 32, 1>}, {pipeline_mode = #tpu.pipeline_mode<synchronous>, transform_indices = @transform_3, window_bounds = array<i64: 64, 32>}, {pipeline_mode = #tpu.pipeline_mode<synchronous>, transform_indices = @transform_4, window_bounds = array<i64: 64, 1>}, {pipeline_mode = #tpu.pipeline_mode<synchronous>, transform_indices = @transform_5, window_bounds = array<i64: 128, 64>}, {pipeline_mode = #tpu.pipeline_mode<synchronous>, transform_indices = @transform_6, window_bounds = array<i64: 128, 1>}, {pipeline_mode = #tpu.pipeline_mode<synchronous>, transform_indices = @transform_7, window_bounds = array<i64: 256, 128>}, {pipeline_mode = #tpu.pipeline_mode<synchronous>, transform_indices = @transform_8, window_bounds = array<i64: 256, 1>}, {transform_indices = @transform_9, window_bounds = array<i64: 1, 32, 256>}, {transform_indices = @transform_10, window_bounds = array<i64: 1, 64, 256>}, {transform_indices = @transform_11, window_bounds = array<i64: 1, 128, 256>}, {transform_indices = @transform_12, window_bounds = array<i64: 1, 256, 256>}]} {
    %c0 = arith.constant 0 : index
    %c0_0 = arith.constant 0 : index
    %c0_1 = arith.constant 0 : index
    %0 = vector.load %arg2[%c0, %c0_0, %c0_1] : memref<1x4x256xf32, #tpu.memory_space<vmem>>, vector<1x4x256xf32>
    %1 = vector.shape_cast %0 : vector<1x4x256xf32> to vector<4x256xf32>
    %c0_2 = arith.constant 0 : index
    %c0_3 = arith.constant 0 : index
    %2 = vector.load %arg3[%c0_2, %c0_3] : memref<32x4xf32, #tpu.memory_space<vmem>>, vector<32x4xf32>
    %c0_4 = arith.constant 0 : index
    %c0_5 = arith.constant 0 : index
    %3 = vector.load %arg4[%c0_4, %c0_5] : memref<32x1xf32, #tpu.memory_space<vmem>>, vector<32x1xf32>
    %4 = vector.shape_cast %3 : vector<32x1xf32> to vector<32x1xf32>
    %5 = vector.broadcast %4 : vector<32x1xf32> to vector<32x256xf32>
    %6 = vector.extract_strided_slice %2 {offsets = [0, 0], sizes = [32, 1], strides = [1, 1]} : vector<32x4xf32> to vector<32x1xf32>
    %7 = vector.extract_strided_slice %1 {offsets = [0, 0], sizes = [1, 256], strides = [1, 1]} : vector<4x256xf32> to vector<1x256xf32>
    %8 = vector.broadcast %6 : vector<32x1xf32> to vector<32x256xf32>
    %9 = vector.broadcast %7 : vector<1x256xf32> to vector<32x256xf32>
    %10 = arith.mulf %8, %9 : vector<32x256xf32>
    %11 = arith.addf %5, %10 : vector<32x256xf32>
    %12 = vector.extract_strided_slice %2 {offsets = [0, 1], sizes = [32, 1], strides = [1, 1]} : vector<32x4xf32> to vector<32x1xf32>
    %13 = vector.extract_strided_slice %1 {offsets = [1, 0], sizes = [1, 256], strides = [1, 1]} : vector<4x256xf32> to vector<1x256xf32>
    %14 = vector.broadcast %12 : vector<32x1xf32> to vector<32x256xf32>
    %15 = vector.broadcast %13 : vector<1x256xf32> to vector<32x256xf32>
    %16 = arith.mulf %14, %15 : vector<32x256xf32>
    %17 = arith.addf %11, %16 : vector<32x256xf32>
    %18 = vector.extract_strided_slice %2 {offsets = [0, 2], sizes = [32, 1], strides = [1, 1]} : vector<32x4xf32> to vector<32x1xf32>
    %19 = vector.extract_strided_slice %1 {offsets = [2, 0], sizes = [1, 256], strides = [1, 1]} : vector<4x256xf32> to vector<1x256xf32>
    %20 = vector.broadcast %18 : vector<32x1xf32> to vector<32x256xf32>
    %21 = vector.broadcast %19 : vector<1x256xf32> to vector<32x256xf32>
    %22 = arith.mulf %20, %21 : vector<32x256xf32>
    %23 = arith.addf %17, %22 : vector<32x256xf32>
    %24 = vector.extract_strided_slice %2 {offsets = [0, 3], sizes = [32, 1], strides = [1, 1]} : vector<32x4xf32> to vector<32x1xf32>
    %25 = vector.extract_strided_slice %1 {offsets = [3, 0], sizes = [1, 256], strides = [1, 1]} : vector<4x256xf32> to vector<1x256xf32>
    %26 = vector.broadcast %24 : vector<32x1xf32> to vector<32x256xf32>
    %27 = vector.broadcast %25 : vector<1x256xf32> to vector<32x256xf32>
    %28 = arith.mulf %26, %27 : vector<32x256xf32>
    %29 = arith.addf %23, %28 : vector<32x256xf32>
    %cst = arith.constant 0.000000e+00 : f32
    %30 = vector.broadcast %cst : f32 to vector<32x256xf32>
    %31 = arith.minimumf %29, %30 : vector<32x256xf32>
    %32 = math.exp %31 : vector<32x256xf32>
    %cst_6 = arith.constant 1.000000e+00 : f32
    %33 = vector.broadcast %cst_6 : f32 to vector<32x256xf32>
    %34 = arith.subf %32, %33 : vector<32x256xf32>
    %cst_7 = arith.constant 1.67326319 : f32
    %35 = vector.broadcast %cst_7 : f32 to vector<32x256xf32>
    %36 = arith.mulf %35, %34 : vector<32x256xf32>
    %cst_8 = arith.constant 0.000000e+00 : f32
    %37 = vector.broadcast %cst_8 : f32 to vector<32x256xf32>
    %38 = arith.cmpf ogt, %29, %37 : vector<32x256xf32>
    %39 = arith.select %38, %29, %36 : vector<32x256xi1>, vector<32x256xf32>
    %cst_9 = arith.constant 1.05070102 : f32
    %40 = vector.broadcast %cst_9 : f32 to vector<32x256xf32>
    %41 = arith.mulf %40, %39 : vector<32x256xf32>
    %c0_10 = arith.constant 0 : index
    %c0_11 = arith.constant 0 : index
    %c0_12 = arith.constant 0 : index
    %42 = vector.load %arg11[%c0_10, %c0_11, %c0_12] : memref<1x32x256xf32, #tpu.memory_space<vmem>>, vector<1x32x256xf32>
    %43 = vector.shape_cast %42 : vector<1x32x256xf32> to vector<32x256xf32>
    %44 = vector.shape_cast %41 : vector<32x256xf32> to vector<1x32x256xf32>
    tpu.vector_store %arg11[%c0_10, %c0_11, %c0_12], %44 {strides = array<i32>} : memref<1x32x256xf32, #tpu.memory_space<vmem>>, vector<1x32x256xf32>,
    %c0_13 = arith.constant 0 : index
    %c0_14 = arith.constant 0 : index
    %45 = vector.load %arg5[%c0_13, %c0_14] : memref<64x32xf32, #tpu.memory_space<vmem>>, vector<64x32xf32>
    %cst_15 = arith.constant dense<0.000000e+00> : vector<64x256xf32>
    %46 = tpu.matmul %45, %41, %cst_15 {dimension_numbers = #tpu.dot_dimension_numbers<[1], [0], [0], [1], [0, 0, 1, 1], [], []>} : vector<64x32xf32>, vector<32x256xf32>, vector<64x256xf32> -> vector<64x256xf32>
    %c0_16 = arith.constant 0 : index
    %c0_17 = arith.constant 0 : index
    %47 = vector.load %arg6[%c0_16, %c0_17] : memref<64x1xf32, #tpu.memory_space<vmem>>, vector<64x1xf32>
    %48 = vector.broadcast %47 : vector<64x1xf32> to vector<64x256xf32>
    %49 = arith.addf %46, %48 : vector<64x256xf32>
    %cst_18 = arith.constant 0.000000e+00 : f32
    %50 = vector.broadcast %cst_18 : f32 to vector<64x256xf32>
    %51 = arith.minimumf %49, %50 : vector<64x256xf32>
    %52 = math.exp %51 : vector<64x256xf32>
    %cst_19 = arith.constant 1.000000e+00 : f32
    %53 = vector.broadcast %cst_19 : f32 to vector<64x256xf32>
    %54 = arith.subf %52, %53 : vector<64x256xf32>
    %cst_20 = arith.constant 1.67326319 : f32
    %55 = vector.broadcast %cst_20 : f32 to vector<64x256xf32>
    %56 = arith.mulf %55, %54 : vector<64x256xf32>
    %cst_21 = arith.constant 0.000000e+00 : f32
    %57 = vector.broadcast %cst_21 : f32 to vector<64x256xf32>
    %58 = arith.cmpf ogt, %49, %57 : vector<64x256xf32>
    %59 = arith.select %58, %49, %56 : vector<64x256xi1>, vector<64x256xf32>
    %cst_22 = arith.constant 1.05070102 : f32
    %60 = vector.broadcast %cst_22 : f32 to vector<64x256xf32>
    %61 = arith.mulf %60, %59 : vector<64x256xf32>
    %c0_23 = arith.constant 0 : index
    %c0_24 = arith.constant 0 : index
    %c0_25 = arith.constant 0 : index
    %62 = vector.load %arg12[%c0_23, %c0_24, %c0_25] : memref<1x64x256xf32, #tpu.memory_space<vmem>>, vector<1x64x256xf32>
    %63 = vector.shape_cast %62 : vector<1x64x256xf32> to vector<64x256xf32>
    %64 = vector.shape_cast %61 : vector<64x256xf32> to vector<1x64x256xf32>
    tpu.vector_store %arg12[%c0_23, %c0_24, %c0_25], %64 {strides = array<i32>} : memref<1x64x256xf32, #tpu.memory_space<vmem>>, vector<1x64x256xf32>,
    %c0_26 = arith.constant 0 : index
    %c0_27 = arith.constant 0 : index
    %65 = vector.load %arg7[%c0_26, %c0_27] : memref<128x64xf32, #tpu.memory_space<vmem>>, vector<128x64xf32>
    %cst_28 = arith.constant dense<0.000000e+00> : vector<128x256xf32>
    %66 = tpu.matmul %65, %61, %cst_28 {dimension_numbers = #tpu.dot_dimension_numbers<[1], [0], [0], [1], [0, 0, 1, 1], [], []>} : vector<128x64xf32>, vector<64x256xf32>, vector<128x256xf32> -> vector<128x256xf32>
    %c0_29 = arith.constant 0 : index
    %c0_30 = arith.constant 0 : index
    %67 = vector.load %arg8[%c0_29, %c0_30] : memref<128x1xf32, #tpu.memory_space<vmem>>, vector<128x1xf32>
    %68 = vector.broadcast %67 : vector<128x1xf32> to vector<128x256xf32>
    %69 = arith.addf %66, %68 : vector<128x256xf32>
    %cst_31 = arith.constant 0.000000e+00 : f32
    %70 = vector.broadcast %cst_31 : f32 to vector<128x256xf32>
    %71 = arith.minimumf %69, %70 : vector<128x256xf32>
    %72 = math.exp %71 : vector<128x256xf32>
    %cst_32 = arith.constant 1.000000e+00 : f32
    %73 = vector.broadcast %cst_32 : f32 to vector<128x256xf32>
    %74 = arith.subf %72, %73 : vector<128x256xf32>
    %cst_33 = arith.constant 1.67326319 : f32
    %75 = vector.broadcast %cst_33 : f32 to vector<128x256xf32>
    %76 = arith.mulf %75, %74 : vector<128x256xf32>
    %cst_34 = arith.constant 0.000000e+00 : f32
    %77 = vector.broadcast %cst_34 : f32 to vector<128x256xf32>
    %78 = arith.cmpf ogt, %69, %77 : vector<128x256xf32>
    %79 = arith.select %78, %69, %76 : vector<128x256xi1>, vector<128x256xf32>
    %cst_35 = arith.constant 1.05070102 : f32
    %80 = vector.broadcast %cst_35 : f32 to vector<128x256xf32>
    %81 = arith.mulf %80, %79 : vector<128x256xf32>
    %c0_36 = arith.constant 0 : index
    %c0_37 = arith.constant 0 : index
    %c0_38 = arith.constant 0 : index
    %82 = vector.load %arg13[%c0_36, %c0_37, %c0_38] : memref<1x128x256xf32, #tpu.memory_space<vmem>>, vector<1x128x256xf32>
    %83 = vector.shape_cast %82 : vector<1x128x256xf32> to vector<128x256xf32>
    %84 = vector.shape_cast %81 : vector<128x256xf32> to vector<1x128x256xf32>
    tpu.vector_store %arg13[%c0_36, %c0_37, %c0_38], %84 {strides = array<i32>} : memref<1x128x256xf32, #tpu.memory_space<vmem>>, vector<1x128x256xf32>,
    %c0_39 = arith.constant 0 : index
    %c0_40 = arith.constant 0 : index
    %85 = vector.load %arg9[%c0_39, %c0_40] : memref<256x128xf32, #tpu.memory_space<vmem>>, vector<256x128xf32>
    %cst_41 = arith.constant dense<0.000000e+00> : vector<256x256xf32>
    %86 = tpu.matmul %85, %81, %cst_41 {dimension_numbers = #tpu.dot_dimension_numbers<[1], [0], [0], [1], [0, 0, 1, 1], [], []>} : vector<256x128xf32>, vector<128x256xf32>, vector<256x256xf32> -> vector<256x256xf32>
    %c0_42 = arith.constant 0 : index
    %c0_43 = arith.constant 0 : index
    %87 = vector.load %arg10[%c0_42, %c0_43] : memref<256x1xf32, #tpu.memory_space<vmem>>, vector<256x1xf32>
    %88 = vector.broadcast %87 : vector<256x1xf32> to vector<256x256xf32>
    %89 = arith.addf %86, %88 : vector<256x256xf32>
    %cst_44 = arith.constant 0.000000e+00 : f32
    %90 = vector.broadcast %cst_44 : f32 to vector<256x256xf32>
    %91 = arith.minimumf %89, %90 : vector<256x256xf32>
    %92 = math.exp %91 : vector<256x256xf32>
    %cst_45 = arith.constant 1.000000e+00 : f32
    %93 = vector.broadcast %cst_45 : f32 to vector<256x256xf32>
    %94 = arith.subf %92, %93 : vector<256x256xf32>
    %cst_46 = arith.constant 1.67326319 : f32
    %95 = vector.broadcast %cst_46 : f32 to vector<256x256xf32>
    %96 = arith.mulf %95, %94 : vector<256x256xf32>
    %cst_47 = arith.constant 0.000000e+00 : f32
    %97 = vector.broadcast %cst_47 : f32 to vector<256x256xf32>
    %98 = arith.cmpf ogt, %89, %97 : vector<256x256xf32>
    %99 = arith.select %98, %89, %96 : vector<256x256xi1>, vector<256x256xf32>
    %cst_48 = arith.constant 1.05070102 : f32
    %100 = vector.broadcast %cst_48 : f32 to vector<256x256xf32>
    %101 = arith.mulf %100, %99 : vector<256x256xf32>
    %c0_49 = arith.constant 0 : index
    %c0_50 = arith.constant 0 : index
    %c0_51 = arith.constant 0 : index
    %102 = vector.load %arg14[%c0_49, %c0_50, %c0_51] : memref<1x256x256xf32, #tpu.memory_space<vmem>>, vector<1x256x256xf32>
    %103 = vector.shape_cast %102 : vector<1x256x256xf32> to vector<256x256xf32>
    %104 = vector.shape_cast %101 : vector<256x256xf32> to vector<1x256x256xf32>
    tpu.vector_store %arg14[%c0_49, %c0_50, %c0_51], %104 {strides = array<i32>} : memref<1x256x256xf32, #tpu.memory_space<vmem>>, vector<1x256x256xf32>,
    return
  }
  func.func @transform_0(%arg0: i32, %arg1: i32) -> (i32, i32, i32) {
    %c0_i32 = arith.constant 0 : i32
    %c0_i32_0 = arith.constant 0 : i32
    return %arg0, %c0_i32, %arg1 : i32, i32, i32
  }
  func.func @transform_1(%arg0: i32, %arg1: i32) -> (i32, i32) {
    %c0_i32 = arith.constant 0 : i32
    %c0_i32_0 = arith.constant 0 : i32
    %c0_i32_1 = arith.constant 0 : i32
    return %c0_i32, %c0_i32_0 : i32, i32
  }
  func.func @transform_2(%arg0: i32, %arg1: i32) -> (i32, i32) {
    %c0_i32 = arith.constant 0 : i32
    %c0_i32_0 = arith.constant 0 : i32
    %c0_i32_1 = arith.constant 0 : i32
    return %c0_i32, %c0_i32_0 : i32, i32
  }
  func.func @transform_3(%arg0: i32, %arg1: i32) -> (i32, i32) {
    %c0_i32 = arith.constant 0 : i32
    %c0_i32_0 = arith.constant 0 : i32
    %c0_i32_1 = arith.constant 0 : i32
    return %c0_i32, %c0_i32_0 : i32, i32
  }
  func.func @transform_4(%arg0: i32, %arg1: i32) -> (i32, i32) {
    %c0_i32 = arith.constant 0 : i32
    %c0_i32_0 = arith.constant 0 : i32
    %c0_i32_1 = arith.constant 0 : i32
    return %c0_i32, %c0_i32_0 : i32, i32
  }
  func.func @transform_5(%arg0: i32, %arg1: i32) -> (i32, i32) {
    %c0_i32 = arith.constant 0 : i32
    %c0_i32_0 = arith.constant 0 : i32
    %c0_i32_1 = arith.constant 0 : i32
    return %c0_i32, %c0_i32_0 : i32, i32
  }
  func.func @transform_6(%arg0: i32, %arg1: i32) -> (i32, i32) {
    %c0_i32 = arith.constant 0 : i32
    %c0_i32_0 = arith.constant 0 : i32
    %c0_i32_1 = arith.constant 0 : i32
    return %c0_i32, %c0_i32_0 : i32, i32
  }
  func.func @transform_7(%arg0: i32, %arg1: i32) -> (i32, i32) {
    %c0_i32 = arith.constant 0 : i32
    %c0_i32_0 = arith.constant 0 : i32
    %c0_i32_1 = arith.constant 0 : i32
    return %c0_i32, %c0_i32_0 : i32, i32
  }
  func.func @transform_8(%arg0: i32, %arg1: i32) -> (i32, i32) {
    %c0_i32 = arith.constant 0 : i32
    %c0_i32_0 = arith.constant 0 : i32
    %c0_i32_1 = arith.constant 0 : i32
    return %c0_i32, %c0_i32_0 : i32, i32
  }
  func.func @transform_9(%arg0: i32, %arg1: i32) -> (i32, i32, i32) {
    %c0_i32 = arith.constant 0 : i32
    %c0_i32_0 = arith.constant 0 : i32
    return %arg0, %c0_i32, %arg1 : i32, i32, i32
  }
  func.func @transform_10(%arg0: i32, %arg1: i32) -> (i32, i32, i32) {
    %c0_i32 = arith.constant 0 : i32
    %c0_i32_0 = arith.constant 0 : i32
    return %arg0, %c0_i32, %arg1 : i32, i32, i32
  }
  func.func @transform_11(%arg0: i32, %arg1: i32) -> (i32, i32, i32) {
    %c0_i32 = arith.constant 0 : i32
    %c0_i32_0 = arith.constant 0 : i32
    return %arg0, %c0_i32, %arg1 : i32, i32, i32
  }
  func.func @transform_12(%arg0: i32, %arg1: i32) -> (i32, i32, i32) {
    %c0_i32 = arith.constant 0 : i32
    %c0_i32_0 = arith.constant 0 : i32
    return %arg0, %c0_i32, %arg1 : i32, i32, i32
  }
}

</mosaic_0001>

<llo_original>
// kernel: tpu_custom_call.1
$region0: #{tpu_custom_call.1}
  #allocation0 [shape = 'u32[]', space=smem, size = 0x4, offset = 0x4, fixed_abs, tag = 'smem constant byte address 0x4 - core index']
  #allocation1 [shape = 'u32[144,128]{1,0:T(1,128)}', space=vmem, size = 0x12000, scoped, tag = 'internal scratch']
  %s0 = inlined_call_operand.vmem [shape: f32[2,4,256], index: 0, kind: input, shape index: {}]
  %s1 = inlined_call_operand.vmem [shape: f32[32,4], index: 1, kind: input, shape index: {}]
  %s2 = inlined_call_operand.vmem [shape: f32[32,1], index: 2, kind: input, shape index: {}]
  %s3 = inlined_call_operand.vmem [shape: f32[64,32], index: 3, kind: input, shape index: {}]
  %s4 = inlined_call_operand.vmem [shape: f32[64,1], index: 4, kind: input, shape index: {}]
  %s5 = inlined_call_operand.vmem [shape: f32[128,64], index: 5, kind: input, shape index: {}]
  %s6 = inlined_call_operand.vmem [shape: f32[128,1], index: 6, kind: input, shape index: {}]
  %s7 = inlined_call_operand.vmem [shape: f32[256,128], index: 7, kind: input, shape index: {}]
  %s8 = inlined_call_operand.vmem [shape: f32[256,1], index: 8, kind: input, shape index: {}]
  %s9 = inlined_call_operand.hbm [shape: f32[2,32,256], index: 9, kind: output, shape index: {0}]
  %s10 = inlined_call_operand.hbm [shape: f32[2,64,256], index: 10, kind: output, shape index: {1}]
  %s11 = inlined_call_operand.hbm [shape: f32[2,128,256], index: 11, kind: output, shape index: {2}]
  %s12 = inlined_call_operand.hbm [shape: f32[2,256,256], index: 12, kind: output, shape index: {3}]
  %13 = xla_tuple %s9, %s10, %s11, %s12
  %s14 = sld [smem:[#allocation0]]
  $region93: #{tpu_custom_call.1} parent=0
    _
  %s16 = ssub.s32 1, %s14
  %s17 = scalar_select 0, %s16, %s14
  $region1: #{tpu_custom_call.1} parent=0
    #allocation2 [shape = 'u8[65536]{0}', space=vmem, size = 0x10000, scoped, tag = 'output window, operand 0']
    #allocation3 [shape = 's32[2]{0}', space=sflag, size = 0x8, scoped, tag = 'scoped memory for tpu_custom_call.1']
    #allocation4 [shape = 'u8[131072]{0}', space=vmem, size = 0x20000, scoped, tag = 'output window, operand 1']
    #allocation5 [shape = 's32[2]{0}', space=sflag, size = 0x8, scoped, tag = 'scoped memory for tpu_custom_call.1']
    #allocation6 [shape = 'u8[262144]{0}', space=vmem, size = 0x40000, scoped, tag = 'output window, operand 2']
    #allocation7 [shape = 'u8[524288]{0}', space=vmem, size = 0x80000, scoped, tag = 'output window, operand 3']
    #allocation8 [shape = 's32[2]{0}', space=sflag, size = 0x8, scoped, tag = 'scoped memory for tpu_custom_call.1']
    %18 = vsyncpa [#allocation3], 0
    %s19 = scalar_lea.sflag [#allocation3], 1
    %20 = vsyncpa %s19, 0
    %21 = vsyncpa [#allocation5], 0
    %s22 = scalar_lea.sflag [#allocation5], 1
    %23 = vsyncpa %s22, 0
    %24 = vsyncpa [#allocation8], 0
    %s25 = scalar_lea.sflag [#allocation8], 1
    %26 = vsyncpa %s25, 0
    loop: start=0, step=1, limit=4
    $region2: #{tpu_custom_call.1} parent=1 // loop_pre_header
      _
    $region3: #{tpu_custom_call.1} parent=1 // loop_header
      %s28 = sphi 0, %s32
      %p29 = scmp.ge.s32.totalorder %s28, 4
      %s35 = sphi 0, %s47
      %s36 = sphi 0, %s43
      %s37 = sphi 0, %s35
      %s38 = sphi 0, %s36
      %s39 = sphi 0, %s37
      %s40 = sphi 0, %s38
      %s52 = sphi 0, %s54
      %s55 = sphi 0, %s52
      %s56 = sphi 0, %s55
      %s72 = sphi 0, %s56
      %s76 = sphi 0, %s76
      %s78 = sphi 0, %s76
      %s79 = sphi 0, %s78
      %s93 = sphi 0, %s79
      %s97 = sphi 0, %s97
      %s99 = sphi 0, %s97
      %s100 = sphi 0, %s99
      %s114 = sphi 0, %s100
      %s118 = sphi 0, %s118
      %s120 = sphi 0, %s118
      %s121 = sphi 0, %s120
      %s135 = sphi 0, %s121
      %s139 = sphi 0, %s139
      %s141 = sphi 0, %s139
      %s142 = sphi 0, %s141
      %s156 = sphi 0, %s142
      %s160 = sphi 0, %s160
      %s162 = sphi 0, %s160
      %s163 = sphi 0, %s162
      %s177 = sphi 0, %s163
      %s181 = sphi 0, %s181
      %s183 = sphi 0, %s181
      %s184 = sphi 0, %s183
      %s198 = sphi 0, %s184
      %s202 = sphi 0, %s202
      %s204 = sphi 0, %s202
      %s205 = sphi 0, %s204
      %s219 = sphi 0, %s205
      %s223 = sphi 0, %s223
      %s225 = sphi 0, %s223
      %s226 = sphi 0, %s225
      %s240 = sphi 0, %s226
      %s248 = sphi 0, %s250
      %s251 = sphi 0, %s248
      %s252 = sphi 0, %s251
      %s268 = sphi 0, %s252
      %s276 = sphi 0, %s278
      %s279 = sphi 0, %s276
      %s280 = sphi 0, %s279
      %s296 = sphi 0, %s280
      %s304 = sphi 0, %s306
      %s307 = sphi 0, %s304
      %s308 = sphi 0, %s307
      %s324 = sphi 0, %s308
      %s332 = sphi 0, %s334
      %s335 = sphi 0, %s332
      %s336 = sphi 0, %s335
      %s352 = sphi 0, %s336
    $region4: #{tpu_custom_call.1} parent=1 // loop_header_branch
      %31 = sbr.rel (%p29) target = $region8
    $region5: #{tpu_custom_call.1} parent=1 // loop_body
      %s33 = ssub.s32 %s28, 1
      %s34 = ssub.s32 %s28, 2
      %s41 = sadd.s32 1, %s36
      %p42 = scmp.ge.s32.totalorder %s41, 1
      %s43 = scalar_select %p42, 0, %s41
      %s44 = sadd.s32 1, %s35
      %s45 = scalar_select %p42, %s44, %s35
      %p46 = scmp.ge.s32.totalorder %s45, 2
      %s47 = scalar_select %p46, 0, %s45
      %s48 = ssub.s32 %s35, %s47
      %s49 = ssub.s32 %s36, %s43
      %s50 = sor.u32 %s48, %s49
      %p51 = scmp.eq.s32.totalorder %s50, 0
      %s53 = sadd.s32 %s52, 1
      %s54 = scalar_select %p51, %s52, %s53
      %p57 = pneg %p51
      %p58 = scmp.eq.s32.totalorder %s28, 1
      %p59 = por %p57, %p58
      %p60 = scmp.ne.s32.totalorder %s52, %s55
      %p61 = scmp.eq.s32.totalorder %s28, 0
      %p62 = por %p60, %p61
      %p63 = scmp.ne.s32.totalorder %s52, %s55
      %p64 = scmp.eq.s32.totalorder %s33, 1
      %p65 = por %p63, %p64
      %p66 = scmp.ne.s32.totalorder %s55, %s56
      %p67 = scmp.eq.s32.totalorder %s33, 0
      %p68 = por %p66, %p67
      %p69 = scmp.ne.s32.totalorder %s55, %s56
      %p70 = scmp.eq.s32.totalorder %s34, 1
      %p71 = por %p69, %p70
      %p73 = scmp.ne.s32.totalorder %s56, %s72
      %p74 = scmp.eq.s32.totalorder %s34, 0
      %p75 = por %p73, %p74
      %s77 = sadd.s32 %s76, 1
      %p80 = scmp.eq.s32.totalorder %s28, 1
      %p81 = scmp.ne.s32.totalorder %s76, %s78
      %p82 = scmp.eq.s32.totalorder %s28, 0
      %p83 = por %p81, %p82
      %p84 = scmp.ne.s32.totalorder %s76, %s78
      %p85 = scmp.eq.s32.totalorder %s33, 1
      %p86 = por %p84, %p85
      %p87 = scmp.ne.s32.totalorder %s78, %s79
      %p88 = scmp.eq.s32.totalorder %s33, 0
      %p89 = por %p87, %p88
      %p90 = scmp.ne.s32.totalorder %s78, %s79
      %p91 = scmp.eq.s32.totalorder %s34, 1
      %p92 = por %p90, %p91
      %p94 = scmp.ne.s32.totalorder %s79, %s93
      %p95 = scmp.eq.s32.totalorder %s34, 0
      %p96 = por %p94, %p95
      %s98 = sadd.s32 %s97, 1
      %p101 = scmp.eq.s32.totalorder %s28, 1
      %p102 = scmp.ne.s32.totalorder %s97, %s99
      %p103 = scmp.eq.s32.totalorder %s28, 0
      %p104 = por %p102, %p103
      %p105 = scmp.ne.s32.totalorder %s97, %s99
      %p106 = scmp.eq.s32.totalorder %s33, 1
      %p107 = por %p105, %p106
      %p108 = scmp.ne.s32.totalorder %s99, %s100
      %p109 = scmp.eq.s32.totalorder %s33, 0
      %p110 = por %p108, %p109
      %p111 = scmp.ne.s32.totalorder %s99, %s100
      %p112 = scmp.eq.s32.totalorder %s34, 1
      %p113 = por %p111, %p112
      %p115 = scmp.ne.s32.totalorder %s100, %s114
      %p116 = scmp.eq.s32.totalorder %s34, 0
      %p117 = por %p115, %p116
      %s119 = sadd.s32 %s118, 1
      %p122 = scmp.eq.s32.totalorder %s28, 1
      %p123 = scmp.ne.s32.totalorder %s118, %s120
      %p124 = scmp.eq.s32.totalorder %s28, 0
      %p125 = por %p123, %p124
      %p126 = scmp.ne.s32.totalorder %s118, %s120
      %p127 = scmp.eq.s32.totalorder %s33, 1
      %p128 = por %p126, %p127
      %p129 = scmp.ne.s32.totalorder %s120, %s121
      %p130 = scmp.eq.s32.totalorder %s33, 0
      %p131 = por %p129, %p130
      %p132 = scmp.ne.s32.totalorder %s120, %s121
      %p133 = scmp.eq.s32.totalorder %s34, 1
      %p134 = por %p132, %p133
      %p136 = scmp.ne.s32.totalorder %s121, %s135
      %p137 = scmp.eq.s32.totalorder %s34, 0
      %p138 = por %p136, %p137
      %s140 = sadd.s32 %s139, 1
      %p143 = scmp.eq.s32.totalorder %s28, 1
      %p144 = scmp.ne.s32.totalorder %s139, %s141
      %p145 = scmp.eq.s32.totalorder %s28, 0
      %p146 = por %p144, %p145
      %p147 = scmp.ne.s32.totalorder %s139, %s141
      %p148 = scmp.eq.s32.totalorder %s33, 1
      %p149 = por %p147, %p148
      %p150 = scmp.ne.s32.totalorder %s141, %s142
      %p151 = scmp.eq.s32.totalorder %s33, 0
      %p152 = por %p150, %p151
      %p153 = scmp.ne.s32.totalorder %s141, %s142
      %p154 = scmp.eq.s32.totalorder %s34, 1
      %p155 = por %p153, %p154
      %p157 = scmp.ne.s32.totalorder %s142, %s156
      %p158 = scmp.eq.s32.totalorder %s34, 0
      %p159 = por %p157, %p158
      %s161 = sadd.s32 %s160, 1
      %p164 = scmp.eq.s32.totalorder %s28, 1
      %p165 = scmp.ne.s32.totalorder %s160, %s162
      %p166 = scmp.eq.s32.totalorder %s28, 0
      %p167 = por %p165, %p166
      %p168 = scmp.ne.s32.totalorder %s160, %s162
      %p169 = scmp.eq.s32.totalorder %s33, 1
      %p170 = por %p168, %p169
      %p171 = scmp.ne.s32.totalorder %s162, %s163
      %p172 = scmp.eq.s32.totalorder %s33, 0
      %p173 = por %p171, %p172
      %p174 = scmp.ne.s32.totalorder %s162, %s163
      %p175 = scmp.eq.s32.totalorder %s34, 1
      %p176 = por %p174, %p175
      %p178 = scmp.ne.s32.totalorder %s163, %s177
      %p179 = scmp.eq.s32.totalorder %s34, 0
      %p180 = por %p178, %p179
      %s182 = sadd.s32 %s181, 1
      %p185 = scmp.eq.s32.totalorder %s28, 1
      %p186 = scmp.ne.s32.totalorder %s181, %s183
      %p187 = scmp.eq.s32.totalorder %s28, 0
      %p188 = por %p186, %p187
      %p189 = scmp.ne.s32.totalorder %s181, %s183
      %p190 = scmp.eq.s32.totalorder %s33, 1
      %p191 = por %p189, %p190
      %p192 = scmp.ne.s32.totalorder %s183, %s184
      %p193 = scmp.eq.s32.totalorder %s33, 0
      %p194 = por %p192, %p193
      %p195 = scmp.ne.s32.totalorder %s183, %s184
      %p196 = scmp.eq.s32.totalorder %s34, 1
      %p197 = por %p195, %p196
      %p199 = scmp.ne.s32.totalorder %s184, %s198
      %p200 = scmp.eq.s32.totalorder %s34, 0
      %p201 = por %p199, %p200
      %s203 = sadd.s32 %s202, 1
      %p206 = scmp.eq.s32.totalorder %s28, 1
      %p207 = scmp.ne.s32.totalorder %s202, %s204
      %p208 = scmp.eq.s32.totalorder %s28, 0
      %p209 = por %p207, %p208
      %p210 = scmp.ne.s32.totalorder %s202, %s204
      %p211 = scmp.eq.s32.totalorder %s33, 1
      %p212 = por %p210, %p211
      %p213 = scmp.ne.s32.totalorder %s204, %s205
      %p214 = scmp.eq.s32.totalorder %s33, 0
      %p215 = por %p213, %p214
      %p216 = scmp.ne.s32.totalorder %s204, %s205
      %p217 = scmp.eq.s32.totalorder %s34, 1
      %p218 = por %p216, %p217
      %p220 = scmp.ne.s32.totalorder %s205, %s219
      %p221 = scmp.eq.s32.totalorder %s34, 0
      %p222 = por %p220, %p221
      %s224 = sadd.s32 %s223, 1
      %p227 = scmp.eq.s32.totalorder %s28, 1
      %p228 = scmp.ne.s32.totalorder %s223, %s225
      %p229 = scmp.eq.s32.totalorder %s28, 0
      %p230 = por %p228, %p229
      %p231 = scmp.ne.s32.totalorder %s223, %s225
      %p232 = scmp.eq.s32.totalorder %s33, 1
      %p233 = por %p231, %p232
      %p234 = scmp.ne.s32.totalorder %s225, %s226
      %p235 = scmp.eq.s32.totalorder %s33, 0
      %p236 = por %p234, %p235
      %p237 = scmp.ne.s32.totalorder %s225, %s226
      %p238 = scmp.eq.s32.totalorder %s34, 1
      %p239 = por %p237, %p238
      %p241 = scmp.ne.s32.totalorder %s226, %s240
      %p242 = scmp.eq.s32.totalorder %s34, 0
      %p243 = por %p241, %p242
      %s244 = ssub.s32 %s35, %s47
      %s245 = ssub.s32 %s36, %s43
      %s246 = sor.u32 %s244, %s245
      %p247 = scmp.eq.s32.totalorder %s246, 0
      %s249 = sadd.s32 %s248, 1
      %s250 = scalar_select %p247, %s248, %s249
      %p253 = pneg %p247
      %p254 = scmp.eq.s32.totalorder %s28, 1
      %p255 = por %p253, %p254
      %p256 = scmp.ne.s32.totalorder %s248, %s251
      %p257 = scmp.eq.s32.totalorder %s28, 0
      %p258 = por %p256, %p257
      %p259 = scmp.ne.s32.totalorder %s248, %s251
      %p260 = scmp.eq.s32.totalorder %s33, 1
      %p261 = por %p259, %p260
      %p262 = scmp.ne.s32.totalorder %s251, %s252
      %p263 = scmp.eq.s32.totalorder %s33, 0
      %p264 = por %p262, %p263
      %p265 = scmp.ne.s32.totalorder %s251, %s252
      %p266 = scmp.eq.s32.totalorder %s34, 1
      %p267 = por %p265, %p266
      %p269 = scmp.ne.s32.totalorder %s252, %s268
      %p270 = scmp.eq.s32.totalorder %s34, 0
      %p271 = por %p269, %p270
      %s272 = ssub.s32 %s35, %s47
      %s273 = ssub.s32 %s36, %s43
      %s274 = sor.u32 %s272, %s273
      %p275 = scmp.eq.s32.totalorder %s274, 0
      %s277 = sadd.s32 %s276, 1
      %s278 = scalar_select %p275, %s276, %s277
      %p281 = pneg %p275
      %p282 = scmp.eq.s32.totalorder %s28, 1
      %p283 = por %p281, %p282
      %p284 = scmp.ne.s32.totalorder %s276, %s279
      %p285 = scmp.eq.s32.totalorder %s28, 0
      %p286 = por %p284, %p285
      %p287 = scmp.ne.s32.totalorder %s276, %s279
      %p288 = scmp.eq.s32.totalorder %s33, 1
      %p289 = por %p287, %p288
      %p290 = scmp.ne.s32.totalorder %s279, %s280
      %p291 = scmp.eq.s32.totalorder %s33, 0
      %p292 = por %p290, %p291
      %p293 = scmp.ne.s32.totalorder %s279, %s280
      %p294 = scmp.eq.s32.totalorder %s34, 1
      %p295 = por %p293, %p294
      %p297 = scmp.ne.s32.totalorder %s280, %s296
      %p298 = scmp.eq.s32.totalorder %s34, 0
      %p299 = por %p297, %p298
      %s300 = ssub.s32 %s35, %s47
      %s301 = ssub.s32 %s36, %s43
      %s302 = sor.u32 %s300, %s301
      %p303 = scmp.eq.s32.totalorder %s302, 0
      %s305 = sadd.s32 %s304, 1
      %s306 = scalar_select %p303, %s304, %s305
      %p309 = pneg %p303
      %p310 = scmp.eq.s32.totalorder %s28, 1
      %p311 = por %p309, %p310
      %p312 = scmp.ne.s32.totalorder %s304, %s307
      %p313 = scmp.eq.s32.totalorder %s28, 0
      %p314 = por %p312, %p313
      %p315 = scmp.ne.s32.totalorder %s304, %s307
      %p316 = scmp.eq.s32.totalorder %s33, 1
      %p317 = por %p315, %p316
      %p318 = scmp.ne.s32.totalorder %s307, %s308
      %p319 = scmp.eq.s32.totalorder %s33, 0
      %p320 = por %p318, %p319
      %p321 = scmp.ne.s32.totalorder %s307, %s308
      %p322 = scmp.eq.s32.totalorder %s34, 1
      %p323 = por %p321, %p322
      %p325 = scmp.ne.s32.totalorder %s308, %s324
      %p326 = scmp.eq.s32.totalorder %s34, 0
      %p327 = por %p325, %p326
      %s328 = ssub.s32 %s35, %s47
      %s329 = ssub.s32 %s36, %s43
      %s330 = sor.u32 %s328, %s329
      %p331 = scmp.eq.s32.totalorder %s330, 0
      %s333 = sadd.s32 %s332, 1
      %s334 = scalar_select %p331, %s332, %s333
      %p337 = pneg %p331
      %p338 = scmp.eq.s32.totalorder %s28, 1
      %p339 = por %p337, %p338
      %p340 = scmp.ne.s32.totalorder %s332, %s335
      %p341 = scmp.eq.s32.totalorder %s28, 0
      %p342 = por %p340, %p341
      %p343 = scmp.ne.s32.totalorder %s332, %s335
      %p344 = scmp.eq.s32.totalorder %s33, 1
      %p345 = por %p343, %p344
      %p346 = scmp.ne.s32.totalorder %s335, %s336
      %p347 = scmp.eq.s32.totalorder %s33, 0
      %p348 = por %p346, %p347
      %p349 = scmp.ne.s32.totalorder %s335, %s336
      %p350 = scmp.eq.s32.totalorder %s34, 1
      %p351 = por %p349, %p350
      %p353 = scmp.ne.s32.totalorder %s336, %s352
      %p354 = scmp.eq.s32.totalorder %s34, 0
      %p355 = por %p353, %p354
      %p356 = scmp.le.s32.totalorder 1, %s28
      %p357 = scmp.lt.s32.totalorder %s28, 3
      %p358 = pnand %p356, %p357
      %p359 = pneg %p358
      // Predicated region
      $region9: #{tpu_custom_call.1} parent=5 // pred_check
        _
      $region10: #{tpu_custom_call.1} parent=5 // pred_check_branch
        %361 = sbr.rel (%p358) target = $region12
      $region11: #{tpu_custom_call.1} parent=5 // pred_region
        %s362 = ssub.s32 %s28, 1
        // Predicated region
        $region13: #{tpu_custom_call.1} parent=11 // pred_check
          %p363 = pneg %p89
        $region14: #{tpu_custom_call.1} parent=11 // pred_check_branch
          %365 = sbr.rel (%p363) target = $region16
        $region15: #{tpu_custom_call.1} parent=11 // pred_region
          _
        $region16: #{tpu_custom_call.1} parent=11 // pred_fallthru
          _
        // Predicated region
        $region17: #{tpu_custom_call.1} parent=11 // pred_check
          %p366 = pneg %p110
        $region18: #{tpu_custom_call.1} parent=11 // pred_check_branch
          %368 = sbr.rel (%p366) target = $region20
        $region19: #{tpu_custom_call.1} parent=11 // pred_region
          _
        $region20: #{tpu_custom_call.1} parent=11 // pred_fallthru
          _
        // Predicated region
        $region21: #{tpu_custom_call.1} parent=11 // pred_check
          %p369 = pneg %p131
        $region22: #{tpu_custom_call.1} parent=11 // pred_check_branch
          %371 = sbr.rel (%p369) target = $region24
        $region23: #{tpu_custom_call.1} parent=11 // pred_region
          _
        $region24: #{tpu_custom_call.1} parent=11 // pred_fallthru
          _
        // Predicated region
        $region25: #{tpu_custom_call.1} parent=11 // pred_check
          %p372 = pneg %p152
        $region26: #{tpu_custom_call.1} parent=11 // pred_check_branch
          %374 = sbr.rel (%p372) target = $region28
        $region27: #{tpu_custom_call.1} parent=11 // pred_region
          _
        $region28: #{tpu_custom_call.1} parent=11 // pred_fallthru
          _
        // Predicated region
        $region29: #{tpu_custom_call.1} parent=11 // pred_check
          %p375 = pneg %p173
        $region30: #{tpu_custom_call.1} parent=11 // pred_check_branch
          %377 = sbr.rel (%p375) target = $region32
        $region31: #{tpu_custom_call.1} parent=11 // pred_region
          _
        $region32: #{tpu_custom_call.1} parent=11 // pred_fallthru
          _
        // Predicated region
        $region33: #{tpu_custom_call.1} parent=11 // pred_check
          %p378 = pneg %p194
        $region34: #{tpu_custom_call.1} parent=11 // pred_check_branch
          %380 = sbr.rel (%p378) target = $region36
        $region35: #{tpu_custom_call.1} parent=11 // pred_region
          _
        $region36: #{tpu_custom_call.1} parent=11 // pred_fallthru
          _
        // Predicated region
        $region37: #{tpu_custom_call.1} parent=11 // pred_check
          %p381 = pneg %p215
        $region38: #{tpu_custom_call.1} parent=11 // pred_check_branch
          %383 = sbr.rel (%p381) target = $region40
        $region39: #{tpu_custom_call.1} parent=11 // pred_region
          _
        $region40: #{tpu_custom_call.1} parent=11 // pred_fallthru
          _
        // Predicated region
        $region41: #{tpu_custom_call.1} parent=11 // pred_check
          %p384 = pneg %p236
        $region42: #{tpu_custom_call.1} parent=11 // pred_check_branch
          %386 = sbr.rel (%p384) target = $region44
        $region43: #{tpu_custom_call.1} parent=11 // pred_region
          _
        $region44: #{tpu_custom_call.1} parent=11 // pred_fallthru
          _
      $region12: #{tpu_custom_call.1} parent=5 // pred_fallthru
        _
      %p387 = scmp.lt.s32.totalorder %s28, 2
      // Predicated region
      $region45: #{tpu_custom_call.1} parent=5 // pred_check
        %p388 = pneg %p387
      $region46: #{tpu_custom_call.1} parent=5 // pred_check_branch
        %390 = sbr.rel (%p388) target = $region48
      $region47: #{tpu_custom_call.1} parent=5 // pred_region
        // Predicated region
        $region49: #{tpu_custom_call.1} parent=47 // pred_check
          %p391 = pneg %p62
        $region50: #{tpu_custom_call.1} parent=47 // pred_check_branch
          %393 = sbr.rel (%p391) target = $region52
        $region51: #{tpu_custom_call.1} parent=47 // pred_region
          %s394 = smul.u32 2, %s36
          %p395 = scmp.lt.s32.totalorder %s35, 1
          %s396 = scalar_select %p395, %s35, 1
          %p397 = scmp.lt.s32.totalorder %s394, 1
          %s398 = scalar_select %p397, %s394, 1
          %s399 = smul.addr %s396, 2
          %s400 = sadd.s32 %s398, %s399
          %s401 = smul.addr %s400, 4
          %s402 = scalar_lea.vmem %s0, %s401
          %s403 = smul.u32 2, %s36
        $region52: #{tpu_custom_call.1} parent=47 // pred_fallthru
          _
      $region48: #{tpu_custom_call.1} parent=5 // pred_fallthru
        _
      %p404 = scmp.le.s32.totalorder 1, %s28
      %p405 = scmp.lt.s32.totalorder %s28, 3
      %p406 = pnand %p404, %p405
      %p407 = pneg %p406
      // Predicated region
      $region53: #{tpu_custom_call.1} parent=5 // pred_check
        _
      $region54: #{tpu_custom_call.1} parent=5 // pred_check_branch
        %409 = sbr.rel (%p406) target = $region56
      $region55: #{tpu_custom_call.1} parent=5 // pred_region
        %s410 = ssub.s32 %s28, 1
        %s411 = smul.u32 2, %s38
        %p412 = scmp.lt.s32.totalorder %s37, 1
        %s413 = scalar_select %p412, %s37, 1
        %p414 = scmp.lt.s32.totalorder %s411, 1
        %s415 = scalar_select %p414, %s411, 1
        %s416 = smul.addr %s413, 2
        %s417 = sadd.s32 %s415, %s416
        %s418 = smul.addr %s417, 4
        %s419 = scalar_lea.vmem %s0, %s418
        %p420 = pneg %p68
        %p421 = pneg %p65
        %p422 = pneg %p89
        %p423 = pneg %p86
        %p424 = pneg %p110
        %p425 = pneg %p107
        %p426 = pneg %p131
        %p427 = pneg %p128
        %p428 = pneg %p152
        %p429 = pneg %p149
        %p430 = pneg %p173
        %p431 = pneg %p170
        %p432 = pneg %p194
        %p433 = pneg %p191
        %p434 = pneg %p215
        %p435 = pneg %p212
        %p436 = pneg %p236
        %p437 = pneg %p233
        %p438 = pneg %p264
        %p439 = pneg %p261
        %s440 = sand.u32 %s251, 1
        %s441 = scalar_lea.sflag [#allocation3], %s440
        %s442 = sand.u32 %s251, 1
        %s443 = smul.addr %s442, 64
        %s444 = scalar_lea.vmem [#allocation2], %s443
        %p445 = pneg %p292
        %p446 = pneg %p289
        %s447 = sand.u32 %s33, 1
        %s448 = scalar_lea.sflag [#allocation5], %s447
        %s449 = sand.u32 %s279, 1
        %s450 = smul.addr %s449, 128
        %s451 = scalar_lea.vmem [#allocation4], %s450
        %p452 = pneg %p320
        %p453 = pneg %p317
        %s454 = sand.u32 %s33, 1
        %s455 = scalar_lea.sflag [#allocation5], %s454
        %s456 = sand.u32 %s307, 1
        %s457 = smul.addr %s456, 256
        %s458 = scalar_lea.vmem [#allocation6], %s457
        %p459 = pneg %p348
        %p460 = pneg %p345
        %s461 = sand.u32 %s335, 1
        %s462 = scalar_lea.sflag [#allocation8], %s461
        %s463 = sand.u32 %s335, 1
        %s464 = smul.addr %s463, 512
        %s465 = scalar_lea.vmem [#allocation7], %s464
        %s466 = smul.u32 2, %s38
        %p467 = scmp.lt.s32.totalorder %s37, 1
        %s468 = scalar_select %p467, %s37, 1
        %p469 = scmp.lt.s32.totalorder %s466, 1
        %s470 = scalar_select %p469, %s466, 1
        %s471 = smul.addr %s468, 2
        %s472 = sadd.s32 %s470, %s471
        %s473 = smul.addr %s472, 4
        %s474 = scalar_lea.vmem %s0, %s473
        %s475 = smul.u32 2, %s38
        %s476 = smul.u32 2, %s38
        %s477 = smul.u32 2, %s38
        %s478 = smul.u32 2, %s38
        %s479 = smul.u32 2, %s38
        %v480 = vld [vmem:[%s474] sm:$0xff]
        %v481 = vld [vmem:[%s1] sm:$0xff]
        %v482 = vld [vmem:[%s1 + $0x8] sm:$0xff]
        %v483 = vld [vmem:[%s1 + $0x10] sm:$0xff]
        %v484 = vld [vmem:[%s1 + $0x18] sm:$0xff]
        %v485 = vld [vmem:[%s2] sm:$0xff]
        %v486 = vld [vmem:[%s2 + $0x8] sm:$0xff]
        %v487 = vld [vmem:[%s2 + $0x10] sm:$0xff]
        %v488 = vld [vmem:[%s2 + $0x18] sm:$0xff]
        %490 = vset.pattern.permute.xlu0 0
        %491 = vperm.xlu0 %490, %v485
        %v492 = vpop.permute.xlu0 %491
        %495 = vset.pattern.permute.xlu0 0
        %496 = vperm.xlu0 %495, %v486
        %v497 = vpop.permute.xlu0 %496
        %500 = vset.pattern.permute.xlu0 0
        %501 = vperm.xlu0 %500, %v487
        %v502 = vpop.permute.xlu0 %501
        %505 = vset.pattern.permute.xlu0 0
        %506 = vperm.xlu0 %505, %v488
        %v507 = vpop.permute.xlu0 %506
        %510 = vset.pattern.permute.xlu0 0
        %511 = vperm.xlu0 %510, %v481
        %v512 = vpop.permute.xlu0 %511
        %515 = vset.pattern.permute.xlu0 0
        %516 = vperm.xlu0 %515, %v482
        %v517 = vpop.permute.xlu0 %516
        %520 = vset.pattern.permute.xlu0 0
        %521 = vperm.xlu0 %520, %v483
        %v522 = vpop.permute.xlu0 %521
        %525 = vset.pattern.permute.xlu0 0
        %526 = vperm.xlu0 %525, %v484
        %v527 = vpop.permute.xlu0 %526
        %v530 = vlaneseq
        %v531 = vshrl.u32 %v530, 7
        %v532 = vsub.s32 0, %v531
        %v533 = vrot.slane %v480, %v532
        %v534 = vlaneseq
        %v535 = vshrl.u32 %v534, 7
        %v536 = vsub.s32 4, %v535
        %v537 = vrot.slane %v480, %v536
        %v540 = vlaneseq
        %v541 = vshrl.u32 %v540, 7
        %v542 = vsub.s32 0, %v541
        %v543 = vrot.slane %v533, %v542
        %v544 = vlaneseq
        %v545 = vshrl.u32 %v544, 7
        %v546 = vsub.s32 0, %v545
        %v547 = vrot.slane %v537, %v546
        %v548 = vmul.f32 %v512, %v543
        %v549 = vmul.f32 %v512, %v547
        %v550 = vmul.f32 %v517, %v543
        %v551 = vmul.f32 %v517, %v547
        %v552 = vmul.f32 %v522, %v543
        %v553 = vmul.f32 %v522, %v547
        %v554 = vmul.f32 %v527, %v543
        %v555 = vmul.f32 %v527, %v547
        %v556 = vadd.f32 %v492, %v548
        %v557 = vadd.f32 %v492, %v549
        %v558 = vadd.f32 %v497, %v550
        %v559 = vadd.f32 %v497, %v551
        %v560 = vadd.f32 %v502, %v552
        %v561 = vadd.f32 %v502, %v553
        %v562 = vadd.f32 %v507, %v554
        %v563 = vadd.f32 %v507, %v555
        %564 = vset.pattern.permute.xlu0 1
        %565 = vperm.xlu0 %564, %v481
        %v566 = vpop.permute.xlu0 %565
        %568 = vset.pattern.permute.xlu0 1
        %569 = vperm.xlu0 %568, %v482
        %v570 = vpop.permute.xlu0 %569
        %572 = vset.pattern.permute.xlu0 1
        %573 = vperm.xlu0 %572, %v483
        %v574 = vpop.permute.xlu0 %573
        %576 = vset.pattern.permute.xlu0 1
        %577 = vperm.xlu0 %576, %v484
        %v578 = vpop.permute.xlu0 %577
        %v580 = vlaneseq
        %v581 = vshrl.u32 %v580, 7
        %v582 = vsub.s32 1, %v581
        %v583 = vrot.slane %v480, %v582
        %v584 = vlaneseq
        %v585 = vshrl.u32 %v584, 7
        %v586 = vsub.s32 5, %v585
        %v587 = vrot.slane %v480, %v586
        %v590 = vlaneseq
        %v591 = vshrl.u32 %v590, 7
        %v592 = vsub.s32 1, %v591
        %v593 = vrot.slane %v583, %v592
        %v594 = vlaneseq
        %v595 = vshrl.u32 %v594, 7
        %v596 = vsub.s32 1, %v595
        %v597 = vrot.slane %v587, %v596
        %v598 = vmul.f32 %v566, %v593
        %v599 = vmul.f32 %v566, %v597
        %v600 = vmul.f32 %v570, %v593
        %v601 = vmul.f32 %v570, %v597
        %v602 = vmul.f32 %v574, %v593
        %v603 = vmul.f32 %v574, %v597
        %v604 = vmul.f32 %v578, %v593
        %v605 = vmul.f32 %v578, %v597
        %v606 = vadd.f32 %v556, %v598
        %v607 = vadd.f32 %v557, %v599
        %v608 = vadd.f32 %v558, %v600
        %v609 = vadd.f32 %v559, %v601
        %v610 = vadd.f32 %v560, %v602
        %v611 = vadd.f32 %v561, %v603
        %v612 = vadd.f32 %v562, %v604
        %v613 = vadd.f32 %v563, %v605
        %614 = vset.pattern.permute.xlu0 2
        %615 = vperm.xlu0 %614, %v481
        %v616 = vpop.permute.xlu0 %615
        %618 = vset.pattern.permute.xlu0 2
        %619 = vperm.xlu0 %618, %v482
        %v620 = vpop.permute.xlu0 %619
        %622 = vset.pattern.permute.xlu0 2
        %623 = vperm.xlu0 %622, %v483
        %v624 = vpop.permute.xlu0 %623
        %626 = vset.pattern.permute.xlu0 2
        %627 = vperm.xlu0 %626, %v484
        %v628 = vpop.permute.xlu0 %627
        %v630 = vlaneseq
        %v631 = vshrl.u32 %v630, 7
        %v632 = vsub.s32 2, %v631
        %v633 = vrot.slane %v480, %v632
        %v634 = vlaneseq
        %v635 = vshrl.u32 %v634, 7
        %v636 = vsub.s32 6, %v635
        %v637 = vrot.slane %v480, %v636
        %v640 = vlaneseq
        %v641 = vshrl.u32 %v640, 7
        %v642 = vsub.s32 2, %v641
        %v643 = vrot.slane %v633, %v642
        %v644 = vlaneseq
        %v645 = vshrl.u32 %v644, 7
        %v646 = vsub.s32 2, %v645
        %v647 = vrot.slane %v637, %v646
        %v648 = vmul.f32 %v616, %v643
        %v649 = vmul.f32 %v616, %v647
        %v650 = vmul.f32 %v620, %v643
        %v651 = vmul.f32 %v620, %v647
        %v652 = vmul.f32 %v624, %v643
        %v653 = vmul.f32 %v624, %v647
        %v654 = vmul.f32 %v628, %v643
        %v655 = vmul.f32 %v628, %v647
        %v656 = vadd.f32 %v606, %v648
        %v657 = vadd.f32 %v607, %v649
        %v658 = vadd.f32 %v608, %v650
        %v659 = vadd.f32 %v609, %v651
        %v660 = vadd.f32 %v610, %v652
        %v661 = vadd.f32 %v611, %v653
        %v662 = vadd.f32 %v612, %v654
        %v663 = vadd.f32 %v613, %v655
        %664 = vset.pattern.permute.xlu0 3
        %665 = vperm.xlu0 %664, %v481
        %v666 = vpop.permute.xlu0 %665
        %668 = vset.pattern.permute.xlu0 3
        %669 = vperm.xlu0 %668, %v482
        %v670 = vpop.permute.xlu0 %669
        %672 = vset.pattern.permute.xlu0 3
        %673 = vperm.xlu0 %672, %v483
        %v674 = vpop.permute.xlu0 %673
        %676 = vset.pattern.permute.xlu0 3
        %677 = vperm.xlu0 %676, %v484
        %v678 = vpop.permute.xlu0 %677
        %v680 = vlaneseq
        %v681 = vshrl.u32 %v680, 7
        %v682 = vsub.s32 3, %v681
        %v683 = vrot.slane %v480, %v682
        %v684 = vlaneseq
        %v685 = vshrl.u32 %v684, 7
        %v686 = vsub.s32 7, %v685
        %v687 = vrot.slane %v480, %v686
        %v690 = vlaneseq
        %v691 = vshrl.u32 %v690, 7
        %v692 = vsub.s32 3, %v691
        %v693 = vrot.slane %v683, %v692
        %v694 = vlaneseq
        %v695 = vshrl.u32 %v694, 7
        %v696 = vsub.s32 3, %v695
        %v697 = vrot.slane %v687, %v696
        %v698 = vmul.f32 %v666, %v693
        %v699 = vmul.f32 %v666, %v697
        %v700 = vmul.f32 %v670, %v693
        %v701 = vmul.f32 %v670, %v697
        %v702 = vmul.f32 %v674, %v693
        %v703 = vmul.f32 %v674, %v697
        %v704 = vmul.f32 %v678, %v693
        %v705 = vmul.f32 %v678, %v697
        %v706 = vadd.f32 %v656, %v698
        %v707 = vadd.f32 %v657, %v699
        %v708 = vadd.f32 %v658, %v700
        %v709 = vadd.f32 %v659, %v701
        %v710 = vadd.f32 %v660, %v702
        %v711 = vadd.f32 %v661, %v703
        %v712 = vadd.f32 %v662, %v704
        %v713 = vadd.f32 %v663, %v705
        %v714 = vmin.f32 %v706, 0.0
        %v715 = vmin.f32 %v707, 0.0
        %v716 = vmin.f32 %v708, 0.0
        %v717 = vmin.f32 %v709, 0.0
        %v718 = vmin.f32 %v710, 0.0
        %v719 = vmin.f32 %v711, 0.0
        %v720 = vmin.f32 %v712, 0.0
        %v721 = vmin.f32 %v713, 0.0
        %v722 = vmul.f32 %v714, 1.442695
        %v723 = vpow.pop %v722
        %v724 = vmul.f32 %v715, 1.442695
        %v725 = vpow.pop %v724
        %v726 = vmul.f32 %v716, 1.442695
        %v727 = vpow.pop %v726
        %v728 = vmul.f32 %v717, 1.442695
        %v729 = vpow.pop %v728
        %v730 = vmul.f32 %v718, 1.442695
        %v731 = vpow.pop %v730
        %v732 = vmul.f32 %v719, 1.442695
        %v733 = vpow.pop %v732
        %v734 = vmul.f32 %v720, 1.442695
        %v735 = vpow.pop %v734
        %v736 = vmul.f32 %v721, 1.442695
        %v737 = vpow.pop %v736
        %v738 = vsub.f32 %v723, 1.0
        %v739 = vsub.f32 %v725, 1.0
        %v740 = vsub.f32 %v727, 1.0
        %v741 = vsub.f32 %v729, 1.0
        %v742 = vsub.f32 %v731, 1.0
        %v743 = vsub.f32 %v733, 1.0
        %v744 = vsub.f32 %v735, 1.0
        %v745 = vsub.f32 %v737, 1.0
        %v746 = vmul.f32 %v738, 1.6732632
        %v747 = vmul.f32 %v739, 1.6732632
        %v748 = vmul.f32 %v740, 1.6732632
        %v749 = vmul.f32 %v741, 1.6732632
        %v750 = vmul.f32 %v742, 1.6732632
        %v751 = vmul.f32 %v743, 1.6732632
        %v752 = vmul.f32 %v744, 1.6732632
        %v753 = vmul.f32 %v745, 1.6732632
        %vm754 = vcmp.gt.f32.partialorder %v706, 0.0
        %vm755 = vcmp.gt.f32.partialorder %v707, 0.0
        %vm756 = vcmp.gt.f32.partialorder %v708, 0.0
        %vm757 = vcmp.gt.f32.partialorder %v709, 0.0
        %vm758 = vcmp.gt.f32.partialorder %v710, 0.0
        %vm759 = vcmp.gt.f32.partialorder %v711, 0.0
        %vm760 = vcmp.gt.f32.partialorder %v712, 0.0
        %vm761 = vcmp.gt.f32.partialorder %v713, 0.0
        %v762 = vsel %vm754, %v706, %v746
        %v763 = vsel %vm755, %v707, %v747
        %v764 = vsel %vm756, %v708, %v748
        %v765 = vsel %vm757, %v709, %v749
        %v766 = vsel %vm758, %v710, %v750
        %v767 = vsel %vm759, %v711, %v751
        %v768 = vsel %vm760, %v712, %v752
        %v769 = vsel %vm761, %v713, %v753
        %v770 = vmul.f32 %v762, 1.050701
        %v771 = vmul.f32 %v763, 1.050701
        %v772 = vmul.f32 %v764, 1.050701
        %v773 = vmul.f32 %v765, 1.050701
        %v774 = vmul.f32 %v766, 1.050701
        %v775 = vmul.f32 %v767, 1.050701
        %v776 = vmul.f32 %v768, 1.050701
        %v777 = vmul.f32 %v769, 1.050701
        %778 = vst [vmem:[%s444] sm:$0xff] %v770
        %779 = vst [vmem:[%s444 + $0x8] sm:$0xff] %v771
        %780 = vst [vmem:[%s444 + $0x10] sm:$0xff] %v772
        %781 = vst [vmem:[%s444 + $0x18] sm:$0xff] %v773
        %782 = vst [vmem:[%s444 + $0x20] sm:$0xff] %v774
        %783 = vst [vmem:[%s444 + $0x28] sm:$0xff] %v775
        %784 = vst [vmem:[%s444 + $0x30] sm:$0xff] %v776
        %785 = vst [vmem:[%s444 + $0x38] sm:$0xff] %v777
        %v786 = vld [vmem:[%s3] sm:$0xff]
        %v787 = vld [vmem:[%s3 + $0x8] sm:$0xff]
        %v788 = vld [vmem:[%s3 + $0x10] sm:$0xff]
        %v789 = vld [vmem:[%s3 + $0x18] sm:$0xff]
        %v790 = vld [vmem:[%s3 + $0x20] sm:$0xff]
        %v791 = vld [vmem:[%s3 + $0x28] sm:$0xff]
        %v792 = vld [vmem:[%s3 + $0x30] sm:$0xff]
        %v793 = vld [vmem:[%s3 + $0x38] sm:$0xff]
        %v794 = vld [vmem:[%s4] sm:$0xff]
        %v795 = vld [vmem:[%s4 + $0x8] sm:$0xff]
        %v796 = vld [vmem:[%s4 + $0x10] sm:$0xff]
        %v797 = vld [vmem:[%s4 + $0x18] sm:$0xff]
        %v798 = vld [vmem:[%s4 + $0x20] sm:$0xff]
        %v799 = vld [vmem:[%s4 + $0x28] sm:$0xff]
        %v800 = vld [vmem:[%s4 + $0x30] sm:$0xff]
        %v801 = vld [vmem:[%s4 + $0x38] sm:$0xff]
        %803 = vset.pattern.permute.xlu0 0
        %804 = vperm.xlu0 %803, %v794
        %v805 = vpop.permute.xlu0 %804
        %808 = vset.pattern.permute.xlu0 0
        %809 = vperm.xlu0 %808, %v795
        %v810 = vpop.permute.xlu0 %809
        %813 = vset.pattern.permute.xlu0 0
        %814 = vperm.xlu0 %813, %v796
        %v815 = vpop.permute.xlu0 %814
        %818 = vset.pattern.permute.xlu0 0
        %819 = vperm.xlu0 %818, %v797
        %v820 = vpop.permute.xlu0 %819
        %823 = vset.pattern.permute.xlu0 0
        %824 = vperm.xlu0 %823, %v798
        %v825 = vpop.permute.xlu0 %824
        %828 = vset.pattern.permute.xlu0 0
        %829 = vperm.xlu0 %828, %v799
        %v830 = vpop.permute.xlu0 %829
        %833 = vset.pattern.permute.xlu0 0
        %834 = vperm.xlu0 %833, %v800
        %v835 = vpop.permute.xlu0 %834
        %838 = vset.pattern.permute.xlu0 0
        %839 = vperm.xlu0 %838, %v801
        %v840 = vpop.permute.xlu0 %839
        %vm842 = vcmask 261120
        %v844 = vsel %vm842, %v786, 0
        %v847 = vsel %vm842, %v787, 0
        %v850 = vsel %vm842, %v788, 0
        %v853 = vsel %vm842, %v789, 0
        %v856 = vsel %vm842, %v790, 0
        %v859 = vsel %vm842, %v791, 0
        %v862 = vsel %vm842, %v792, 0
        %v865 = vsel %vm842, %v793, 0
        %867 = vmatprep.subr.mxu0 %v771
        %868 = vmatpush1.msra.mxu0 %v770
        %869 = vmatprep.subr.mxu0 %v773
        %870 = vmatpush1.msra.mxu0 %v772
        %871 = vmatprep.subr.mxu0 %v775
        %872 = vmatpush1.msra.mxu0 %v774
        %873 = vmatprep.subr.mxu0 %v777
        %874 = vmatpush1.msra.mxu0 %v776
        %875 = vmatprep.subr.mxu0 0.0
        %876 = vmatpush1.msra.mxu0 0.0
        %877 = vmatprep.subr.mxu0 0.0
        %878 = vmatpush1.msra.mxu0 0.0
        %879 = vmatprep.subr.mxu0 0.0
        %880 = vmatpush1.msra.mxu0 0.0
        %881 = vmatprep.subr.mxu0 0.0
        %882 = vmatpush1.msra.mxu0 0.0
        %883 = vmatprep.subr.mxu0 0.0
        %884 = vmatpush1.msra.mxu0 0.0
        %885 = vmatprep.subr.mxu0 0.0
        %886 = vmatpush1.msra.mxu0 0.0
        %887 = vmatprep.subr.mxu0 0.0
        %888 = vmatpush1.msra.mxu0 0.0
        %889 = vmatprep.subr.mxu0 0.0
        %890 = vmatpush1.msra.mxu0 0.0
        %891 = vmatprep.subr.mxu0 0.0
        %892 = vmatpush1.msra.mxu0 0.0
        %893 = vmatprep.subr.mxu0 0.0
        %894 = vmatpush1.msra.mxu0 0.0
        %895 = vmatprep.subr.mxu0 0.0
        %896 = vmatpush1.msra.mxu0 0.0
        %897 = vmatprep.subr.mxu0 0.0
        %898 = vmatpush1.msra.mxu0 0.0
        %899 = vmatprep.subr.mxu0 0.0
        %900 = vmatpush1.msra.mxu0 0.0
        %901 = vmatprep.subr.mxu0 0.0
        %902 = vmatpush1.msra.mxu0 0.0
        %903 = vmatprep.subr.mxu0 0.0
        %904 = vmatpush1.msra.mxu0 0.0
        %905 = vmatprep.subr.mxu0 0.0
        %906 = vmatpush1.msra.mxu0 0.0
        %907 = vmatprep.subr.mxu0 0.0
        %908 = vmatpush1.msra.mxu0 0.0
        %909 = vmatprep.subr.mxu0 0.0
        %910 = vmatpush1.msra.mxu0 0.0
        %911 = vmatprep.subr.mxu0 0.0
        %912 = vmatpush1.msra.mxu0 0.0
        %913 = vmatprep.subr.mxu0 0.0
        %914 = vmatpush1.msra.mxu0 0.0
        %915 = vmatprep.subr.mxu0 0.0
        %916 = vmatpush1.msra.mxu0 0.0
        %917 = vmatprep.subr.mxu0 0.0
        %918 = vmatpush1.msra.mxu0 0.0
        %919 = vmatprep.subr.mxu0 0.0
        %920 = vmatpush1.msra.mxu0 0.0
        %921 = vmatprep.subr.mxu0 0.0
        %922 = vmatpush1.msra.mxu0 0.0
        %923 = vmatprep.subr.mxu0 0.0
        %924 = vmatpush1.msra.mxu0 0.0
        %925 = vmatprep.subr.mxu0 0.0
        %926 = vmatpush1.msra.mxu0 0.0
        %927 = vmatprep.subr.mxu0 0.0
        %928 = vmatpush1.msra.mxu0 0.0
        %929 = vmatprep.subr.mxu0 0.0
        %930 = vmatpush1.msra.mxu0 0.0
        %931 = vmatprep.mubr.f32.mxu0 0.0
        %932 = vmatmul.mubr.f32.gmra.mrb[0].mxu0 %v844
        %v933 = vpop.f32.mrb[0].mxu0
        %v934 = vadd.f32 %v805, %v933
        %v935 = vpop.f32.mrb[0].mxu0
        %v936 = vadd.f32 %v805, %v935
        %937 = vmatprep.mubr.f32.mxu0 0.0
        %938 = vmatmul.mubr.f32.gmra.mrb[0].mxu0 %v847
        %v939 = vpop.f32.mrb[0].mxu0
        %v940 = vadd.f32 %v810, %v939
        %v941 = vpop.f32.mrb[0].mxu0
        %v942 = vadd.f32 %v810, %v941
        %943 = vmatprep.mubr.f32.mxu0 0.0
        %944 = vmatmul.mubr.f32.gmra.mrb[0].mxu0 %v850
        %v945 = vpop.f32.mrb[0].mxu0
        %v946 = vadd.f32 %v815, %v945
        %v947 = vpop.f32.mrb[0].mxu0
        %v948 = vadd.f32 %v815, %v947
        %949 = vmatprep.mubr.f32.mxu0 0.0
        %950 = vmatmul.mubr.f32.gmra.mrb[0].mxu0 %v853
        %v951 = vpop.f32.mrb[0].mxu0
        %v952 = vadd.f32 %v820, %v951
        %v953 = vpop.f32.mrb[0].mxu0
        %v954 = vadd.f32 %v820, %v953
        %955 = vmatprep.mubr.f32.mxu0 0.0
        %956 = vmatmul.mubr.f32.gmra.mrb[0].mxu0 %v856
        %v957 = vpop.f32.mrb[0].mxu0
        %v958 = vadd.f32 %v825, %v957
        %v959 = vpop.f32.mrb[0].mxu0
        %v960 = vadd.f32 %v825, %v959
        %961 = vmatprep.mubr.f32.mxu0 0.0
        %962 = vmatmul.mubr.f32.gmra.mrb[0].mxu0 %v859
        %v963 = vpop.f32.mrb[0].mxu0
        %v964 = vadd.f32 %v830, %v963
        %v965 = vpop.f32.mrb[0].mxu0
        %v966 = vadd.f32 %v830, %v965
        %967 = vmatprep.mubr.f32.mxu0 0.0
        %968 = vmatmul.mubr.f32.gmra.mrb[0].mxu0 %v862
        %v969 = vpop.f32.mrb[0].mxu0
        %v970 = vadd.f32 %v835, %v969
        %v971 = vpop.f32.mrb[0].mxu0
        %v972 = vadd.f32 %v835, %v971
        %973 = vmatprep.mubr.f32.mxu0 0.0
        %974 = vmatmul.mubr.f32.gmra.mrb[0].mxu0 %v865
        %v975 = vpop.f32.mrb[0].mxu0
        %v976 = vadd.f32 %v840, %v975
        %v977 = vpop.f32.mrb[0].mxu0
        %v978 = vadd.f32 %v840, %v977
        %979 = vdwg.mxu0
        %v980 = vmin.f32 %v934, 0.0
        %v981 = vmin.f32 %v936, 0.0
        %v982 = vmin.f32 %v940, 0.0
        %v983 = vmin.f32 %v942, 0.0
        %v984 = vmin.f32 %v946, 0.0
        %v985 = vmin.f32 %v948, 0.0
        %v986 = vmin.f32 %v952, 0.0
        %v987 = vmin.f32 %v954, 0.0
        %v988 = vmin.f32 %v958, 0.0
        %v989 = vmin.f32 %v960, 0.0
        %v990 = vmin.f32 %v964, 0.0
        %v991 = vmin.f32 %v966, 0.0
        %v992 = vmin.f32 %v970, 0.0
        %v993 = vmin.f32 %v972, 0.0
        %v994 = vmin.f32 %v976, 0.0
        %v995 = vmin.f32 %v978, 0.0
        %v996 = vmul.f32 %v980, 1.442695
        %v997 = vpow.pop %v996
        %v998 = vmul.f32 %v981, 1.442695
        %v999 = vpow.pop %v998
        %v1000 = vmul.f32 %v982, 1.442695
        %v1001 = vpow.pop %v1000
        %v1002 = vmul.f32 %v983, 1.442695
        %v1003 = vpow.pop %v1002
        %v1004 = vmul.f32 %v984, 1.442695
        %v1005 = vpow.pop %v1004
        %v1006 = vmul.f32 %v985, 1.442695
        %v1007 = vpow.pop %v1006
        %v1008 = vmul.f32 %v986, 1.442695
        %v1009 = vpow.pop %v1008
        %v1010 = vmul.f32 %v987, 1.442695
        %v1011 = vpow.pop %v1010
        %v1012 = vmul.f32 %v988, 1.442695
        %v1013 = vpow.pop %v1012
        %v1014 = vmul.f32 %v989, 1.442695
        %v1015 = vpow.pop %v1014
        %v1016 = vmul.f32 %v990, 1.442695
        %v1017 = vpow.pop %v1016
        %v1018 = vmul.f32 %v991, 1.442695
        %v1019 = vpow.pop %v1018
        %v1020 = vmul.f32 %v992, 1.442695
        %v1021 = vpow.pop %v1020
        %v1022 = vmul.f32 %v993, 1.442695
        %v1023 = vpow.pop %v1022
        %v1024 = vmul.f32 %v994, 1.442695
        %v1025 = vpow.pop %v1024
        %v1026 = vmul.f32 %v995, 1.442695
        %v1027 = vpow.pop %v1026
        %v1028 = vsub.f32 %v997, 1.0
        %v1029 = vsub.f32 %v999, 1.0
        %v1030 = vsub.f32 %v1001, 1.0
        %v1031 = vsub.f32 %v1003, 1.0
        %v1032 = vsub.f32 %v1005, 1.0
        %v1033 = vsub.f32 %v1007, 1.0
        %v1034 = vsub.f32 %v1009, 1.0
        %v1035 = vsub.f32 %v1011, 1.0
        %v1036 = vsub.f32 %v1013, 1.0
        %v1037 = vsub.f32 %v1015, 1.0
        %v1038 = vsub.f32 %v1017, 1.0
        %v1039 = vsub.f32 %v1019, 1.0
        %v1040 = vsub.f32 %v1021, 1.0
        %v1041 = vsub.f32 %v1023, 1.0
        %v1042 = vsub.f32 %v1025, 1.0
        %v1043 = vsub.f32 %v1027, 1.0
        %v1044 = vmul.f32 %v1028, 1.6732632
        %v1045 = vmul.f32 %v1029, 1.6732632
        %v1046 = vmul.f32 %v1030, 1.6732632
        %v1047 = vmul.f32 %v1031, 1.6732632
        %v1048 = vmul.f32 %v1032, 1.6732632
        %v1049 = vmul.f32 %v1033, 1.6732632
        %v1050 = vmul.f32 %v1034, 1.6732632
        %v1051 = vmul.f32 %v1035, 1.6732632
        %v1052 = vmul.f32 %v1036, 1.6732632
        %v1053 = vmul.f32 %v1037, 1.6732632
        %v1054 = vmul.f32 %v1038, 1.6732632
        %v1055 = vmul.f32 %v1039, 1.6732632
        %v1056 = vmul.f32 %v1040, 1.6732632
        %v1057 = vmul.f32 %v1041, 1.6732632
        %v1058 = vmul.f32 %v1042, 1.6732632
        %v1059 = vmul.f32 %v1043, 1.6732632
        %vm1060 = vcmp.gt.f32.partialorder %v934, 0.0
        %vm1061 = vcmp.gt.f32.partialorder %v936, 0.0
        %vm1062 = vcmp.gt.f32.partialorder %v940, 0.0
        %vm1063 = vcmp.gt.f32.partialorder %v942, 0.0
        %vm1064 = vcmp.gt.f32.partialorder %v946, 0.0
        %vm1065 = vcmp.gt.f32.partialorder %v948, 0.0
        %vm1066 = vcmp.gt.f32.partialorder %v952, 0.0
        %vm1067 = vcmp.gt.f32.partialorder %v954, 0.0
        %vm1068 = vcmp.gt.f32.partialorder %v958, 0.0
        %vm1069 = vcmp.gt.f32.partialorder %v960, 0.0
        %vm1070 = vcmp.gt.f32.partialorder %v964, 0.0
        %vm1071 = vcmp.gt.f32.partialorder %v966, 0.0
        %vm1072 = vcmp.gt.f32.partialorder %v970, 0.0
        %vm1073 = vcmp.gt.f32.partialorder %v972, 0.0
        %vm1074 = vcmp.gt.f32.partialorder %v976, 0.0
        %vm1075 = vcmp.gt.f32.partialorder %v978, 0.0
        %v1076 = vsel %vm1060, %v934, %v1044
        %v1077 = vsel %vm1061, %v936, %v1045
        %v1078 = vsel %vm1062, %v940, %v1046
        %v1079 = vsel %vm1063, %v942, %v1047
        %v1080 = vsel %vm1064, %v946, %v1048
        %v1081 = vsel %vm1065, %v948, %v1049
        %v1082 = vsel %vm1066, %v952, %v1050
        %v1083 = vsel %vm1067, %v954, %v1051
        %v1084 = vsel %vm1068, %v958, %v1052
        %v1085 = vsel %vm1069, %v960, %v1053
        %v1086 = vsel %vm1070, %v964, %v1054
        %v1087 = vsel %vm1071, %v966, %v1055
        %v1088 = vsel %vm1072, %v970, %v1056
        %v1089 = vsel %vm1073, %v972, %v1057
        %v1090 = vsel %vm1074, %v976, %v1058
        %v1091 = vsel %vm1075, %v978, %v1059
        %v1092 = vmul.f32 %v1076, 1.050701
        %v1093 = vmul.f32 %v1077, 1.050701
        %v1094 = vmul.f32 %v1078, 1.050701
        %v1095 = vmul.f32 %v1079, 1.050701
        %v1096 = vmul.f32 %v1080, 1.050701
        %v1097 = vmul.f32 %v1081, 1.050701
        %v1098 = vmul.f32 %v1082, 1.050701
        %v1099 = vmul.f32 %v1083, 1.050701
        %v1100 = vmul.f32 %v1084, 1.050701
        %v1101 = vmul.f32 %v1085, 1.050701
        %v1102 = vmul.f32 %v1086, 1.050701
        %v1103 = vmul.f32 %v1087, 1.050701
        %v1104 = vmul.f32 %v1088, 1.050701
        %v1105 = vmul.f32 %v1089, 1.050701
        %v1106 = vmul.f32 %v1090, 1.050701
        %v1107 = vmul.f32 %v1091, 1.050701
        %1108 = vst [vmem:[%s451] sm:$0xff] %v1092
        %1109 = vst [vmem:[%s451 + $0x8] sm:$0xff] %v1093
        %1110 = vst [vmem:[%s451 + $0x10] sm:$0xff] %v1094
        %1111 = vst [vmem:[%s451 + $0x18] sm:$0xff] %v1095
        %1112 = vst [vmem:[%s451 + $0x20] sm:$0xff] %v1096
        %1113 = vst [vmem:[%s451 + $0x28] sm:$0xff] %v1097
        %1114 = vst [vmem:[%s451 + $0x30] sm:$0xff] %v1098
        %1115 = vst [vmem:[%s451 + $0x38] sm:$0xff] %v1099
        %1116 = vst [vmem:[%s451 + $0x40] sm:$0xff] %v1100
        %1117 = vst [vmem:[%s451 + $0x48] sm:$0xff] %v1101
        %1118 = vst [vmem:[%s451 + $0x50] sm:$0xff] %v1102
        %1119 = vst [vmem:[%s451 + $0x58] sm:$0xff] %v1103
        %1120 = vst [vmem:[%s451 + $0x60] sm:$0xff] %v1104
        %1121 = vst [vmem:[%s451 + $0x68] sm:$0xff] %v1105
        %1122 = vst [vmem:[%s451 + $0x70] sm:$0xff] %v1106
        %1123 = vst [vmem:[%s451 + $0x78] sm:$0xff] %v1107
        %v1124 = vld [vmem:[%s5] sm:$0xff]
        %v1125 = vld [vmem:[%s5 + $0x8] sm:$0xff]
        %v1126 = vld [vmem:[%s5 + $0x10] sm:$0xff]
        %v1127 = vld [vmem:[%s5 + $0x18] sm:$0xff]
        %v1128 = vld [vmem:[%s5 + $0x20] sm:$0xff]
        %v1129 = vld [vmem:[%s5 + $0x28] sm:$0xff]
        %v1130 = vld [vmem:[%s5 + $0x30] sm:$0xff]
        %v1131 = vld [vmem:[%s5 + $0x38] sm:$0xff]
        %v1132 = vld [vmem:[%s5 + $0x40] sm:$0xff]
        %v1133 = vld [vmem:[%s5 + $0x48] sm:$0xff]
        %v1134 = vld [vmem:[%s5 + $0x50] sm:$0xff]
        %v1135 = vld [vmem:[%s5 + $0x58] sm:$0xff]
        %v1136 = vld [vmem:[%s5 + $0x60] sm:$0xff]
        %v1137 = vld [vmem:[%s5 + $0x68] sm:$0xff]
        %v1138 = vld [vmem:[%s5 + $0x70] sm:$0xff]
        %v1139 = vld [vmem:[%s5 + $0x78] sm:$0xff]
        %v1140 = vld [vmem:[%s6] sm:$0xff]
        %v1141 = vld [vmem:[%s6 + $0x8] sm:$0xff]
        %v1142 = vld [vmem:[%s6 + $0x10] sm:$0xff]
        %v1143 = vld [vmem:[%s6 + $0x18] sm:$0xff]
        %v1144 = vld [vmem:[%s6 + $0x20] sm:$0xff]
        %v1145 = vld [vmem:[%s6 + $0x28] sm:$0xff]
        %v1146 = vld [vmem:[%s6 + $0x30] sm:$0xff]
        %v1147 = vld [vmem:[%s6 + $0x38] sm:$0xff]
        %v1148 = vld [vmem:[%s6 + $0x40] sm:$0xff]
        %v1149 = vld [vmem:[%s6 + $0x48] sm:$0xff]
        %v1150 = vld [vmem:[%s6 + $0x50] sm:$0xff]
        %v1151 = vld [vmem:[%s6 + $0x58] sm:$0xff]
        %v1152 = vld [vmem:[%s6 + $0x60] sm:$0xff]
        %v1153 = vld [vmem:[%s6 + $0x68] sm:$0xff]
        %v1154 = vld [vmem:[%s6 + $0x70] sm:$0xff]
        %v1155 = vld [vmem:[%s6 + $0x78] sm:$0xff]
        %1157 = vset.pattern.permute.xlu0 0
        %1158 = vperm.xlu0 %1157, %v1140
        %v1159 = vpop.permute.xlu0 %1158
        %1162 = vset.pattern.permute.xlu0 0
        %1163 = vperm.xlu0 %1162, %v1141
        %v1164 = vpop.permute.xlu0 %1163
        %1167 = vset.pattern.permute.xlu0 0
        %1168 = vperm.xlu0 %1167, %v1142
        %v1169 = vpop.permute.xlu0 %1168
        %1172 = vset.pattern.permute.xlu0 0
        %1173 = vperm.xlu0 %1172, %v1143
        %v1174 = vpop.permute.xlu0 %1173
        %1177 = vset.pattern.permute.xlu0 0
        %1178 = vperm.xlu0 %1177, %v1144
        %v1179 = vpop.permute.xlu0 %1178
        %1182 = vset.pattern.permute.xlu0 0
        %1183 = vperm.xlu0 %1182, %v1145
        %v1184 = vpop.permute.xlu0 %1183
        %1187 = vset.pattern.permute.xlu0 0
        %1188 = vperm.xlu0 %1187, %v1146
        %v1189 = vpop.permute.xlu0 %1188
        %1192 = vset.pattern.permute.xlu0 0
        %1193 = vperm.xlu0 %1192, %v1147
        %v1194 = vpop.permute.xlu0 %1193
        %1197 = vset.pattern.permute.xlu0 0
        %1198 = vperm.xlu0 %1197, %v1148
        %v1199 = vpop.permute.xlu0 %1198
        %1202 = vset.pattern.permute.xlu0 0
        %1203 = vperm.xlu0 %1202, %v1149
        %v1204 = vpop.permute.xlu0 %1203
        %1207 = vset.pattern.permute.xlu0 0
        %1208 = vperm.xlu0 %1207, %v1150
        %v1209 = vpop.permute.xlu0 %1208
        %1212 = vset.pattern.permute.xlu0 0
        %1213 = vperm.xlu0 %1212, %v1151
        %v1214 = vpop.permute.xlu0 %1213
        %1217 = vset.pattern.permute.xlu0 0
        %1218 = vperm.xlu0 %1217, %v1152
        %v1219 = vpop.permute.xlu0 %1218
        %1222 = vset.pattern.permute.xlu0 0
        %1223 = vperm.xlu0 %1222, %v1153
        %v1224 = vpop.permute.xlu0 %1223
        %1227 = vset.pattern.permute.xlu0 0
        %1228 = vperm.xlu0 %1227, %v1154
        %v1229 = vpop.permute.xlu0 %1228
        %1232 = vset.pattern.permute.xlu0 0
        %1233 = vperm.xlu0 %1232, %v1155
        %v1234 = vpop.permute.xlu0 %1233
        %vm1236 = vcmask 523264
        %v1238 = vsel %vm1236, %v1124, 0
        %v1241 = vsel %vm1236, %v1125, 0
        %v1244 = vsel %vm1236, %v1126, 0
        %v1247 = vsel %vm1236, %v1127, 0
        %v1250 = vsel %vm1236, %v1128, 0
        %v1253 = vsel %vm1236, %v1129, 0
        %v1256 = vsel %vm1236, %v1130, 0
        %v1259 = vsel %vm1236, %v1131, 0
        %v1262 = vsel %vm1236, %v1132, 0
        %v1265 = vsel %vm1236, %v1133, 0
        %v1268 = vsel %vm1236, %v1134, 0
        %v1271 = vsel %vm1236, %v1135, 0
        %v1274 = vsel %vm1236, %v1136, 0
        %v1277 = vsel %vm1236, %v1137, 0
        %v1280 = vsel %vm1236, %v1138, 0
        %v1283 = vsel %vm1236, %v1139, 0
        %1285 = vmatprep.subr.mxu0 %v1093
        %1286 = vmatpush1.msra.mxu0 %v1092
        %1287 = vmatprep.subr.mxu0 %v1095
        %1288 = vmatpush1.msra.mxu0 %v1094
        %1289 = vmatprep.subr.mxu0 %v1097
        %1290 = vmatpush1.msra.mxu0 %v1096
        %1291 = vmatprep.subr.mxu0 %v1099
        %1292 = vmatpush1.msra.mxu0 %v1098
        %1293 = vmatprep.subr.mxu0 %v1101
        %1294 = vmatpush1.msra.mxu0 %v1100
        %1295 = vmatprep.subr.mxu0 %v1103
        %1296 = vmatpush1.msra.mxu0 %v1102
        %1297 = vmatprep.subr.mxu0 %v1105
        %1298 = vmatpush1.msra.mxu0 %v1104
        %1299 = vmatprep.subr.mxu0 %v1107
        %1300 = vmatpush1.msra.mxu0 %v1106
        %1301 = vmatprep.subr.mxu0 0.0
        %1302 = vmatpush1.msra.mxu0 0.0
        %1303 = vmatprep.subr.mxu0 0.0
        %1304 = vmatpush1.msra.mxu0 0.0
        %1305 = vmatprep.subr.mxu0 0.0
        %1306 = vmatpush1.msra.mxu0 0.0
        %1307 = vmatprep.subr.mxu0 0.0
        %1308 = vmatpush1.msra.mxu0 0.0
        %1309 = vmatprep.subr.mxu0 0.0
        %1310 = vmatpush1.msra.mxu0 0.0
        %1311 = vmatprep.subr.mxu0 0.0
        %1312 = vmatpush1.msra.mxu0 0.0
        %1313 = vmatprep.subr.mxu0 0.0
        %1314 = vmatpush1.msra.mxu0 0.0
        %1315 = vmatprep.subr.mxu0 0.0
        %1316 = vmatpush1.msra.mxu0 0.0
        %1317 = vmatprep.subr.mxu0 0.0
        %1318 = vmatpush1.msra.mxu0 0.0
        %1319 = vmatprep.subr.mxu0 0.0
        %1320 = vmatpush1.msra.mxu0 0.0
        %1321 = vmatprep.subr.mxu0 0.0
        %1322 = vmatpush1.msra.mxu0 0.0
        %1323 = vmatprep.subr.mxu0 0.0
        %1324 = vmatpush1.msra.mxu0 0.0
        %1325 = vmatprep.subr.mxu0 0.0
        %1326 = vmatpush1.msra.mxu0 0.0
        %1327 = vmatprep.subr.mxu0 0.0
        %1328 = vmatpush1.msra.mxu0 0.0
        %1329 = vmatprep.subr.mxu0 0.0
        %1330 = vmatpush1.msra.mxu0 0.0
        %1331 = vmatprep.subr.mxu0 0.0
        %1332 = vmatpush1.msra.mxu0 0.0
        %1333 = vmatprep.subr.mxu0 0.0
        %1334 = vmatpush1.msra.mxu0 0.0
        %1335 = vmatprep.subr.mxu0 0.0
        %1336 = vmatpush1.msra.mxu0 0.0
        %1337 = vmatprep.subr.mxu0 0.0
        %1338 = vmatpush1.msra.mxu0 0.0
        %1339 = vmatprep.subr.mxu0 0.0
        %1340 = vmatpush1.msra.mxu0 0.0
        %1341 = vmatprep.subr.mxu0 0.0
        %1342 = vmatpush1.msra.mxu0 0.0
        %1343 = vmatprep.subr.mxu0 0.0
        %1344 = vmatpush1.msra.mxu0 0.0
        %1345 = vmatprep.subr.mxu0 0.0
        %1346 = vmatpush1.msra.mxu0 0.0
        %1347 = vmatprep.subr.mxu0 0.0
        %1348 = vmatpush1.msra.mxu0 0.0
        %1349 = vmatprep.mubr.f32.mxu0 0.0
        %1350 = vmatmul.mubr.f32.gmra.mrb[0].mxu0 %v1238
        %v1351 = vpop.f32.mrb[0].mxu0
        %v1352 = vadd.f32 %v1159, %v1351
        %v1353 = vpop.f32.mrb[0].mxu0
        %v1354 = vadd.f32 %v1159, %v1353
        %1355 = vmatprep.mubr.f32.mxu0 0.0
        %1356 = vmatmul.mubr.f32.gmra.mrb[0].mxu0 %v1241
        %v1357 = vpop.f32.mrb[0].mxu0
        %v1358 = vadd.f32 %v1164, %v1357
        %v1359 = vpop.f32.mrb[0].mxu0
        %v1360 = vadd.f32 %v1164, %v1359
        %1361 = vmatprep.mubr.f32.mxu0 0.0
        %1362 = vmatmul.mubr.f32.gmra.mrb[0].mxu0 %v1244
        %v1363 = vpop.f32.mrb[0].mxu0
        %v1364 = vadd.f32 %v1169, %v1363
        %v1365 = vpop.f32.mrb[0].mxu0
        %v1366 = vadd.f32 %v1169, %v1365
        %1367 = vmatprep.mubr.f32.mxu0 0.0
        %1368 = vmatmul.mubr.f32.gmra.mrb[0].mxu0 %v1247
        %v1369 = vpop.f32.mrb[0].mxu0
        %v1370 = vadd.f32 %v1174, %v1369
        %v1371 = vpop.f32.mrb[0].mxu0
        %v1372 = vadd.f32 %v1174, %v1371
        %1373 = vmatprep.mubr.f32.mxu0 0.0
        %1374 = vmatmul.mubr.f32.gmra.mrb[0].mxu0 %v1250
        %v1375 = vpop.f32.mrb[0].mxu0
        %v1376 = vadd.f32 %v1179, %v1375
        %v1377 = vpop.f32.mrb[0].mxu0
        %v1378 = vadd.f32 %v1179, %v1377
        %1379 = vmatprep.mubr.f32.mxu0 0.0
        %1380 = vmatmul.mubr.f32.gmra.mrb[0].mxu0 %v1253
        %v1381 = vpop.f32.mrb[0].mxu0
        %v1382 = vadd.f32 %v1184, %v1381
        %v1383 = vpop.f32.mrb[0].mxu0
        %v1384 = vadd.f32 %v1184, %v1383
        %1385 = vmatprep.mubr.f32.mxu0 0.0
        %1386 = vmatmul.mubr.f32.gmra.mrb[0].mxu0 %v1256
        %v1387 = vpop.f32.mrb[0].mxu0
        %v1388 = vadd.f32 %v1189, %v1387
        %v1389 = vpop.f32.mrb[0].mxu0
        %v1390 = vadd.f32 %v1189, %v1389
        %1391 = vmatprep.mubr.f32.mxu0 0.0
        %1392 = vmatmul.mubr.f32.gmra.mrb[0].mxu0 %v1259
        %v1393 = vpop.f32.mrb[0].mxu0
        %v1394 = vadd.f32 %v1194, %v1393
        %v1395 = vpop.f32.mrb[0].mxu0
        %v1396 = vadd.f32 %v1194, %v1395
        %1397 = vmatprep.mubr.f32.mxu0 0.0
        %1398 = vmatmul.mubr.f32.gmra.mrb[0].mxu0 %v1262
        %v1399 = vpop.f32.mrb[0].mxu0
        %v1400 = vadd.f32 %v1199, %v1399
        %v1401 = vpop.f32.mrb[0].mxu0
        %v1402 = vadd.f32 %v1199, %v1401
        %1403 = vmatprep.mubr.f32.mxu0 0.0
        %1404 = vmatmul.mubr.f32.gmra.mrb[0].mxu0 %v1265
        %v1405 = vpop.f32.mrb[0].mxu0
        %v1406 = vadd.f32 %v1204, %v1405
        %v1407 = vpop.f32.mrb[0].mxu0
        %v1408 = vadd.f32 %v1204, %v1407
        %1409 = vmatprep.mubr.f32.mxu0 0.0
        %1410 = vmatmul.mubr.f32.gmra.mrb[0].mxu0 %v1268
        %v1411 = vpop.f32.mrb[0].mxu0
        %v1412 = vadd.f32 %v1209, %v1411
        %v1413 = vpop.f32.mrb[0].mxu0
        %v1414 = vadd.f32 %v1209, %v1413
        %1415 = vmatprep.mubr.f32.mxu0 0.0
        %1416 = vmatmul.mubr.f32.gmra.mrb[0].mxu0 %v1271
        %v1417 = vpop.f32.mrb[0].mxu0
        %v1418 = vadd.f32 %v1214, %v1417
        %v1419 = vpop.f32.mrb[0].mxu0
        %v1420 = vadd.f32 %v1214, %v1419
        %1421 = vmatprep.mubr.f32.mxu0 0.0
        %1422 = vmatmul.mubr.f32.gmra.mrb[0].mxu0 %v1274
        %v1423 = vpop.f32.mrb[0].mxu0
        %v1424 = vadd.f32 %v1219, %v1423
        %v1425 = vpop.f32.mrb[0].mxu0
        %v1426 = vadd.f32 %v1219, %v1425
        %1427 = vmatprep.mubr.f32.mxu0 0.0
        %1428 = vmatmul.mubr.f32.gmra.mrb[0].mxu0 %v1277
        %v1429 = vpop.f32.mrb[0].mxu0
        %v1430 = vadd.f32 %v1224, %v1429
        %v1431 = vpop.f32.mrb[0].mxu0
        %v1432 = vadd.f32 %v1224, %v1431
        %1433 = vmatprep.mubr.f32.mxu0 0.0
        %1434 = vmatmul.mubr.f32.gmra.mrb[0].mxu0 %v1280
        %v1435 = vpop.f32.mrb[0].mxu0
        %v1436 = vadd.f32 %v1229, %v1435
        %v1437 = vpop.f32.mrb[0].mxu0
        %v1438 = vadd.f32 %v1229, %v1437
        %1439 = vmatprep.mubr.f32.mxu0 0.0
        %1440 = vmatmul.mubr.f32.gmra.mrb[0].mxu0 %v1283
        %v1441 = vpop.f32.mrb[0].mxu0
        %v1442 = vadd.f32 %v1234, %v1441
        %v1443 = vpop.f32.mrb[0].mxu0
        %v1444 = vadd.f32 %v1234, %v1443
        %1445 = vdwg.mxu0
        %v1446 = vmin.f32 %v1352, 0.0
        %v1447 = vmin.f32 %v1354, 0.0
        %v1448 = vmin.f32 %v1358, 0.0
        %v1449 = vmin.f32 %v1360, 0.0
        %v1450 = vmin.f32 %v1364, 0.0
        %v1451 = vmin.f32 %v1366, 0.0
        %v1452 = vmin.f32 %v1370, 0.0
        %v1453 = vmin.f32 %v1372, 0.0
        %v1454 = vmin.f32 %v1376, 0.0
        %v1455 = vmin.f32 %v1378, 0.0
        %v1456 = vmin.f32 %v1382, 0.0
        %v1457 = vmin.f32 %v1384, 0.0
        %v1458 = vmin.f32 %v1388, 0.0
        %v1459 = vmin.f32 %v1390, 0.0
        %v1460 = vmin.f32 %v1394, 0.0
        %v1461 = vmin.f32 %v1396, 0.0
        %v1462 = vmin.f32 %v1400, 0.0
        %v1463 = vmin.f32 %v1402, 0.0
        %v1464 = vmin.f32 %v1406, 0.0
        %v1465 = vmin.f32 %v1408, 0.0
        %v1466 = vmin.f32 %v1412, 0.0
        %v1467 = vmin.f32 %v1414, 0.0
        %v1468 = vmin.f32 %v1418, 0.0
        %v1469 = vmin.f32 %v1420, 0.0
        %v1470 = vmin.f32 %v1424, 0.0
        %v1471 = vmin.f32 %v1426, 0.0
        %v1472 = vmin.f32 %v1430, 0.0
        %v1473 = vmin.f32 %v1432, 0.0
        %v1474 = vmin.f32 %v1436, 0.0
        %v1475 = vmin.f32 %v1438, 0.0
        %v1476 = vmin.f32 %v1442, 0.0
        %v1477 = vmin.f32 %v1444, 0.0
        %v1478 = vmul.f32 %v1446, 1.442695
        %v1479 = vpow.pop %v1478
        %v1480 = vmul.f32 %v1447, 1.442695
        %v1481 = vpow.pop %v1480
        %v1482 = vmul.f32 %v1448, 1.442695
        %v1483 = vpow.pop %v1482
        %v1484 = vmul.f32 %v1449, 1.442695
        %v1485 = vpow.pop %v1484
        %v1486 = vmul.f32 %v1450, 1.442695
        %v1487 = vpow.pop %v1486
        %v1488 = vmul.f32 %v1451, 1.442695
        %v1489 = vpow.pop %v1488
        %v1490 = vmul.f32 %v1452, 1.442695
        %v1491 = vpow.pop %v1490
        %v1492 = vmul.f32 %v1453, 1.442695
        %v1493 = vpow.pop %v1492
        %v1494 = vmul.f32 %v1454, 1.442695
        %v1495 = vpow.pop %v1494
        %v1496 = vmul.f32 %v1455, 1.442695
        %v1497 = vpow.pop %v1496
        %v1498 = vmul.f32 %v1456, 1.442695
        %v1499 = vpow.pop %v1498
        %v1500 = vmul.f32 %v1457, 1.442695
        %v1501 = vpow.pop %v1500
        %v1502 = vmul.f32 %v1458, 1.442695
        %v1503 = vpow.pop %v1502
        %v1504 = vmul.f32 %v1459, 1.442695
        %v1505 = vpow.pop %v1504
        %v1506 = vmul.f32 %v1460, 1.442695
        %v1507 = vpow.pop %v1506
        %v1508 = vmul.f32 %v1461, 1.442695
        %v1509 = vpow.pop %v1508
        %v1510 = vmul.f32 %v1462, 1.442695
        %v1511 = vpow.pop %v1510
        %v1512 = vmul.f32 %v1463, 1.442695
        %v1513 = vpow.pop %v1512
        %v1514 = vmul.f32 %v1464, 1.442695
        %v1515 = vpow.pop %v1514
        %v1516 = vmul.f32 %v1465, 1.442695
        %v1517 = vpow.pop %v1516
        %v1518 = vmul.f32 %v1466, 1.442695
        %v1519 = vpow.pop %v1518
        %v1520 = vmul.f32 %v1467, 1.442695
        %v1521 = vpow.pop %v1520
        %v1522 = vmul.f32 %v1468, 1.442695
        %v1523 = vpow.pop %v1522
        %v1524 = vmul.f32 %v1469, 1.442695
        %v1525 = vpow.pop %v1524
        %v1526 = vmul.f32 %v1470, 1.442695
        %v1527 = vpow.pop %v1526
        %v1528 = vmul.f32 %v1471, 1.442695
        %v1529 = vpow.pop %v1528
        %v1530 = vmul.f32 %v1472, 1.442695
        %v1531 = vpow.pop %v1530
        %v1532 = vmul.f32 %v1473, 1.442695
        %v1533 = vpow.pop %v1532
        %v1534 = vmul.f32 %v1474, 1.442695
        %v1535 = vpow.pop %v1534
        %v1536 = vmul.f32 %v1475, 1.442695
        %v1537 = vpow.pop %v1536
        %v1538 = vmul.f32 %v1476, 1.442695
        %v1539 = vpow.pop %v1538
        %v1540 = vmul.f32 %v1477, 1.442695
        %v1541 = vpow.pop %v1540
        %v1542 = vsub.f32 %v1479, 1.0
        %v1543 = vsub.f32 %v1481, 1.0
        %v1544 = vsub.f32 %v1483, 1.0
        %v1545 = vsub.f32 %v1485, 1.0
        %v1546 = vsub.f32 %v1487, 1.0
        %v1547 = vsub.f32 %v1489, 1.0
        %v1548 = vsub.f32 %v1491, 1.0
        %v1549 = vsub.f32 %v1493, 1.0
        %v1550 = vsub.f32 %v1495, 1.0
        %v1551 = vsub.f32 %v1497, 1.0
        %v1552 = vsub.f32 %v1499, 1.0
        %v1553 = vsub.f32 %v1501, 1.0
        %v1554 = vsub.f32 %v1503, 1.0
        %v1555 = vsub.f32 %v1505, 1.0
        %v1556 = vsub.f32 %v1507, 1.0
        %v1557 = vsub.f32 %v1509, 1.0
        %v1558 = vsub.f32 %v1511, 1.0
        %v1559 = vsub.f32 %v1513, 1.0
        %v1560 = vsub.f32 %v1515, 1.0
        %v1561 = vsub.f32 %v1517, 1.0
        %v1562 = vsub.f32 %v1519, 1.0
        %v1563 = vsub.f32 %v1521, 1.0
        %v1564 = vsub.f32 %v1523, 1.0
        %v1565 = vsub.f32 %v1525, 1.0
        %v1566 = vsub.f32 %v1527, 1.0
        %v1567 = vsub.f32 %v1529, 1.0
        %v1568 = vsub.f32 %v1531, 1.0
        %v1569 = vsub.f32 %v1533, 1.0
        %v1570 = vsub.f32 %v1535, 1.0
        %v1571 = vsub.f32 %v1537, 1.0
        %v1572 = vsub.f32 %v1539, 1.0
        %v1573 = vsub.f32 %v1541, 1.0
        %v1574 = vmul.f32 %v1542, 1.6732632
        %v1575 = vmul.f32 %v1543, 1.6732632
        %v1576 = vmul.f32 %v1544, 1.6732632
        %v1577 = vmul.f32 %v1545, 1.6732632
        %v1578 = vmul.f32 %v1546, 1.6732632
        %v1579 = vmul.f32 %v1547, 1.6732632
        %v1580 = vmul.f32 %v1548, 1.6732632
        %v1581 = vmul.f32 %v1549, 1.6732632
        %v1582 = vmul.f32 %v1550, 1.6732632
        %v1583 = vmul.f32 %v1551, 1.6732632
        %v1584 = vmul.f32 %v1552, 1.6732632
        %v1585 = vmul.f32 %v1553, 1.6732632
        %v1586 = vmul.f32 %v1554, 1.6732632
        %v1587 = vmul.f32 %v1555, 1.6732632
        %v1588 = vmul.f32 %v1556, 1.6732632
        %v1589 = vmul.f32 %v1557, 1.6732632
        %v1590 = vmul.f32 %v1558, 1.6732632
        %v1591 = vmul.f32 %v1559, 1.6732632
        %v1592 = vmul.f32 %v1560, 1.6732632
        %v1593 = vmul.f32 %v1561, 1.6732632
        %v1594 = vmul.f32 %v1562, 1.6732632
        %v1595 = vmul.f32 %v1563, 1.6732632
        %v1596 = vmul.f32 %v1564, 1.6732632
        %v1597 = vmul.f32 %v1565, 1.6732632
        %v1598 = vmul.f32 %v1566, 1.6732632
        %v1599 = vmul.f32 %v1567, 1.6732632
        %v1600 = vmul.f32 %v1568, 1.6732632
        %v1601 = vmul.f32 %v1569, 1.6732632
        %v1602 = vmul.f32 %v1570, 1.6732632
        %v1603 = vmul.f32 %v1571, 1.6732632
        %v1604 = vmul.f32 %v1572, 1.6732632
        %v1605 = vmul.f32 %v1573, 1.6732632
        %vm1606 = vcmp.gt.f32.partialorder %v1352, 0.0
        %vm1607 = vcmp.gt.f32.partialorder %v1354, 0.0
        %vm1608 = vcmp.gt.f32.partialorder %v1358, 0.0
        %vm1609 = vcmp.gt.f32.partialorder %v1360, 0.0
        %vm1610 = vcmp.gt.f32.partialorder %v1364, 0.0
        %vm1611 = vcmp.gt.f32.partialorder %v1366, 0.0
        %vm1612 = vcmp.gt.f32.partialorder %v1370, 0.0
        %vm1613 = vcmp.gt.f32.partialorder %v1372, 0.0
        %vm1614 = vcmp.gt.f32.partialorder %v1376, 0.0
        %vm1615 = vcmp.gt.f32.partialorder %v1378, 0.0
        %vm1616 = vcmp.gt.f32.partialorder %v1382, 0.0
        %vm1617 = vcmp.gt.f32.partialorder %v1384, 0.0
        %vm1618 = vcmp.gt.f32.partialorder %v1388, 0.0
        %vm1619 = vcmp.gt.f32.partialorder %v1390, 0.0
        %vm1620 = vcmp.gt.f32.partialorder %v1394, 0.0
        %vm1621 = vcmp.gt.f32.partialorder %v1396, 0.0
        %vm1622 = vcmp.gt.f32.partialorder %v1400, 0.0
        %vm1623 = vcmp.gt.f32.partialorder %v1402, 0.0
        %vm1624 = vcmp.gt.f32.partialorder %v1406, 0.0
        %vm1625 = vcmp.gt.f32.partialorder %v1408, 0.0
        %vm1626 = vcmp.gt.f32.partialorder %v1412, 0.0
        %vm1627 = vcmp.gt.f32.partialorder %v1414, 0.0
        %vm1628 = vcmp.gt.f32.partialorder %v1418, 0.0
        %vm1629 = vcmp.gt.f32.partialorder %v1420, 0.0
        %vm1630 = vcmp.gt.f32.partialorder %v1424, 0.0
        %vm1631 = vcmp.gt.f32.partialorder %v1426, 0.0
        %vm1632 = vcmp.gt.f32.partialorder %v1430, 0.0
        %vm1633 = vcmp.gt.f32.partialorder %v1432, 0.0
        %vm1634 = vcmp.gt.f32.partialorder %v1436, 0.0
        %vm1635 = vcmp.gt.f32.partialorder %v1438, 0.0
        %vm1636 = vcmp.gt.f32.partialorder %v1442, 0.0
        %vm1637 = vcmp.gt.f32.partialorder %v1444, 0.0
        %v1638 = vsel %vm1606, %v1352, %v1574
        %v1639 = vsel %vm1607, %v1354, %v1575
        %v1640 = vsel %vm1608, %v1358, %v1576
        %v1641 = vsel %vm1609, %v1360, %v1577
        %v1642 = vsel %vm1610, %v1364, %v1578
        %v1643 = vsel %vm1611, %v1366, %v1579
        %v1644 = vsel %vm1612, %v1370, %v1580
        %v1645 = vsel %vm1613, %v1372, %v1581
        %v1646 = vsel %vm1614, %v1376, %v1582
        %v1647 = vsel %vm1615, %v1378, %v1583
        %v1648 = vsel %vm1616, %v1382, %v1584
        %v1649 = vsel %vm1617, %v1384, %v1585
        %v1650 = vsel %vm1618, %v1388, %v1586
        %v1651 = vsel %vm1619, %v1390, %v1587
        %v1652 = vsel %vm1620, %v1394, %v1588
        %v1653 = vsel %vm1621, %v1396, %v1589
        %v1654 = vsel %vm1622, %v1400, %v1590
        %v1655 = vsel %vm1623, %v1402, %v1591
        %v1656 = vsel %vm1624, %v1406, %v1592
        %v1657 = vsel %vm1625, %v1408, %v1593
        %v1658 = vsel %vm1626, %v1412, %v1594
        %v1659 = vsel %vm1627, %v1414, %v1595
        %v1660 = vsel %vm1628, %v1418, %v1596
        %v1661 = vsel %vm1629, %v1420, %v1597
        %v1662 = vsel %vm1630, %v1424, %v1598
        %v1663 = vsel %vm1631, %v1426, %v1599
        %v1664 = vsel %vm1632, %v1430, %v1600
        %v1665 = vsel %vm1633, %v1432, %v1601
        %v1666 = vsel %vm1634, %v1436, %v1602
        %v1667 = vsel %vm1635, %v1438, %v1603
        %v1668 = vsel %vm1636, %v1442, %v1604
        %v1669 = vsel %vm1637, %v1444, %v1605
        %v1670 = vmul.f32 %v1638, 1.050701
        %v1671 = vmul.f32 %v1639, 1.050701
        %v1672 = vmul.f32 %v1640, 1.050701
        %v1673 = vmul.f32 %v1641, 1.050701
        %v1674 = vmul.f32 %v1642, 1.050701
        %v1675 = vmul.f32 %v1643, 1.050701
        %v1676 = vmul.f32 %v1644, 1.050701
        %v1677 = vmul.f32 %v1645, 1.050701
        %v1678 = vmul.f32 %v1646, 1.050701
        %v1679 = vmul.f32 %v1647, 1.050701
        %v1680 = vmul.f32 %v1648, 1.050701
        %v1681 = vmul.f32 %v1649, 1.050701
        %v1682 = vmul.f32 %v1650, 1.050701
        %v1683 = vmul.f32 %v1651, 1.050701
        %v1684 = vmul.f32 %v1652, 1.050701
        %v1685 = vmul.f32 %v1653, 1.050701
        %v1686 = vmul.f32 %v1654, 1.050701
        %v1687 = vmul.f32 %v1655, 1.050701
        %v1688 = vmul.f32 %v1656, 1.050701
        %v1689 = vmul.f32 %v1657, 1.050701
        %v1690 = vmul.f32 %v1658, 1.050701
        %v1691 = vmul.f32 %v1659, 1.050701
        %v1692 = vmul.f32 %v1660, 1.050701
        %v1693 = vmul.f32 %v1661, 1.050701
        %v1694 = vmul.f32 %v1662, 1.050701
        %v1695 = vmul.f32 %v1663, 1.050701
        %v1696 = vmul.f32 %v1664, 1.050701
        %v1697 = vmul.f32 %v1665, 1.050701
        %v1698 = vmul.f32 %v1666, 1.050701
        %v1699 = vmul.f32 %v1667, 1.050701
        %v1700 = vmul.f32 %v1668, 1.050701
        %v1701 = vmul.f32 %v1669, 1.050701
        %1702 = vst [vmem:[%s458] sm:$0xff] %v1670
        %1703 = vst [vmem:[%s458 + $0x8] sm:$0xff] %v1671
        %1704 = vst [vmem:[%s458 + $0x10] sm:$0xff] %v1672
        %1705 = vst [vmem:[%s458 + $0x18] sm:$0xff] %v1673
        %1706 = vst [vmem:[%s458 + $0x20] sm:$0xff] %v1674
        %1707 = vst [vmem:[%s458 + $0x28] sm:$0xff] %v1675
        %1708 = vst [vmem:[%s458 + $0x30] sm:$0xff] %v1676
        %1709 = vst [vmem:[%s458 + $0x38] sm:$0xff] %v1677
        %1710 = vst [vmem:[%s458 + $0x40] sm:$0xff] %v1678
        %1711 = vst [vmem:[%s458 + $0x48] sm:$0xff] %v1679
        %1712 = vst [vmem:[%s458 + $0x50] sm:$0xff] %v1680
        %1713 = vst [vmem:[%s458 + $0x58] sm:$0xff] %v1681
        %1714 = vst [vmem:[%s458 + $0x60] sm:$0xff] %v1682
        %1715 = vst [vmem:[%s458 + $0x68] sm:$0xff] %v1683
        %1716 = vst [vmem:[%s458 + $0x70] sm:$0xff] %v1684
        %1717 = vst [vmem:[%s458 + $0x78] sm:$0xff] %v1685
        %1718 = vst [vmem:[%s458 + $0x80] sm:$0xff] %v1686
        %1719 = vst [vmem:[%s458 + $0x88] sm:$0xff] %v1687
        %1720 = vst [vmem:[%s458 + $0x90] sm:$0xff] %v1688
        %1721 = vst [vmem:[%s458 + $0x98] sm:$0xff] %v1689
        %1722 = vst [vmem:[%s458 + $0xa0] sm:$0xff] %v1690
        %1723 = vst [vmem:[%s458 + $0xa8] sm:$0xff] %v1691
        %1724 = vst [vmem:[%s458 + $0xb0] sm:$0xff] %v1692
        %1725 = vst [vmem:[%s458 + $0xb8] sm:$0xff] %v1693
        %1726 = vst [vmem:[%s458 + $0xc0] sm:$0xff] %v1694
        %1727 = vst [vmem:[%s458 + $0xc8] sm:$0xff] %v1695
        %1728 = vst [vmem:[%s458 + $0xd0] sm:$0xff] %v1696
        %1729 = vst [vmem:[%s458 + $0xd8] sm:$0xff] %v1697
        %1730 = vst [vmem:[%s458 + $0xe0] sm:$0xff] %v1698
        %1731 = vst [vmem:[%s458 + $0xe8] sm:$0xff] %v1699
        %1732 = vst [vmem:[%s458 + $0xf0] sm:$0xff] %v1700
        %1733 = vst [vmem:[%s458 + $0xf8] sm:$0xff] %v1701
        %v1734 = vld [vmem:[%s7] sm:$0xff]
        %v1735 = vld [vmem:[%s7 + $0x8] sm:$0xff]
        %v1736 = vld [vmem:[%s7 + $0x10] sm:$0xff]
        %v1737 = vld [vmem:[%s7 + $0x18] sm:$0xff]
        %v1738 = vld [vmem:[%s7 + $0x20] sm:$0xff]
        %v1739 = vld [vmem:[%s7 + $0x28] sm:$0xff]
        %v1740 = vld [vmem:[%s7 + $0x30] sm:$0xff]
        %v1741 = vld [vmem:[%s7 + $0x38] sm:$0xff]
        %v1742 = vld [vmem:[%s7 + $0x40] sm:$0xff]
        %v1743 = vld [vmem:[%s7 + $0x48] sm:$0xff]
        %v1744 = vld [vmem:[%s7 + $0x50] sm:$0xff]
        %v1745 = vld [vmem:[%s7 + $0x58] sm:$0xff]
        %v1746 = vld [vmem:[%s7 + $0x60] sm:$0xff]
        %v1747 = vld [vmem:[%s7 + $0x68] sm:$0xff]
        %v1748 = vld [vmem:[%s7 + $0x70] sm:$0xff]
        %v1749 = vld [vmem:[%s7 + $0x78] sm:$0xff]
        %v1750 = vld [vmem:[%s7 + $0x80] sm:$0xff]
        %v1751 = vld [vmem:[%s7 + $0x88] sm:$0xff]
        %v1752 = vld [vmem:[%s7 + $0x90] sm:$0xff]
        %v1753 = vld [vmem:[%s7 + $0x98] sm:$0xff]
        %v1754 = vld [vmem:[%s7 + $0xa0] sm:$0xff]
        %v1755 = vld [vmem:[%s7 + $0xa8] sm:$0xff]
        %v1756 = vld [vmem:[%s7 + $0xb0] sm:$0xff]
        %v1757 = vld [vmem:[%s7 + $0xb8] sm:$0xff]
        %v1758 = vld [vmem:[%s7 + $0xc0] sm:$0xff]
        %v1759 = vld [vmem:[%s7 + $0xc8] sm:$0xff]
        %v1760 = vld [vmem:[%s7 + $0xd0] sm:$0xff]
        %v1761 = vld [vmem:[%s7 + $0xd8] sm:$0xff]
        %v1762 = vld [vmem:[%s7 + $0xe0] sm:$0xff]
        %v1763 = vld [vmem:[%s7 + $0xe8] sm:$0xff]
        %v1764 = vld [vmem:[%s7 + $0xf0] sm:$0xff]
        %v1765 = vld [vmem:[%s7 + $0xf8] sm:$0xff]
        %v1766 = vld [vmem:[%s8] sm:$0xff]
        %v1767 = vld [vmem:[%s8 + $0x8] sm:$0xff]
        %v1768 = vld [vmem:[%s8 + $0x10] sm:$0xff]
        %v1769 = vld [vmem:[%s8 + $0x18] sm:$0xff]
        %v1770 = vld [vmem:[%s8 + $0x20] sm:$0xff]
        %v1771 = vld [vmem:[%s8 + $0x28] sm:$0xff]
        %v1772 = vld [vmem:[%s8 + $0x30] sm:$0xff]
        %v1773 = vld [vmem:[%s8 + $0x38] sm:$0xff]
        %v1774 = vld [vmem:[%s8 + $0x40] sm:$0xff]
        %v1775 = vld [vmem:[%s8 + $0x48] sm:$0xff]
        %v1776 = vld [vmem:[%s8 + $0x50] sm:$0xff]
        %v1777 = vld [vmem:[%s8 + $0x58] sm:$0xff]
        %v1778 = vld [vmem:[%s8 + $0x60] sm:$0xff]
        %v1779 = vld [vmem:[%s8 + $0x68] sm:$0xff]
        %v1780 = vld [vmem:[%s8 + $0x70] sm:$0xff]
        %v1781 = vld [vmem:[%s8 + $0x78] sm:$0xff]
        %v1782 = vld [vmem:[%s8 + $0x80] sm:$0xff]
        %v1783 = vld [vmem:[%s8 + $0x88] sm:$0xff]
        %v1784 = vld [vmem:[%s8 + $0x90] sm:$0xff]
        %v1785 = vld [vmem:[%s8 + $0x98] sm:$0xff]
        %v1786 = vld [vmem:[%s8 + $0xa0] sm:$0xff]
        %v1787 = vld [vmem:[%s8 + $0xa8] sm:$0xff]
        %v1788 = vld [vmem:[%s8 + $0xb0] sm:$0xff]
        %v1789 = vld [vmem:[%s8 + $0xb8] sm:$0xff]
        %v1790 = vld [vmem:[%s8 + $0xc0] sm:$0xff]
        %v1791 = vld [vmem:[%s8 + $0xc8] sm:$0xff]
        %v1792 = vld [vmem:[%s8 + $0xd0] sm:$0xff]
        %v1793 = vld [vmem:[%s8 + $0xd8] sm:$0xff]
        %v1794 = vld [vmem:[%s8 + $0xe0] sm:$0xff]
        %v1795 = vld [vmem:[%s8 + $0xe8] sm:$0xff]
        %v1796 = vld [vmem:[%s8 + $0xf0] sm:$0xff]
        %v1797 = vld [vmem:[%s8 + $0xf8] sm:$0xff]
        %1799 = vset.pattern.permute.xlu0 0
        %1800 = vperm.xlu0 %1799, %v1766
        %v1801 = vpop.permute.xlu0 %1800
        %1804 = vset.pattern.permute.xlu0 0
        %1805 = vperm.xlu0 %1804, %v1767
        %v1806 = vpop.permute.xlu0 %1805
        %1809 = vset.pattern.permute.xlu0 0
        %1810 = vperm.xlu0 %1809, %v1768
        %v1811 = vpop.permute.xlu0 %1810
        %1814 = vset.pattern.permute.xlu0 0
        %1815 = vperm.xlu0 %1814, %v1769
        %v1816 = vpop.permute.xlu0 %1815
        %1819 = vset.pattern.permute.xlu0 0
        %1820 = vperm.xlu0 %1819, %v1770
        %v1821 = vpop.permute.xlu0 %1820
        %1824 = vset.pattern.permute.xlu0 0
        %1825 = vperm.xlu0 %1824, %v1771
        %v1826 = vpop.permute.xlu0 %1825
        %1829 = vset.pattern.permute.xlu0 0
        %1830 = vperm.xlu0 %1829, %v1772
        %v1831 = vpop.permute.xlu0 %1830
        %1834 = vset.pattern.permute.xlu0 0
        %1835 = vperm.xlu0 %1834, %v1773
        %v1836 = vpop.permute.xlu0 %1835
        %1839 = vset.pattern.permute.xlu0 0
        %1840 = vperm.xlu0 %1839, %v1774
        %v1841 = vpop.permute.xlu0 %1840
        %1844 = vset.pattern.permute.xlu0 0
        %1845 = vperm.xlu0 %1844, %v1775
        %v1846 = vpop.permute.xlu0 %1845
        %1849 = vset.pattern.permute.xlu0 0
        %1850 = vperm.xlu0 %1849, %v1776
        %v1851 = vpop.permute.xlu0 %1850
        %1854 = vset.pattern.permute.xlu0 0
        %1855 = vperm.xlu0 %1854, %v1777
        %v1856 = vpop.permute.xlu0 %1855
        %1859 = vset.pattern.permute.xlu0 0
        %1860 = vperm.xlu0 %1859, %v1778
        %v1861 = vpop.permute.xlu0 %1860
        %1864 = vset.pattern.permute.xlu0 0
        %1865 = vperm.xlu0 %1864, %v1779
        %v1866 = vpop.permute.xlu0 %1865
        %1869 = vset.pattern.permute.xlu0 0
        %1870 = vperm.xlu0 %1869, %v1780
        %v1871 = vpop.permute.xlu0 %1870
        %1874 = vset.pattern.permute.xlu0 0
        %1875 = vperm.xlu0 %1874, %v1781
        %v1876 = vpop.permute.xlu0 %1875
        %1879 = vset.pattern.permute.xlu0 0
        %1880 = vperm.xlu0 %1879, %v1782
        %v1881 = vpop.permute.xlu0 %1880
        %1884 = vset.pattern.permute.xlu0 0
        %1885 = vperm.xlu0 %1884, %v1783
        %v1886 = vpop.permute.xlu0 %1885
        %1889 = vset.pattern.permute.xlu0 0
        %1890 = vperm.xlu0 %1889, %v1784
        %v1891 = vpop.permute.xlu0 %1890
        %1894 = vset.pattern.permute.xlu0 0
        %1895 = vperm.xlu0 %1894, %v1785
        %v1896 = vpop.permute.xlu0 %1895
        %1899 = vset.pattern.permute.xlu0 0
        %1900 = vperm.xlu0 %1899, %v1786
        %v1901 = vpop.permute.xlu0 %1900
        %1904 = vset.pattern.permute.xlu0 0
        %1905 = vperm.xlu0 %1904, %v1787
        %v1906 = vpop.permute.xlu0 %1905
        %1909 = vset.pattern.permute.xlu0 0
        %1910 = vperm.xlu0 %1909, %v1788
        %v1911 = vpop.permute.xlu0 %1910
        %1914 = vset.pattern.permute.xlu0 0
        %1915 = vperm.xlu0 %1914, %v1789
        %v1916 = vpop.permute.xlu0 %1915
        %1919 = vset.pattern.permute.xlu0 0
        %1920 = vperm.xlu0 %1919, %v1790
        %v1921 = vpop.permute.xlu0 %1920
        %1924 = vset.pattern.permute.xlu0 0
        %1925 = vperm.xlu0 %1924, %v1791
        %v1926 = vpop.permute.xlu0 %1925
        %1929 = vset.pattern.permute.xlu0 0
        %1930 = vperm.xlu0 %1929, %v1792
        %v1931 = vpop.permute.xlu0 %1930
        %1934 = vset.pattern.permute.xlu0 0
        %1935 = vperm.xlu0 %1934, %v1793
        %v1936 = vpop.permute.xlu0 %1935
        %1939 = vset.pattern.permute.xlu0 0
        %1940 = vperm.xlu0 %1939, %v1794
        %v1941 = vpop.permute.xlu0 %1940
        %1944 = vset.pattern.permute.xlu0 0
        %1945 = vperm.xlu0 %1944, %v1795
        %v1946 = vpop.permute.xlu0 %1945
        %1949 = vset.pattern.permute.xlu0 0
        %1950 = vperm.xlu0 %1949, %v1796
        %v1951 = vpop.permute.xlu0 %1950
        %1954 = vset.pattern.permute.xlu0 0
        %1955 = vperm.xlu0 %1954, %v1797
        %v1956 = vpop.permute.xlu0 %1955
        %1958 = vmatprep.subr.mxu0 %v1671
        %1959 = vmatpush1.msra.mxu0 %v1670
        %1960 = vmatprep.subr.mxu0 %v1673
        %1961 = vmatpush1.msra.mxu0 %v1672
        %1962 = vmatprep.subr.mxu0 %v1675
        %1963 = vmatpush1.msra.mxu0 %v1674
        %1964 = vmatprep.subr.mxu0 %v1677
        %1965 = vmatpush1.msra.mxu0 %v1676
        %1966 = vmatprep.subr.mxu0 %v1679
        %1967 = vmatpush1.msra.mxu0 %v1678
        %1968 = vmatprep.subr.mxu0 %v1681
        %1969 = vmatpush1.msra.mxu0 %v1680
        %1970 = vmatprep.subr.mxu0 %v1683
        %1971 = vmatpush1.msra.mxu0 %v1682
        %1972 = vmatprep.subr.mxu0 %v1685
        %1973 = vmatpush1.msra.mxu0 %v1684
        %1974 = vmatprep.subr.mxu0 %v1687
        %1975 = vmatpush1.msra.mxu0 %v1686
        %1976 = vmatprep.subr.mxu0 %v1689
        %1977 = vmatpush1.msra.mxu0 %v1688
        %1978 = vmatprep.subr.mxu0 %v1691
        %1979 = vmatpush1.msra.mxu0 %v1690
        %1980 = vmatprep.subr.mxu0 %v1693
        %1981 = vmatpush1.msra.mxu0 %v1692
        %1982 = vmatprep.subr.mxu0 %v1695
        %1983 = vmatpush1.msra.mxu0 %v1694
        %1984 = vmatprep.subr.mxu0 %v1697
        %1985 = vmatpush1.msra.mxu0 %v1696
        %1986 = vmatprep.subr.mxu0 %v1699
        %1987 = vmatpush1.msra.mxu0 %v1698
        %1988 = vmatprep.subr.mxu0 %v1701
        %1989 = vmatpush1.msra.mxu0 %v1700
        %1990 = vmatprep.subr.mxu0 0.0
        %1991 = vmatpush1.msra.mxu0 0.0
        %1992 = vmatprep.subr.mxu0 0.0
        %1993 = vmatpush1.msra.mxu0 0.0
        %1994 = vmatprep.subr.mxu0 0.0
        %1995 = vmatpush1.msra.mxu0 0.0
        %1996 = vmatprep.subr.mxu0 0.0
        %1997 = vmatpush1.msra.mxu0 0.0
        %1998 = vmatprep.subr.mxu0 0.0
        %1999 = vmatpush1.msra.mxu0 0.0
        %2000 = vmatprep.subr.mxu0 0.0
        %2001 = vmatpush1.msra.mxu0 0.0
        %2002 = vmatprep.subr.mxu0 0.0
        %2003 = vmatpush1.msra.mxu0 0.0
        %2004 = vmatprep.subr.mxu0 0.0
        %2005 = vmatpush1.msra.mxu0 0.0
        %2006 = vmatprep.subr.mxu0 0.0
        %2007 = vmatpush1.msra.mxu0 0.0
        %2008 = vmatprep.subr.mxu0 0.0
        %2009 = vmatpush1.msra.mxu0 0.0
        %2010 = vmatprep.subr.mxu0 0.0
        %2011 = vmatpush1.msra.mxu0 0.0
        %2012 = vmatprep.subr.mxu0 0.0
        %2013 = vmatpush1.msra.mxu0 0.0
        %2014 = vmatprep.subr.mxu0 0.0
        %2015 = vmatpush1.msra.mxu0 0.0
        %2016 = vmatprep.subr.mxu0 0.0
        %2017 = vmatpush1.msra.mxu0 0.0
        %2018 = vmatprep.subr.mxu0 0.0
        %2019 = vmatpush1.msra.mxu0 0.0
        %2020 = vmatprep.subr.mxu0 0.0
        %2021 = vmatpush1.msra.mxu0 0.0
        %2022 = vmatprep.mubr.f32.mxu0 0.0
        %2023 = vmatmul.mubr.f32.gmra.mrb[0].mxu0 %v1734
        %v2024 = vpop.f32.mrb[0].mxu0
        %v2025 = vadd.f32 %v1801, %v2024
        %v2026 = vpop.f32.mrb[0].mxu0
        %v2027 = vadd.f32 %v1801, %v2026
        %2028 = vmatprep.mubr.f32.mxu0 0.0
        %2029 = vmatmul.mubr.f32.gmra.mrb[0].mxu0 %v1735
        %v2030 = vpop.f32.mrb[0].mxu0
        %v2031 = vadd.f32 %v1806, %v2030
        %v2032 = vpop.f32.mrb[0].mxu0
        %v2033 = vadd.f32 %v1806, %v2032
        %2034 = vmatprep.mubr.f32.mxu0 0.0
        %2035 = vmatmul.mubr.f32.gmra.mrb[0].mxu0 %v1736
        %v2036 = vpop.f32.mrb[0].mxu0
        %v2037 = vadd.f32 %v1811, %v2036
        %v2038 = vpop.f32.mrb[0].mxu0
        %v2039 = vadd.f32 %v1811, %v2038
        %2040 = vmatprep.mubr.f32.mxu0 0.0
        %2041 = vmatmul.mubr.f32.gmra.mrb[0].mxu0 %v1737
        %v2042 = vpop.f32.mrb[0].mxu0
        %v2043 = vadd.f32 %v1816, %v2042
        %v2044 = vpop.f32.mrb[0].mxu0
        %v2045 = vadd.f32 %v1816, %v2044
        %2046 = vmatprep.mubr.f32.mxu0 0.0
        %2047 = vmatmul.mubr.f32.gmra.mrb[0].mxu0 %v1738
        %v2048 = vpop.f32.mrb[0].mxu0
        %v2049 = vadd.f32 %v1821, %v2048
        %v2050 = vpop.f32.mrb[0].mxu0
        %v2051 = vadd.f32 %v1821, %v2050
        %2052 = vmatprep.mubr.f32.mxu0 0.0
        %2053 = vmatmul.mubr.f32.gmra.mrb[0].mxu0 %v1739
        %v2054 = vpop.f32.mrb[0].mxu0
        %v2055 = vadd.f32 %v1826, %v2054
        %v2056 = vpop.f32.mrb[0].mxu0
        %v2057 = vadd.f32 %v1826, %v2056
        %2058 = vmatprep.mubr.f32.mxu0 0.0
        %2059 = vmatmul.mubr.f32.gmra.mrb[0].mxu0 %v1740
        %v2060 = vpop.f32.mrb[0].mxu0
        %v2061 = vadd.f32 %v1831, %v2060
        %v2062 = vpop.f32.mrb[0].mxu0
        %v2063 = vadd.f32 %v1831, %v2062
        %2064 = vmatprep.mubr.f32.mxu0 0.0
        %2065 = vmatmul.mubr.f32.gmra.mrb[0].mxu0 %v1741
        %v2066 = vpop.f32.mrb[0].mxu0
        %v2067 = vadd.f32 %v1836, %v2066
        %v2068 = vpop.f32.mrb[0].mxu0
        %v2069 = vadd.f32 %v1836, %v2068
        %2070 = vmatprep.mubr.f32.mxu0 0.0
        %2071 = vmatmul.mubr.f32.gmra.mrb[0].mxu0 %v1742
        %v2072 = vpop.f32.mrb[0].mxu0
        %v2073 = vadd.f32 %v1841, %v2072
        %v2074 = vpop.f32.mrb[0].mxu0
        %v2075 = vadd.f32 %v1841, %v2074
        %2076 = vmatprep.mubr.f32.mxu0 0.0
        %2077 = vmatmul.mubr.f32.gmra.mrb[0].mxu0 %v1743
        %v2078 = vpop.f32.mrb[0].mxu0
        %v2079 = vadd.f32 %v1846, %v2078
        %v2080 = vpop.f32.mrb[0].mxu0
        %v2081 = vadd.f32 %v1846, %v2080
        %2082 = vmatprep.mubr.f32.mxu0 0.0
        %2083 = vmatmul.mubr.f32.gmra.mrb[0].mxu0 %v1744
        %v2084 = vpop.f32.mrb[0].mxu0
        %v2085 = vadd.f32 %v1851, %v2084
        %v2086 = vpop.f32.mrb[0].mxu0
        %v2087 = vadd.f32 %v1851, %v2086
        %2088 = vmatprep.mubr.f32.mxu0 0.0
        %2089 = vmatmul.mubr.f32.gmra.mrb[0].mxu0 %v1745
        %v2090 = vpop.f32.mrb[0].mxu0
        %v2091 = vadd.f32 %v1856, %v2090
        %v2092 = vpop.f32.mrb[0].mxu0
        %v2093 = vadd.f32 %v1856, %v2092
        %2094 = vmatprep.mubr.f32.mxu0 0.0
        %2095 = vmatmul.mubr.f32.gmra.mrb[0].mxu0 %v1746
        %v2096 = vpop.f32.mrb[0].mxu0
        %v2097 = vadd.f32 %v1861, %v2096
        %v2098 = vpop.f32.mrb[0].mxu0
        %v2099 = vadd.f32 %v1861, %v2098
        %2100 = vmatprep.mubr.f32.mxu0 0.0
        %2101 = vmatmul.mubr.f32.gmra.mrb[0].mxu0 %v1747
        %v2102 = vpop.f32.mrb[0].mxu0
        %v2103 = vadd.f32 %v1866, %v2102
        %v2104 = vpop.f32.mrb[0].mxu0
        %v2105 = vadd.f32 %v1866, %v2104
        %2106 = vmatprep.mubr.f32.mxu0 0.0
        %2107 = vmatmul.mubr.f32.gmra.mrb[0].mxu0 %v1748
        %v2108 = vpop.f32.mrb[0].mxu0
        %v2109 = vadd.f32 %v1871, %v2108
        %v2110 = vpop.f32.mrb[0].mxu0
        %v2111 = vadd.f32 %v1871, %v2110
        %2112 = vmatprep.mubr.f32.mxu0 0.0
        %2113 = vmatmul.mubr.f32.gmra.mrb[0].mxu0 %v1749
        %v2114 = vpop.f32.mrb[0].mxu0
        %v2115 = vadd.f32 %v1876, %v2114
        %v2116 = vpop.f32.mrb[0].mxu0
        %v2117 = vadd.f32 %v1876, %v2116
        %2118 = vmatprep.mubr.f32.mxu0 0.0
        %2119 = vmatmul.mubr.f32.gmra.mrb[0].mxu0 %v1750
        %v2120 = vpop.f32.mrb[0].mxu0
        %v2121 = vadd.f32 %v1881, %v2120
        %v2122 = vpop.f32.mrb[0].mxu0
        %v2123 = vadd.f32 %v1881, %v2122
        %2124 = vmatprep.mubr.f32.mxu0 0.0
        %2125 = vmatmul.mubr.f32.gmra.mrb[0].mxu0 %v1751
        %v2126 = vpop.f32.mrb[0].mxu0
        %v2127 = vadd.f32 %v1886, %v2126
        %v2128 = vpop.f32.mrb[0].mxu0
        %v2129 = vadd.f32 %v1886, %v2128
        %2130 = vmatprep.mubr.f32.mxu0 0.0
        %2131 = vmatmul.mubr.f32.gmra.mrb[0].mxu0 %v1752
        %v2132 = vpop.f32.mrb[0].mxu0
        %v2133 = vadd.f32 %v1891, %v2132
        %v2134 = vpop.f32.mrb[0].mxu0
        %v2135 = vadd.f32 %v1891, %v2134
        %2136 = vmatprep.mubr.f32.mxu0 0.0
        %2137 = vmatmul.mubr.f32.gmra.mrb[0].mxu0 %v1753
        %v2138 = vpop.f32.mrb[0].mxu0
        %v2139 = vadd.f32 %v1896, %v2138
        %v2140 = vpop.f32.mrb[0].mxu0
        %v2141 = vadd.f32 %v1896, %v2140
        %2142 = vmatprep.mubr.f32.mxu0 0.0
        %2143 = vmatmul.mubr.f32.gmra.mrb[0].mxu0 %v1754
        %v2144 = vpop.f32.mrb[0].mxu0
        %v2145 = vadd.f32 %v1901, %v2144
        %v2146 = vpop.f32.mrb[0].mxu0
        %v2147 = vadd.f32 %v1901, %v2146
        %2148 = vmatprep.mubr.f32.mxu0 0.0
        %2149 = vmatmul.mubr.f32.gmra.mrb[0].mxu0 %v1755
        %v2150 = vpop.f32.mrb[0].mxu0
        %v2151 = vadd.f32 %v1906, %v2150
        %v2152 = vpop.f32.mrb[0].mxu0
        %v2153 = vadd.f32 %v1906, %v2152
        %2154 = vmatprep.mubr.f32.mxu0 0.0
        %2155 = vmatmul.mubr.f32.gmra.mrb[0].mxu0 %v1756
        %v2156 = vpop.f32.mrb[0].mxu0
        %v2157 = vadd.f32 %v1911, %v2156
        %v2158 = vpop.f32.mrb[0].mxu0
        %v2159 = vadd.f32 %v1911, %v2158
        %2160 = vmatprep.mubr.f32.mxu0 0.0
        %2161 = vmatmul.mubr.f32.gmra.mrb[0].mxu0 %v1757
        %v2162 = vpop.f32.mrb[0].mxu0
        %v2163 = vadd.f32 %v1916, %v2162
        %v2164 = vpop.f32.mrb[0].mxu0
        %v2165 = vadd.f32 %v1916, %v2164
        %2166 = vmatprep.mubr.f32.mxu0 0.0
        %2167 = vmatmul.mubr.f32.gmra.mrb[0].mxu0 %v1758
        %v2168 = vpop.f32.mrb[0].mxu0
        %v2169 = vadd.f32 %v1921, %v2168
        %v2170 = vpop.f32.mrb[0].mxu0
        %v2171 = vadd.f32 %v1921, %v2170
        %2172 = vmatprep.mubr.f32.mxu0 0.0
        %2173 = vmatmul.mubr.f32.gmra.mrb[0].mxu0 %v1759
        %v2174 = vpop.f32.mrb[0].mxu0
        %v2175 = vadd.f32 %v1926, %v2174
        %v2176 = vpop.f32.mrb[0].mxu0
        %v2177 = vadd.f32 %v1926, %v2176
        %2178 = vmatprep.mubr.f32.mxu0 0.0
        %2179 = vmatmul.mubr.f32.gmra.mrb[0].mxu0 %v1760
        %v2180 = vpop.f32.mrb[0].mxu0
        %v2181 = vadd.f32 %v1931, %v2180
        %v2182 = vpop.f32.mrb[0].mxu0
        %v2183 = vadd.f32 %v1931, %v2182
        %2184 = vmatprep.mubr.f32.mxu0 0.0
        %2185 = vmatmul.mubr.f32.gmra.mrb[0].mxu0 %v1761
        %v2186 = vpop.f32.mrb[0].mxu0
        %v2187 = vadd.f32 %v1936, %v2186
        %v2188 = vpop.f32.mrb[0].mxu0
        %v2189 = vadd.f32 %v1936, %v2188
        %2190 = vmatprep.mubr.f32.mxu0 0.0
        %2191 = vmatmul.mubr.f32.gmra.mrb[0].mxu0 %v1762
        %v2192 = vpop.f32.mrb[0].mxu0
        %v2193 = vadd.f32 %v1941, %v2192
        %v2194 = vpop.f32.mrb[0].mxu0
        %v2195 = vadd.f32 %v1941, %v2194
        %2196 = vmatprep.mubr.f32.mxu0 0.0
        %2197 = vmatmul.mubr.f32.gmra.mrb[0].mxu0 %v1763
        %v2198 = vpop.f32.mrb[0].mxu0
        %v2199 = vadd.f32 %v1946, %v2198
        %v2200 = vpop.f32.mrb[0].mxu0
        %v2201 = vadd.f32 %v1946, %v2200
        %2202 = vmatprep.mubr.f32.mxu0 0.0
        %2203 = vmatmul.mubr.f32.gmra.mrb[0].mxu0 %v1764
        %v2204 = vpop.f32.mrb[0].mxu0
        %v2205 = vadd.f32 %v1951, %v2204
        %v2206 = vpop.f32.mrb[0].mxu0
        %v2207 = vadd.f32 %v1951, %v2206
        %2208 = vmatprep.mubr.f32.mxu0 0.0
        %2209 = vmatmul.mubr.f32.gmra.mrb[0].mxu0 %v1765
        %v2210 = vpop.f32.mrb[0].mxu0
        %v2211 = vadd.f32 %v1956, %v2210
        %v2212 = vpop.f32.mrb[0].mxu0
        %v2213 = vadd.f32 %v1956, %v2212
        %2214 = vdwg.mxu0
        %v2215 = vmin.f32 %v2025, 0.0
        %v2216 = vmin.f32 %v2027, 0.0
        %v2217 = vmin.f32 %v2031, 0.0
        %v2218 = vmin.f32 %v2033, 0.0
        %v2219 = vmin.f32 %v2037, 0.0
        %v2220 = vmin.f32 %v2039, 0.0
        %v2221 = vmin.f32 %v2043, 0.0
        %v2222 = vmin.f32 %v2045, 0.0
        %v2223 = vmin.f32 %v2049, 0.0
        %v2224 = vmin.f32 %v2051, 0.0
        %v2225 = vmin.f32 %v2055, 0.0
        %v2226 = vmin.f32 %v2057, 0.0
        %v2227 = vmin.f32 %v2061, 0.0
        %v2228 = vmin.f32 %v2063, 0.0
        %v2229 = vmin.f32 %v2067, 0.0
        %v2230 = vmin.f32 %v2069, 0.0
        %v2231 = vmin.f32 %v2073, 0.0
        %v2232 = vmin.f32 %v2075, 0.0
        %v2233 = vmin.f32 %v2079, 0.0
        %v2234 = vmin.f32 %v2081, 0.0
        %v2235 = vmin.f32 %v2085, 0.0
        %v2236 = vmin.f32 %v2087, 0.0
        %v2237 = vmin.f32 %v2091, 0.0
        %v2238 = vmin.f32 %v2093, 0.0
        %v2239 = vmin.f32 %v2097, 0.0
        %v2240 = vmin.f32 %v2099, 0.0
        %v2241 = vmin.f32 %v2103, 0.0
        %v2242 = vmin.f32 %v2105, 0.0
        %v2243 = vmin.f32 %v2109, 0.0
        %v2244 = vmin.f32 %v2111, 0.0
        %v2245 = vmin.f32 %v2115, 0.0
        %v2246 = vmin.f32 %v2117, 0.0
        %v2247 = vmin.f32 %v2121, 0.0
        %v2248 = vmin.f32 %v2123, 0.0
        %v2249 = vmin.f32 %v2127, 0.0
        %v2250 = vmin.f32 %v2129, 0.0
        %v2251 = vmin.f32 %v2133, 0.0
        %v2252 = vmin.f32 %v2135, 0.0
        %v2253 = vmin.f32 %v2139, 0.0
        %v2254 = vmin.f32 %v2141, 0.0
        %v2255 = vmin.f32 %v2145, 0.0
        %v2256 = vmin.f32 %v2147, 0.0
        %v2257 = vmin.f32 %v2151, 0.0
        %v2258 = vmin.f32 %v2153, 0.0
        %v2259 = vmin.f32 %v2157, 0.0
        %v2260 = vmin.f32 %v2159, 0.0
        %v2261 = vmin.f32 %v2163, 0.0
        %v2262 = vmin.f32 %v2165, 0.0
        %v2263 = vmin.f32 %v2169, 0.0
        %v2264 = vmin.f32 %v2171, 0.0
        %v2265 = vmin.f32 %v2175, 0.0
        %v2266 = vmin.f32 %v2177, 0.0
        %v2267 = vmin.f32 %v2181, 0.0
        %v2268 = vmin.f32 %v2183, 0.0
        %v2269 = vmin.f32 %v2187, 0.0
        %v2270 = vmin.f32 %v2189, 0.0
        %v2271 = vmin.f32 %v2193, 0.0
        %v2272 = vmin.f32 %v2195, 0.0
        %v2273 = vmin.f32 %v2199, 0.0
        %v2274 = vmin.f32 %v2201, 0.0
        %v2275 = vmin.f32 %v2205, 0.0
        %v2276 = vmin.f32 %v2207, 0.0
        %v2277 = vmin.f32 %v2211, 0.0
        %v2278 = vmin.f32 %v2213, 0.0
        %v2279 = vmul.f32 %v2215, 1.442695
        %v2280 = vpow.pop %v2279
        %v2281 = vmul.f32 %v2216, 1.442695
        %v2282 = vpow.pop %v2281
        %v2283 = vmul.f32 %v2217, 1.442695
        %v2284 = vpow.pop %v2283
        %v2285 = vmul.f32 %v2218, 1.442695
        %v2286 = vpow.pop %v2285
        %v2287 = vmul.f32 %v2219, 1.442695
        %v2288 = vpow.pop %v2287
        %v2289 = vmul.f32 %v2220, 1.442695
        %v2290 = vpow.pop %v2289
        %v2291 = vmul.f32 %v2221, 1.442695
        %v2292 = vpow.pop %v2291
        %v2293 = vmul.f32 %v2222, 1.442695
        %v2294 = vpow.pop %v2293
        %v2295 = vmul.f32 %v2223, 1.442695
        %v2296 = vpow.pop %v2295
        %v2297 = vmul.f32 %v2224, 1.442695
        %v2298 = vpow.pop %v2297
        %v2299 = vmul.f32 %v2225, 1.442695
        %v2300 = vpow.pop %v2299
        %v2301 = vmul.f32 %v2226, 1.442695
        %v2302 = vpow.pop %v2301
        %v2303 = vmul.f32 %v2227, 1.442695
        %v2304 = vpow.pop %v2303
        %v2305 = vmul.f32 %v2228, 1.442695
        %v2306 = vpow.pop %v2305
        %v2307 = vmul.f32 %v2229, 1.442695
        %v2308 = vpow.pop %v2307
        %v2309 = vmul.f32 %v2230, 1.442695
        %v2310 = vpow.pop %v2309
        %v2311 = vmul.f32 %v2231, 1.442695
        %v2312 = vpow.pop %v2311
        %v2313 = vmul.f32 %v2232, 1.442695
        %v2314 = vpow.pop %v2313
        %v2315 = vmul.f32 %v2233, 1.442695
        %v2316 = vpow.pop %v2315
        %v2317 = vmul.f32 %v2234, 1.442695
        %v2318 = vpow.pop %v2317
        %v2319 = vmul.f32 %v2235, 1.442695
        %v2320 = vpow.pop %v2319
        %v2321 = vmul.f32 %v2236, 1.442695
        %v2322 = vpow.pop %v2321
        %v2323 = vmul.f32 %v2237, 1.442695
        %v2324 = vpow.pop %v2323
        %v2325 = vmul.f32 %v2238, 1.442695
        %v2326 = vpow.pop %v2325
        %v2327 = vmul.f32 %v2239, 1.442695
        %v2328 = vpow.pop %v2327
        %v2329 = vmul.f32 %v2240, 1.442695
        %v2330 = vpow.pop %v2329
        %v2331 = vmul.f32 %v2241, 1.442695
        %v2332 = vpow.pop %v2331
        %v2333 = vmul.f32 %v2242, 1.442695
        %v2334 = vpow.pop %v2333
        %v2335 = vmul.f32 %v2243, 1.442695
        %v2336 = vpow.pop %v2335
        %v2337 = vmul.f32 %v2244, 1.442695
        %v2338 = vpow.pop %v2337
        %v2339 = vmul.f32 %v2245, 1.442695
        %v2340 = vpow.pop %v2339
        %v2341 = vmul.f32 %v2246, 1.442695
        %v2342 = vpow.pop %v2341
        %v2343 = vmul.f32 %v2247, 1.442695
        %v2344 = vpow.pop %v2343
        %v2345 = vmul.f32 %v2248, 1.442695
        %v2346 = vpow.pop %v2345
        %v2347 = vmul.f32 %v2249, 1.442695
        %v2348 = vpow.pop %v2347
        %v2349 = vmul.f32 %v2250, 1.442695
        %v2350 = vpow.pop %v2349
        %v2351 = vmul.f32 %v2251, 1.442695
        %v2352 = vpow.pop %v2351
        %v2353 = vmul.f32 %v2252, 1.442695
        %v2354 = vpow.pop %v2353
        %v2355 = vmul.f32 %v2253, 1.442695
        %v2356 = vpow.pop %v2355
        %v2357 = vmul.f32 %v2254, 1.442695
        %v2358 = vpow.pop %v2357
        %v2359 = vmul.f32 %v2255, 1.442695
        %v2360 = vpow.pop %v2359
        %v2361 = vmul.f32 %v2256, 1.442695
        %v2362 = vpow.pop %v2361
        %v2363 = vmul.f32 %v2257, 1.442695
        %v2364 = vpow.pop %v2363
        %v2365 = vmul.f32 %v2258, 1.442695
        %v2366 = vpow.pop %v2365
        %v2367 = vmul.f32 %v2259, 1.442695
        %v2368 = vpow.pop %v2367
        %v2369 = vmul.f32 %v2260, 1.442695
        %v2370 = vpow.pop %v2369
        %v2371 = vmul.f32 %v2261, 1.442695
        %v2372 = vpow.pop %v2371
        %v2373 = vmul.f32 %v2262, 1.442695
        %v2374 = vpow.pop %v2373
        %v2375 = vmul.f32 %v2263, 1.442695
        %v2376 = vpow.pop %v2375
        %v2377 = vmul.f32 %v2264, 1.442695
        %v2378 = vpow.pop %v2377
        %v2379 = vmul.f32 %v2265, 1.442695
        %v2380 = vpow.pop %v2379
        %v2381 = vmul.f32 %v2266, 1.442695
        %v2382 = vpow.pop %v2381
        %v2383 = vmul.f32 %v2267, 1.442695
        %v2384 = vpow.pop %v2383
        %v2385 = vmul.f32 %v2268, 1.442695
        %v2386 = vpow.pop %v2385
        %v2387 = vmul.f32 %v2269, 1.442695
        %v2388 = vpow.pop %v2387
        %v2389 = vmul.f32 %v2270, 1.442695
        %v2390 = vpow.pop %v2389
        %v2391 = vmul.f32 %v2271, 1.442695
        %v2392 = vpow.pop %v2391
        %v2393 = vmul.f32 %v2272, 1.442695
        %v2394 = vpow.pop %v2393
        %v2395 = vmul.f32 %v2273, 1.442695
        %v2396 = vpow.pop %v2395
        %v2397 = vmul.f32 %v2274, 1.442695
        %v2398 = vpow.pop %v2397
        %v2399 = vmul.f32 %v2275, 1.442695
        %v2400 = vpow.pop %v2399
        %v2401 = vmul.f32 %v2276, 1.442695
        %v2402 = vpow.pop %v2401
        %v2403 = vmul.f32 %v2277, 1.442695
        %v2404 = vpow.pop %v2403
        %v2405 = vmul.f32 %v2278, 1.442695
        %v2406 = vpow.pop %v2405
        %v2407 = vsub.f32 %v2280, 1.0
        %v2408 = vsub.f32 %v2282, 1.0
        %v2409 = vsub.f32 %v2284, 1.0
        %v2410 = vsub.f32 %v2286, 1.0
        %v2411 = vsub.f32 %v2288, 1.0
        %v2412 = vsub.f32 %v2290, 1.0
        %v2413 = vsub.f32 %v2292, 1.0
        %v2414 = vsub.f32 %v2294, 1.0
        %v2415 = vsub.f32 %v2296, 1.0
        %v2416 = vsub.f32 %v2298, 1.0
        %v2417 = vsub.f32 %v2300, 1.0
        %v2418 = vsub.f32 %v2302, 1.0
        %v2419 = vsub.f32 %v2304, 1.0
        %v2420 = vsub.f32 %v2306, 1.0
        %v2421 = vsub.f32 %v2308, 1.0
        %v2422 = vsub.f32 %v2310, 1.0
        %v2423 = vsub.f32 %v2312, 1.0
        %v2424 = vsub.f32 %v2314, 1.0
        %v2425 = vsub.f32 %v2316, 1.0
        %v2426 = vsub.f32 %v2318, 1.0
        %v2427 = vsub.f32 %v2320, 1.0
        %v2428 = vsub.f32 %v2322, 1.0
        %v2429 = vsub.f32 %v2324, 1.0
        %v2430 = vsub.f32 %v2326, 1.0
        %v2431 = vsub.f32 %v2328, 1.0
        %v2432 = vsub.f32 %v2330, 1.0
        %v2433 = vsub.f32 %v2332, 1.0
        %v2434 = vsub.f32 %v2334, 1.0
        %v2435 = vsub.f32 %v2336, 1.0
        %v2436 = vsub.f32 %v2338, 1.0
        %v2437 = vsub.f32 %v2340, 1.0
        %v2438 = vsub.f32 %v2342, 1.0
        %v2439 = vsub.f32 %v2344, 1.0
        %v2440 = vsub.f32 %v2346, 1.0
        %v2441 = vsub.f32 %v2348, 1.0
        %v2442 = vsub.f32 %v2350, 1.0
        %v2443 = vsub.f32 %v2352, 1.0
        %v2444 = vsub.f32 %v2354, 1.0
        %v2445 = vsub.f32 %v2356, 1.0
        %v2446 = vsub.f32 %v2358, 1.0
        %v2447 = vsub.f32 %v2360, 1.0
        %v2448 = vsub.f32 %v2362, 1.0
        %v2449 = vsub.f32 %v2364, 1.0
        %v2450 = vsub.f32 %v2366, 1.0
        %v2451 = vsub.f32 %v2368, 1.0
        %v2452 = vsub.f32 %v2370, 1.0
        %v2453 = vsub.f32 %v2372, 1.0
        %v2454 = vsub.f32 %v2374, 1.0
        %v2455 = vsub.f32 %v2376, 1.0
        %v2456 = vsub.f32 %v2378, 1.0
        %v2457 = vsub.f32 %v2380, 1.0
        %v2458 = vsub.f32 %v2382, 1.0
        %v2459 = vsub.f32 %v2384, 1.0
        %v2460 = vsub.f32 %v2386, 1.0
        %v2461 = vsub.f32 %v2388, 1.0
        %v2462 = vsub.f32 %v2390, 1.0
        %v2463 = vsub.f32 %v2392, 1.0
        %v2464 = vsub.f32 %v2394, 1.0
        %v2465 = vsub.f32 %v2396, 1.0
        %v2466 = vsub.f32 %v2398, 1.0
        %v2467 = vsub.f32 %v2400, 1.0
        %v2468 = vsub.f32 %v2402, 1.0
        %v2469 = vsub.f32 %v2404, 1.0
        %v2470 = vsub.f32 %v2406, 1.0
        %v2471 = vmul.f32 %v2407, 1.6732632
        %v2472 = vmul.f32 %v2408, 1.6732632
        %v2473 = vmul.f32 %v2409, 1.6732632
        %v2474 = vmul.f32 %v2410, 1.6732632
        %v2475 = vmul.f32 %v2411, 1.6732632
        %v2476 = vmul.f32 %v2412, 1.6732632
        %v2477 = vmul.f32 %v2413, 1.6732632
        %v2478 = vmul.f32 %v2414, 1.6732632
        %v2479 = vmul.f32 %v2415, 1.6732632
        %v2480 = vmul.f32 %v2416, 1.6732632
        %v2481 = vmul.f32 %v2417, 1.6732632
        %v2482 = vmul.f32 %v2418, 1.6732632
        %v2483 = vmul.f32 %v2419, 1.6732632
        %v2484 = vmul.f32 %v2420, 1.6732632
        %v2485 = vmul.f32 %v2421, 1.6732632
        %v2486 = vmul.f32 %v2422, 1.6732632
        %v2487 = vmul.f32 %v2423, 1.6732632
        %v2488 = vmul.f32 %v2424, 1.6732632
        %v2489 = vmul.f32 %v2425, 1.6732632
        %v2490 = vmul.f32 %v2426, 1.6732632
        %v2491 = vmul.f32 %v2427, 1.6732632
        %v2492 = vmul.f32 %v2428, 1.6732632
        %v2493 = vmul.f32 %v2429, 1.6732632
        %v2494 = vmul.f32 %v2430, 1.6732632
        %v2495 = vmul.f32 %v2431, 1.6732632
        %v2496 = vmul.f32 %v2432, 1.6732632
        %v2497 = vmul.f32 %v2433, 1.6732632
        %v2498 = vmul.f32 %v2434, 1.6732632
        %v2499 = vmul.f32 %v2435, 1.6732632
        %v2500 = vmul.f32 %v2436, 1.6732632
        %v2501 = vmul.f32 %v2437, 1.6732632
        %v2502 = vmul.f32 %v2438, 1.6732632
        %v2503 = vmul.f32 %v2439, 1.6732632
        %v2504 = vmul.f32 %v2440, 1.6732632
        %v2505 = vmul.f32 %v2441, 1.6732632
        %v2506 = vmul.f32 %v2442, 1.6732632
        %v2507 = vmul.f32 %v2443, 1.6732632
        %v2508 = vmul.f32 %v2444, 1.6732632
        %v2509 = vmul.f32 %v2445, 1.6732632
        %v2510 = vmul.f32 %v2446, 1.6732632
        %v2511 = vmul.f32 %v2447, 1.6732632
        %v2512 = vmul.f32 %v2448, 1.6732632
        %v2513 = vmul.f32 %v2449, 1.6732632
        %v2514 = vmul.f32 %v2450, 1.6732632
        %v2515 = vmul.f32 %v2451, 1.6732632
        %v2516 = vmul.f32 %v2452, 1.6732632
        %v2517 = vmul.f32 %v2453, 1.6732632
        %v2518 = vmul.f32 %v2454, 1.6732632
        %v2519 = vmul.f32 %v2455, 1.6732632
        %v2520 = vmul.f32 %v2456, 1.6732632
        %v2521 = vmul.f32 %v2457, 1.6732632
        %v2522 = vmul.f32 %v2458, 1.6732632
        %v2523 = vmul.f32 %v2459, 1.6732632
        %v2524 = vmul.f32 %v2460, 1.6732632
        %v2525 = vmul.f32 %v2461, 1.6732632
        %v2526 = vmul.f32 %v2462, 1.6732632
        %v2527 = vmul.f32 %v2463, 1.6732632
        %v2528 = vmul.f32 %v2464, 1.6732632
        %v2529 = vmul.f32 %v2465, 1.6732632
        %v2530 = vmul.f32 %v2466, 1.6732632
        %v2531 = vmul.f32 %v2467, 1.6732632
        %v2532 = vmul.f32 %v2468, 1.6732632
        %v2533 = vmul.f32 %v2469, 1.6732632
        %v2534 = vmul.f32 %v2470, 1.6732632
        %vm2535 = vcmp.gt.f32.partialorder %v2025, 0.0
        %vm2536 = vcmp.gt.f32.partialorder %v2027, 0.0
        %vm2537 = vcmp.gt.f32.partialorder %v2031, 0.0
        %vm2538 = vcmp.gt.f32.partialorder %v2033, 0.0
        %vm2539 = vcmp.gt.f32.partialorder %v2037, 0.0
        %vm2540 = vcmp.gt.f32.partialorder %v2039, 0.0
        %vm2541 = vcmp.gt.f32.partialorder %v2043, 0.0
        %vm2542 = vcmp.gt.f32.partialorder %v2045, 0.0
        %vm2543 = vcmp.gt.f32.partialorder %v2049, 0.0
        %vm2544 = vcmp.gt.f32.partialorder %v2051, 0.0
        %vm2545 = vcmp.gt.f32.partialorder %v2055, 0.0
        %vm2546 = vcmp.gt.f32.partialorder %v2057, 0.0
        %vm2547 = vcmp.gt.f32.partialorder %v2061, 0.0
        %vm2548 = vcmp.gt.f32.partialorder %v2063, 0.0
        %vm2549 = vcmp.gt.f32.partialorder %v2067, 0.0
        %vm2550 = vcmp.gt.f32.partialorder %v2069, 0.0
        %vm2551 = vcmp.gt.f32.partialorder %v2073, 0.0
        %vm2552 = vcmp.gt.f32.partialorder %v2075, 0.0
        %vm2553 = vcmp.gt.f32.partialorder %v2079, 0.0
        %vm2554 = vcmp.gt.f32.partialorder %v2081, 0.0
        %vm2555 = vcmp.gt.f32.partialorder %v2085, 0.0
        %vm2556 = vcmp.gt.f32.partialorder %v2087, 0.0
        %vm2557 = vcmp.gt.f32.partialorder %v2091, 0.0
        %vm2558 = vcmp.gt.f32.partialorder %v2093, 0.0
        %vm2559 = vcmp.gt.f32.partialorder %v2097, 0.0
        %vm2560 = vcmp.gt.f32.partialorder %v2099, 0.0
        %vm2561 = vcmp.gt.f32.partialorder %v2103, 0.0
        %vm2562 = vcmp.gt.f32.partialorder %v2105, 0.0
        %vm2563 = vcmp.gt.f32.partialorder %v2109, 0.0
        %vm2564 = vcmp.gt.f32.partialorder %v2111, 0.0
        %vm2565 = vcmp.gt.f32.partialorder %v2115, 0.0
        %vm2566 = vcmp.gt.f32.partialorder %v2117, 0.0
        %vm2567 = vcmp.gt.f32.partialorder %v2121, 0.0
        %vm2568 = vcmp.gt.f32.partialorder %v2123, 0.0
        %vm2569 = vcmp.gt.f32.partialorder %v2127, 0.0
        %vm2570 = vcmp.gt.f32.partialorder %v2129, 0.0
        %vm2571 = vcmp.gt.f32.partialorder %v2133, 0.0
        %vm2572 = vcmp.gt.f32.partialorder %v2135, 0.0
        %vm2573 = vcmp.gt.f32.partialorder %v2139, 0.0
        %vm2574 = vcmp.gt.f32.partialorder %v2141, 0.0
        %vm2575 = vcmp.gt.f32.partialorder %v2145, 0.0
        %vm2576 = vcmp.gt.f32.partialorder %v2147, 0.0
        %vm2577 = vcmp.gt.f32.partialorder %v2151, 0.0
        %vm2578 = vcmp.gt.f32.partialorder %v2153, 0.0
        %vm2579 = vcmp.gt.f32.partialorder %v2157, 0.0
        %vm2580 = vcmp.gt.f32.partialorder %v2159, 0.0
        %vm2581 = vcmp.gt.f32.partialorder %v2163, 0.0
        %vm2582 = vcmp.gt.f32.partialorder %v2165, 0.0
        %vm2583 = vcmp.gt.f32.partialorder %v2169, 0.0
        %vm2584 = vcmp.gt.f32.partialorder %v2171, 0.0
        %vm2585 = vcmp.gt.f32.partialorder %v2175, 0.0
        %vm2586 = vcmp.gt.f32.partialorder %v2177, 0.0
        %vm2587 = vcmp.gt.f32.partialorder %v2181, 0.0
        %vm2588 = vcmp.gt.f32.partialorder %v2183, 0.0
        %vm2589 = vcmp.gt.f32.partialorder %v2187, 0.0
        %vm2590 = vcmp.gt.f32.partialorder %v2189, 0.0
        %vm2591 = vcmp.gt.f32.partialorder %v2193, 0.0
        %vm2592 = vcmp.gt.f32.partialorder %v2195, 0.0
        %vm2593 = vcmp.gt.f32.partialorder %v2199, 0.0
        %vm2594 = vcmp.gt.f32.partialorder %v2201, 0.0
        %vm2595 = vcmp.gt.f32.partialorder %v2205, 0.0
        %vm2596 = vcmp.gt.f32.partialorder %v2207, 0.0
        %vm2597 = vcmp.gt.f32.partialorder %v2211, 0.0
        %vm2598 = vcmp.gt.f32.partialorder %v2213, 0.0
        %v2599 = vsel %vm2535, %v2025, %v2471
        %v2600 = vsel %vm2536, %v2027, %v2472
        %v2601 = vsel %vm2537, %v2031, %v2473
        %v2602 = vsel %vm2538, %v2033, %v2474
        %v2603 = vsel %vm2539, %v2037, %v2475
        %v2604 = vsel %vm2540, %v2039, %v2476
        %v2605 = vsel %vm2541, %v2043, %v2477
        %v2606 = vsel %vm2542, %v2045, %v2478
        %v2607 = vsel %vm2543, %v2049, %v2479
        %v2608 = vsel %vm2544, %v2051, %v2480
        %v2609 = vsel %vm2545, %v2055, %v2481
        %v2610 = vsel %vm2546, %v2057, %v2482
        %v2611 = vsel %vm2547, %v2061, %v2483
        %v2612 = vsel %vm2548, %v2063, %v2484
        %v2613 = vsel %vm2549, %v2067, %v2485
        %v2614 = vsel %vm2550, %v2069, %v2486
        %v2615 = vsel %vm2551, %v2073, %v2487
        %v2616 = vsel %vm2552, %v2075, %v2488
        %v2617 = vsel %vm2553, %v2079, %v2489
        %v2618 = vsel %vm2554, %v2081, %v2490
        %v2619 = vsel %vm2555, %v2085, %v2491
        %v2620 = vsel %vm2556, %v2087, %v2492
        %v2621 = vsel %vm2557, %v2091, %v2493
        %v2622 = vsel %vm2558, %v2093, %v2494
        %v2623 = vsel %vm2559, %v2097, %v2495
        %v2624 = vsel %vm2560, %v2099, %v2496
        %v2625 = vsel %vm2561, %v2103, %v2497
        %v2626 = vsel %vm2562, %v2105, %v2498
        %v2627 = vsel %vm2563, %v2109, %v2499
        %v2628 = vsel %vm2564, %v2111, %v2500
        %v2629 = vsel %vm2565, %v2115, %v2501
        %v2630 = vsel %vm2566, %v2117, %v2502
        %v2631 = vsel %vm2567, %v2121, %v2503
        %v2632 = vsel %vm2568, %v2123, %v2504
        %v2633 = vsel %vm2569, %v2127, %v2505
        %v2634 = vsel %vm2570, %v2129, %v2506
        %v2635 = vsel %vm2571, %v2133, %v2507
        %v2636 = vsel %vm2572, %v2135, %v2508
        %v2637 = vsel %vm2573, %v2139, %v2509
        %v2638 = vsel %vm2574, %v2141, %v2510
        %v2639 = vsel %vm2575, %v2145, %v2511
        %v2640 = vsel %vm2576, %v2147, %v2512
        %v2641 = vsel %vm2577, %v2151, %v2513
        %v2642 = vsel %vm2578, %v2153, %v2514
        %v2643 = vsel %vm2579, %v2157, %v2515
        %v2644 = vsel %vm2580, %v2159, %v2516
        %v2645 = vsel %vm2581, %v2163, %v2517
        %v2646 = vsel %vm2582, %v2165, %v2518
        %v2647 = vsel %vm2583, %v2169, %v2519
        %v2648 = vsel %vm2584, %v2171, %v2520
        %v2649 = vsel %vm2585, %v2175, %v2521
        %v2650 = vsel %vm2586, %v2177, %v2522
        %v2651 = vsel %vm2587, %v2181, %v2523
        %v2652 = vsel %vm2588, %v2183, %v2524
        %v2653 = vsel %vm2589, %v2187, %v2525
        %v2654 = vsel %vm2590, %v2189, %v2526
        %v2655 = vsel %vm2591, %v2193, %v2527
        %v2656 = vsel %vm2592, %v2195, %v2528
        %v2657 = vsel %vm2593, %v2199, %v2529
        %v2658 = vsel %vm2594, %v2201, %v2530
        %v2659 = vsel %vm2595, %v2205, %v2531
        %v2660 = vsel %vm2596, %v2207, %v2532
        %v2661 = vsel %vm2597, %v2211, %v2533
        %v2662 = vsel %vm2598, %v2213, %v2534
        %v2663 = vmul.f32 %v2599, 1.050701
        %v2664 = vmul.f32 %v2600, 1.050701
        %v2665 = vmul.f32 %v2601, 1.050701
        %v2666 = vmul.f32 %v2602, 1.050701
        %v2667 = vmul.f32 %v2603, 1.050701
        %v2668 = vmul.f32 %v2604, 1.050701
        %v2669 = vmul.f32 %v2605, 1.050701
        %v2670 = vmul.f32 %v2606, 1.050701
        %v2671 = vmul.f32 %v2607, 1.050701
        %v2672 = vmul.f32 %v2608, 1.050701
        %v2673 = vmul.f32 %v2609, 1.050701
        %v2674 = vmul.f32 %v2610, 1.050701
        %v2675 = vmul.f32 %v2611, 1.050701
        %v2676 = vmul.f32 %v2612, 1.050701
        %v2677 = vmul.f32 %v2613, 1.050701
        %v2678 = vmul.f32 %v2614, 1.050701
        %v2679 = vmul.f32 %v2615, 1.050701
        %v2680 = vmul.f32 %v2616, 1.050701
        %v2681 = vmul.f32 %v2617, 1.050701
        %v2682 = vmul.f32 %v2618, 1.050701
        %v2683 = vmul.f32 %v2619, 1.050701
        %v2684 = vmul.f32 %v2620, 1.050701
        %v2685 = vmul.f32 %v2621, 1.050701
        %v2686 = vmul.f32 %v2622, 1.050701
        %v2687 = vmul.f32 %v2623, 1.050701
        %v2688 = vmul.f32 %v2624, 1.050701
        %v2689 = vmul.f32 %v2625, 1.050701
        %v2690 = vmul.f32 %v2626, 1.050701
        %v2691 = vmul.f32 %v2627, 1.050701
        %v2692 = vmul.f32 %v2628, 1.050701
        %v2693 = vmul.f32 %v2629, 1.050701
        %v2694 = vmul.f32 %v2630, 1.050701
        %v2695 = vmul.f32 %v2631, 1.050701
        %v2696 = vmul.f32 %v2632, 1.050701
        %v2697 = vmul.f32 %v2633, 1.050701
        %v2698 = vmul.f32 %v2634, 1.050701
        %v2699 = vmul.f32 %v2635, 1.050701
        %v2700 = vmul.f32 %v2636, 1.050701
        %v2701 = vmul.f32 %v2637, 1.050701
        %v2702 = vmul.f32 %v2638, 1.050701
        %v2703 = vmul.f32 %v2639, 1.050701
        %v2704 = vmul.f32 %v2640, 1.050701
        %v2705 = vmul.f32 %v2641, 1.050701
        %v2706 = vmul.f32 %v2642, 1.050701
        %v2707 = vmul.f32 %v2643, 1.050701
        %v2708 = vmul.f32 %v2644, 1.050701
        %v2709 = vmul.f32 %v2645, 1.050701
        %v2710 = vmul.f32 %v2646, 1.050701
        %v2711 = vmul.f32 %v2647, 1.050701
        %v2712 = vmul.f32 %v2648, 1.050701
        %v2713 = vmul.f32 %v2649, 1.050701
        %v2714 = vmul.f32 %v2650, 1.050701
        %v2715 = vmul.f32 %v2651, 1.050701
        %v2716 = vmul.f32 %v2652, 1.050701
        %v2717 = vmul.f32 %v2653, 1.050701
        %v2718 = vmul.f32 %v2654, 1.050701
        %v2719 = vmul.f32 %v2655, 1.050701
        %v2720 = vmul.f32 %v2656, 1.050701
        %v2721 = vmul.f32 %v2657, 1.050701
        %v2722 = vmul.f32 %v2658, 1.050701
        %v2723 = vmul.f32 %v2659, 1.050701
        %v2724 = vmul.f32 %v2660, 1.050701
        %v2725 = vmul.f32 %v2661, 1.050701
        %v2726 = vmul.f32 %v2662, 1.050701
        %2727 = vst [vmem:[%s465] sm:$0xff] %v2663
        %2728 = vst [vmem:[%s465 + $0x8] sm:$0xff] %v2664
        %2729 = vst [vmem:[%s465 + $0x10] sm:$0xff] %v2665
        %2730 = vst [vmem:[%s465 + $0x18] sm:$0xff] %v2666
        %2731 = vst [vmem:[%s465 + $0x20] sm:$0xff] %v2667
        %2732 = vst [vmem:[%s465 + $0x28] sm:$0xff] %v2668
        %2733 = vst [vmem:[%s465 + $0x30] sm:$0xff] %v2669
        %2734 = vst [vmem:[%s465 + $0x38] sm:$0xff] %v2670
        %2735 = vst [vmem:[%s465 + $0x40] sm:$0xff] %v2671
        %2736 = vst [vmem:[%s465 + $0x48] sm:$0xff] %v2672
        %2737 = vst [vmem:[%s465 + $0x50] sm:$0xff] %v2673
        %2738 = vst [vmem:[%s465 + $0x58] sm:$0xff] %v2674
        %2739 = vst [vmem:[%s465 + $0x60] sm:$0xff] %v2675
        %2740 = vst [vmem:[%s465 + $0x68] sm:$0xff] %v2676
        %2741 = vst [vmem:[%s465 + $0x70] sm:$0xff] %v2677
        %2742 = vst [vmem:[%s465 + $0x78] sm:$0xff] %v2678
        %2743 = vst [vmem:[%s465 + $0x80] sm:$0xff] %v2679
        %2744 = vst [vmem:[%s465 + $0x88] sm:$0xff] %v2680
        %2745 = vst [vmem:[%s465 + $0x90] sm:$0xff] %v2681
        %2746 = vst [vmem:[%s465 + $0x98] sm:$0xff] %v2682
        %2747 = vst [vmem:[%s465 + $0xa0] sm:$0xff] %v2683
        %2748 = vst [vmem:[%s465 + $0xa8] sm:$0xff] %v2684
        %2749 = vst [vmem:[%s465 + $0xb0] sm:$0xff] %v2685
        %2750 = vst [vmem:[%s465 + $0xb8] sm:$0xff] %v2686
        %2751 = vst [vmem:[%s465 + $0xc0] sm:$0xff] %v2687
        %2752 = vst [vmem:[%s465 + $0xc8] sm:$0xff] %v2688
        %2753 = vst [vmem:[%s465 + $0xd0] sm:$0xff] %v2689
        %2754 = vst [vmem:[%s465 + $0xd8] sm:$0xff] %v2690
        %2755 = vst [vmem:[%s465 + $0xe0] sm:$0xff] %v2691
        %2756 = vst [vmem:[%s465 + $0xe8] sm:$0xff] %v2692
        %2757 = vst [vmem:[%s465 + $0xf0] sm:$0xff] %v2693
        %2758 = vst [vmem:[%s465 + $0xf8] sm:$0xff] %v2694
        %2759 = vst [vmem:[%s465 + $0x100] sm:$0xff] %v2695
        %2760 = vst [vmem:[%s465 + $0x108] sm:$0xff] %v2696
        %2761 = vst [vmem:[%s465 + $0x110] sm:$0xff] %v2697
        %2762 = vst [vmem:[%s465 + $0x118] sm:$0xff] %v2698
        %2763 = vst [vmem:[%s465 + $0x120] sm:$0xff] %v2699
        %2764 = vst [vmem:[%s465 + $0x128] sm:$0xff] %v2700
        %2765 = vst [vmem:[%s465 + $0x130] sm:$0xff] %v2701
        %2766 = vst [vmem:[%s465 + $0x138] sm:$0xff] %v2702
        %2767 = vst [vmem:[%s465 + $0x140] sm:$0xff] %v2703
        %2768 = vst [vmem:[%s465 + $0x148] sm:$0xff] %v2704
        %2769 = vst [vmem:[%s465 + $0x150] sm:$0xff] %v2705
        %2770 = vst [vmem:[%s465 + $0x158] sm:$0xff] %v2706
        %2771 = vst [vmem:[%s465 + $0x160] sm:$0xff] %v2707
        %2772 = vst [vmem:[%s465 + $0x168] sm:$0xff] %v2708
        %2773 = vst [vmem:[%s465 + $0x170] sm:$0xff] %v2709
        %2774 = vst [vmem:[%s465 + $0x178] sm:$0xff] %v2710
        %2775 = vst [vmem:[%s465 + $0x180] sm:$0xff] %v2711
        %2776 = vst [vmem:[%s465 + $0x188] sm:$0xff] %v2712
        %2777 = vst [vmem:[%s465 + $0x190] sm:$0xff] %v2713
        %2778 = vst [vmem:[%s465 + $0x198] sm:$0xff] %v2714
        %2779 = vst [vmem:[%s465 + $0x1a0] sm:$0xff] %v2715
        %2780 = vst [vmem:[%s465 + $0x1a8] sm:$0xff] %v2716
        %2781 = vst [vmem:[%s465 + $0x1b0] sm:$0xff] %v2717
        %2782 = vst [vmem:[%s465 + $0x1b8] sm:$0xff] %v2718
        %2783 = vst [vmem:[%s465 + $0x1c0] sm:$0xff] %v2719
        %2784 = vst [vmem:[%s465 + $0x1c8] sm:$0xff] %v2720
        %2785 = vst [vmem:[%s465 + $0x1d0] sm:$0xff] %v2721
        %2786 = vst [vmem:[%s465 + $0x1d8] sm:$0xff] %v2722
        %2787 = vst [vmem:[%s465 + $0x1e0] sm:$0xff] %v2723
        %2788 = vst [vmem:[%s465 + $0x1e8] sm:$0xff] %v2724
        %2789 = vst [vmem:[%s465 + $0x1f0] sm:$0xff] %v2725
        %2790 = vst [vmem:[%s465 + $0x1f8] sm:$0xff] %v2726
        %s2791 = sand.u32 %s251, 1
        %s2792 = scalar_lea.sflag [#allocation3], %s2791
        %s2793 = sand.u32 %s251, 1
        %s2794 = smul.addr %s2793, 64
        %s2795 = scalar_lea.vmem [#allocation2], %s2794
        %s2796 = sand.u32 %s33, 1
        %s2797 = scalar_lea.sflag [#allocation5], %s2796
        %s2798 = sand.u32 %s279, 1
        %s2799 = smul.addr %s2798, 128
        %s2800 = scalar_lea.vmem [#allocation4], %s2799
        %s2801 = sand.u32 %s33, 1
        %s2802 = scalar_lea.sflag [#allocation5], %s2801
        %s2803 = sand.u32 %s307, 1
        %s2804 = smul.addr %s2803, 256
        %s2805 = scalar_lea.vmem [#allocation6], %s2804
        %s2806 = sand.u32 %s335, 1
        %s2807 = scalar_lea.sflag [#allocation8], %s2806
        %s2808 = sand.u32 %s335, 1
        %s2809 = smul.addr %s2808, 512
        %s2810 = scalar_lea.vmem [#allocation7], %s2809
        // Predicated region
        $region57: #{tpu_custom_call.1} parent=55 // pred_check
          %p2811 = pneg %p261
        $region58: #{tpu_custom_call.1} parent=55 // pred_check_branch
          %2813 = sbr.rel (%p2811) target = $region60
        $region59: #{tpu_custom_call.1} parent=55 // pred_region
          %s2814 = smul.u32 2, %s38
          %s2816 = ssub.s32 1024, 1024
          %2817 = vsyncadd %s2792, %s2816
          %s2818 = smul.addr %s37, 8
          %s2819 = sadd.s32 %s2814, %s2818
          %s2820 = smul.addr %s2819, 128
          %s2821 = scalar_lea.hbm %s9, %s2820
          %s2822 = sshll.u32 %s2795, 4
          %s2823 = int_to_ptr.vmem [resolvable:$true] %s2822
          %2828 = dma.vmem_to_hbm [thread:$0]  %s2823, 1024, %s2821, %s2792, 256, 256, 16
        $region60: #{tpu_custom_call.1} parent=55 // pred_fallthru
          _
        // Predicated region
        $region61: #{tpu_custom_call.1} parent=55 // pred_check
          %p2829 = pneg %p289
        $region62: #{tpu_custom_call.1} parent=55 // pred_check_branch
          %2831 = sbr.rel (%p2829) target = $region64
        $region63: #{tpu_custom_call.1} parent=55 // pred_region
          %s2832 = smul.u32 2, %s38
          %s2834 = ssub.s32 2048, 2048
          %2835 = vsyncadd %s2797, %s2834
          %s2836 = smul.addr %s37, 16
          %s2837 = sadd.s32 %s2832, %s2836
          %s2838 = smul.addr %s2837, 128
          %s2839 = scalar_lea.hbm %s10, %s2838
          %s2840 = sshll.u32 %s2800, 4
          %s2841 = int_to_ptr.vmem [resolvable:$true] %s2840
          %2846 = dma.vmem_to_hbm [thread:$0]  %s2841, 2048, %s2839, %s2797, 256, 256, 16
        $region64: #{tpu_custom_call.1} parent=55 // pred_fallthru
          _
        // Predicated region
        $region65: #{tpu_custom_call.1} parent=55 // pred_check
          %p2847 = pneg %p317
        $region66: #{tpu_custom_call.1} parent=55 // pred_check_branch
          %2849 = sbr.rel (%p2847) target = $region68
        $region67: #{tpu_custom_call.1} parent=55 // pred_region
          %s2850 = smul.u32 2, %s38
          %s2852 = ssub.s32 4096, 4096
          %2853 = vsyncadd %s2802, %s2852
          %s2854 = smul.addr %s37, 32
          %s2855 = sadd.s32 %s2850, %s2854
          %s2856 = smul.addr %s2855, 128
          %s2857 = scalar_lea.hbm %s11, %s2856
          %s2858 = sshll.u32 %s2805, 4
          %s2859 = int_to_ptr.vmem [resolvable:$true] %s2858
          %2864 = dma.vmem_to_hbm [thread:$0]  %s2859, 4096, %s2857, %s2802, 256, 256, 16
        $region68: #{tpu_custom_call.1} parent=55 // pred_fallthru
          _
        // Predicated region
        $region69: #{tpu_custom_call.1} parent=55 // pred_check
          %p2865 = pneg %p345
        $region70: #{tpu_custom_call.1} parent=55 // pred_check_branch
          %2867 = sbr.rel (%p2865) target = $region72
        $region71: #{tpu_custom_call.1} parent=55 // pred_region
          %s2868 = smul.u32 2, %s38
          %s2870 = ssub.s32 8192, 8192
          %2871 = vsyncadd %s2807, %s2870
          %s2872 = smul.addr %s37, 64
          %s2873 = sadd.s32 %s2868, %s2872
          %s2874 = smul.addr %s2873, 128
          %s2875 = scalar_lea.hbm %s12, %s2874
          %s2876 = sshll.u32 %s2810, 4
          %s2877 = int_to_ptr.vmem [resolvable:$true] %s2876
          %2882 = dma.vmem_to_hbm [thread:$0]  %s2877, 8192, %s2875, %s2807, 256, 256, 16
        $region72: #{tpu_custom_call.1} parent=55 // pred_fallthru
          _
      $region56: #{tpu_custom_call.1} parent=5 // pred_fallthru
        _
      %p2883 = scmp.le.s32.totalorder 2, %s28
      // Predicated region
      $region73: #{tpu_custom_call.1} parent=5 // pred_check
        %p2884 = pneg %p2883
      $region74: #{tpu_custom_call.1} parent=5 // pred_check_branch
        %2886 = sbr.rel (%p2884) target = $region76
      $region75: #{tpu_custom_call.1} parent=5 // pred_region
        %s2887 = ssub.s32 %s28, 2
        // Predicated region
        $region77: #{tpu_custom_call.1} parent=75 // pred_check
          %p2888 = pneg %p267
        $region78: #{tpu_custom_call.1} parent=75 // pred_check_branch
          %2890 = sbr.rel (%p2888) target = $region80
        $region79: #{tpu_custom_call.1} parent=75 // pred_region
          %s2891 = sand.u32 %s252, 1
          %s2892 = scalar_lea.sflag [#allocation3], %s2891
          %s2893 = sand.u32 %s252, 1
          %s2894 = smul.addr %s2893, 64
          %s2895 = scalar_lea.vmem [#allocation2], %s2894
          %2896 = dma.done %s2892, 1024
        $region80: #{tpu_custom_call.1} parent=75 // pred_fallthru
          _
        // Predicated region
        $region81: #{tpu_custom_call.1} parent=75 // pred_check
          %p2897 = pneg %p295
        $region82: #{tpu_custom_call.1} parent=75 // pred_check_branch
          %2899 = sbr.rel (%p2897) target = $region84
        $region83: #{tpu_custom_call.1} parent=75 // pred_region
          %s2900 = sand.u32 %s34, 1
          %s2901 = scalar_lea.sflag [#allocation5], %s2900
          %s2902 = sand.u32 %s280, 1
          %s2903 = smul.addr %s2902, 128
          %s2904 = scalar_lea.vmem [#allocation4], %s2903
          %2905 = dma.done %s2901, 2048
        $region84: #{tpu_custom_call.1} parent=75 // pred_fallthru
          _
        // Predicated region
        $region85: #{tpu_custom_call.1} parent=75 // pred_check
          %p2906 = pneg %p323
        $region86: #{tpu_custom_call.1} parent=75 // pred_check_branch
          %2908 = sbr.rel (%p2906) target = $region88
        $region87: #{tpu_custom_call.1} parent=75 // pred_region
          %s2909 = sand.u32 %s34, 1
          %s2910 = scalar_lea.sflag [#allocation5], %s2909
          %s2911 = sand.u32 %s308, 1
          %s2912 = smul.addr %s2911, 256
          %s2913 = scalar_lea.vmem [#allocation6], %s2912
          %2914 = dma.done %s2910, 4096
        $region88: #{tpu_custom_call.1} parent=75 // pred_fallthru
          _
        // Predicated region
        $region89: #{tpu_custom_call.1} parent=75 // pred_check
          %p2915 = pneg %p351
        $region90: #{tpu_custom_call.1} parent=75 // pred_check_branch
          %2917 = sbr.rel (%p2915) target = $region92
        $region91: #{tpu_custom_call.1} parent=75 // pred_region
          %s2918 = sand.u32 %s336, 1
          %s2919 = scalar_lea.sflag [#allocation8], %s2918
          %s2920 = sand.u32 %s336, 1
          %s2921 = smul.addr %s2920, 512
          %s2922 = scalar_lea.vmem [#allocation7], %s2921
          %2923 = dma.done %s2919, 8192
        $region92: #{tpu_custom_call.1} parent=75 // pred_fallthru
          _
      $region76: #{tpu_custom_call.1} parent=5 // pred_fallthru
        _
    $region6: #{tpu_custom_call.1} parent=1 // loop_footer
      %s32 = sadd.s32 1, %s28
    $region7: #{tpu_custom_call.1} parent=1 // loop_footer_branch
      %27 = sbr.rel target = $region3
    $region8: #{tpu_custom_call.1} parent=1 // loop_exit
      _
    %2924 = vsyncpa [#allocation3], 1
    %s2925 = scalar_lea.sflag [#allocation3], 1
    %2926 = vsyncpa %s2925, 1
    %2927 = vsyncpa [#allocation5], 1
    %s2928 = scalar_lea.sflag [#allocation5], 1
    %2929 = vsyncpa %s2928, 1
    %2930 = vsyncpa [#allocation8], 1
    %s2931 = scalar_lea.sflag [#allocation8], 1
    %2932 = vsyncpa %s2931, 1

</llo_original>
